<compile_context>
chip_gen: v7x
topology: tpu7x:2x2x1
jax: 0.10.0
libtpu: 0.0.40
codegen_flags: <defaults>
</compile_context>

<pallas_src>
import functools

import jax
import jax.numpy as jnp
from jax.experimental import pallas as pl
from jax.experimental.pallas import tpu as pltpu


# ----------------------------------------------------------------------------
# Fused kernel: im2col matmul conv + train-mode BN + LSTM gate update.
# ----------------------------------------------------------------------------
def _fused_convlstm_kernel(xp_ref, hp_ref, w_ref, gamma_ref, beta_ref, c_ref,
                           h_out_ref, c_out_ref, *, B, H, W, K, Cin, CH, eps):
    M = B * H * W
    C4 = 4 * CH

    xp = xp_ref[...]                       # (B, H+K-1, W+K-1, Cin) zero-padded
    hp = hp_ref[...]                       # (B, H+K-1, W+K-1, CH)  zero-padded

    # --- im2col: K*K shifted windows; per offset the column order is
    #     [input channels | hidden channels], matching the weight layout. -----
    cols = []
    for ky in range(K):                    # static unroll (K*K slices)
        for kx in range(K):
            cols.append(xp[:, ky:ky + H, kx:kx + W, :].reshape(M, Cin))
            cols.append(hp[:, ky:ky + H, kx:kx + W, :].reshape(M, CH))
    patches = jnp.concatenate(cols, axis=1)             # (M, K*K*(Cin+CH))

    # --- one MXU matmul, f32 accumulation. w_ref is N-padded to a multiple
    #     of 128 (extra columns are zero), which is free on the MXU. ----------
    y = jnp.dot(patches, w_ref[...],
                preferred_element_type=jnp.float32)      # (M, Npad)

    # --- lane-dense epilogue: channels -> sublanes, B*H*W -> lanes. ----------
    yt = pltpu.einshape("mc->cm", y)[0:C4, :]            # (C4, M)

    # Train-mode BatchNorm2d: biased batch variance, two-pass (stable).
    # The conv bias is omitted: a per-channel constant cancels exactly under
    # the mean subtraction and leaves the variance unchanged.
    inv_n = 1.0 / float(M)
    mean = jnp.sum(yt, axis=1, keepdims=True) * inv_n    # (C4, 1)
    d = yt - mean
    var = jnp.sum(d * d, axis=1, keepdims=True) * inv_n
    yn = d * jax.lax.rsqrt(var + eps) * gamma_ref[...] + beta_ref[...]

    # LSTM gates: i/f/o use sigmoid(x) = 0.5*(tanh(0.5*x) + 1) so all four
    # gates go through one EUP tanh pass over the full (C4, M) slab.
    is_sig = jax.lax.broadcasted_iota(jnp.int32, (C4, 1), 0) < 3 * CH
    t = jnp.tanh(jnp.where(is_sig, 0.5 * yn, yn))
    act = jnp.where(is_sig, 0.5 * (t + 1.0), t)

    i_g = act[0 * CH:1 * CH, :]
    f_g = act[1 * CH:2 * CH, :]
    o_g = act[2 * CH:3 * CH, :]
    g_g = act[3 * CH:4 * CH, :]

    c_cur = c_ref[...]                                   # (CH, M) lane-dense
    c_next = f_g * c_cur + i_g * g_g
    h_next = o_g * jnp.tanh(c_next)

    h_out_ref[...] = h_next
    c_out_ref[...] = c_next


# ----------------------------------------------------------------------------
# Wrapper: NCHW in / NCHW out, mirroring ConvLSTMCell.forward.
# ----------------------------------------------------------------------------
def conv_lstm_cell(x, h_cur, c_cur, w, bias, gamma, beta, kernel_size, eps=1e-5):
    del bias  # cancels exactly under train-mode BatchNorm (see kernel comment)

    B, Cin, H, W = x.shape
    Ch = h_cur.shape[1]
    K = kernel_size
    P = K // 2
    C = Cin + Ch
    C4 = 4 * Ch
    M = B * H * W
    Hp, Wp = H + 2 * P, W + 2 * P
    Npad = ((C4 + 127) // 128) * 128        # lane-aligned matmul N dimension

    # Boundary plumbing (NCHW -> NHWC + zero pad). x and h stay separate so no
    # combined tensor is materialized / re-read in HBM.
    x_pad = jnp.pad(jnp.transpose(x, (0, 2, 3, 1)),
                    ((0, 0), (P, P), (P, P), (0, 0)))
    h_pad = jnp.pad(jnp.transpose(h_cur, (0, 2, 3, 1)),
                    ((0, 0), (P, P), (P, P), (0, 0)))

    # (C4, C, K, K) -> (K*K*C, C4): row = (ky*K + kx)*C + c, channel order per
    # offset is [input channels | hidden channels]; then pad N -> Npad.
    w_km = jnp.transpose(w, (2, 3, 1, 0)).reshape(K * K * C, C4)
    w_km = jnp.pad(w_km, ((0, 0), (0, Npad - C4))).astype(jnp.float32)

    # Channels-on-sublanes / spatial-on-lanes layout for the state update so
    # the gate epilogue and the h/c stores are lane-dense (last dim = B*H*W).
    c_t = jnp.transpose(c_cur, (1, 0, 2, 3)).reshape(Ch, M)
    gamma_c = gamma.reshape(C4, 1).astype(jnp.float32)
    beta_c = beta.reshape(C4, 1).astype(jnp.float32)

    # TODO(synk): for large H*W, tile the conv over H with halo blocks and set
    # pltpu.CompilerParams(vmem_limit_bytes=...) explicitly (v7x has 64 MiB
    # VMEM); whole-image single-step blocks are the right choice at these sizes.
    h_t, c_nt = pl.pallas_call(
        functools.partial(_fused_convlstm_kernel, B=B, H=H, W=W, K=K,
                          Cin=Cin, CH=Ch, eps=eps),
        out_shape=(jax.ShapeDtypeStruct((Ch, M), jnp.float32),
                   jax.ShapeDtypeStruct((Ch, M), jnp.float32)),
        grid=(1,),
        in_specs=[
            pl.BlockSpec((B, Hp, Wp, Cin), lambda i: (0, 0, 0, 0)),
            pl.BlockSpec((B, Hp, Wp, Ch), lambda i: (0, 0, 0, 0)),
            pl.BlockSpec((K * K * C, Npad), lambda i: (0, 0)),
            pl.BlockSpec((C4, 1), lambda i: (0, 0)),
            pl.BlockSpec((C4, 1), lambda i: (0, 0)),
            pl.BlockSpec((Ch, M), lambda i: (0, 0)),
        ],
        out_specs=(
            pl.BlockSpec((Ch, M), lambda i: (0, 0)),
            pl.BlockSpec((Ch, M), lambda i: (0, 0)),
        ),
        compiler_params=pltpu.CompilerParams(
            dimension_semantics=("arbitrary",)),
    )(x_pad, h_pad, w_km, gamma_c, beta_c, c_t)

    h_next = jnp.transpose(h_t.reshape(Ch, B, H, W), (1, 0, 2, 3))
    c_next = jnp.transpose(c_nt.reshape(Ch, B, H, W), (1, 0, 2, 3))
    return h_next, c_next


# ----------------------------------------------------------------------------
# Pure-JAX reference (NCHW, identical semantics to the PyTorch module).
# ----------------------------------------------------------------------------
def conv_lstm_cell_ref(x, h_cur, c_cur, w, bias, gamma, beta, kernel_size,
                       eps=1e-5):
    P = kernel_size // 2
    combined = jnp.concatenate([x, h_cur], axis=1)
    y = jax.lax.conv_general_dilated(
        combined, w, window_strides=(1, 1), padding=((P, P), (P, P)),
        dimension_numbers=("NCHW", "OIHW", "NCHW"))
    y = y + bias.reshape(1, -1, 1, 1)
    mean = jnp.mean(y, axis=(0, 2, 3), keepdims=True)
    var = jnp.mean((y - mean) ** 2, axis=(0, 2, 3), keepdims=True)   # biased
    yn = (y - mean) * jax.lax.rsqrt(var + eps) * gamma.reshape(1, -1, 1, 1) \
         + beta.reshape(1, -1, 1, 1)
    cc_i, cc_f, cc_o, cc_g = jnp.split(yn, 4, axis=1)
    i = jax.nn.sigmoid(cc_i)
    f = jax.nn.sigmoid(cc_f)
    o = jax.nn.sigmoid(cc_o)
    g = jnp.tanh(cc_g)
    c_next = f * c_cur + i * g
    h_next = o * jnp.tanh(c_next)
    return h_next, c_next


if __name__ == "__main__":
    B, Cin, Ch, H, W, K = 2, 4, 8, 16, 16, 3
    C, C4 = Cin + Ch, 4 * Ch

    key = jax.random.PRNGKey(0)
    k1, k2, k3, k4, k5, k6, k7 = jax.random.split(key, 7)

    x = jax.random.normal(k1, (B, Cin, H, W), jnp.float32)
    h_cur = jax.random.normal(k2, (B, Ch, H, W), jnp.float32)
    c_cur = jax.random.normal(k3, (B, Ch, H, W), jnp.float32)

    # Parameter shapes match nn.Conv2d / nn.BatchNorm2d of the module.
    w = 0.1 * jax.random.normal(k4, (C4, C, K, K), jnp.float32)   # OIHW
    bias = 0.1 * jax.random.normal(k5, (C4,), jnp.float32)
    gamma = 1.0 + 0.1 * jax.random.normal(k6, (C4,), jnp.float32)
    beta = 0.1 * jax.random.normal(k7, (C4,), jnp.float32)

    cell = jax.jit(functools.partial(conv_lstm_cell, kernel_size=K))
    h_next, c_next = cell(x, h_cur, c_cur, w, bias, gamma, beta)
    jax.block_until_ready((h_next, c_next))

    h_ref, c_ref = conv_lstm_cell_ref(x, h_cur, c_cur, w, bias, gamma, beta, K)
    assert jnp.allclose(h_next, h_ref, rtol=2e-4, atol=2e-4), "h_next mismatch"
    assert jnp.allclose(c_next, c_ref, rtol=2e-4, atol=2e-4), "c_next mismatch"

    print("KERNEL_OK")
</pallas_src>

<mosaic_0001>
module attributes {stable_mosaic.version = 11 : i64} {
  func.func @_fused_convlstm_kernel(%arg0: i32, %arg1: memref<2x18x18x4xf32, #tpu.memory_space<vmem>>, %arg2: memref<2x18x18x8xf32, #tpu.memory_space<vmem>>, %arg3: memref<108x128xf32, #tpu.memory_space<vmem>>, %arg4: memref<32x1xf32, #tpu.memory_space<vmem>>, %arg5: memref<32x1xf32, #tpu.memory_space<vmem>>, %arg6: memref<8x512xf32, #tpu.memory_space<vmem>>, %arg7: memref<8x512xf32, #tpu.memory_space<vmem>>, %arg8: memref<8x512xf32, #tpu.memory_space<vmem>>) attributes {dimension_semantics = [#tpu.dimension_semantics<arbitrary>], iteration_bounds = array<i64: 1>, scalar_prefetch = 0 : i64, scratch_operands = 0 : i64, tpu.core_type = #tpu.core_type<tc>, window_params = [{pipeline_mode = #tpu.pipeline_mode<synchronous>, transform_indices = @transform_0, window_bounds = array<i64: 2, 18, 18, 4>}, {pipeline_mode = #tpu.pipeline_mode<synchronous>, transform_indices = @transform_1, window_bounds = array<i64: 2, 18, 18, 8>}, {pipeline_mode = #tpu.pipeline_mode<synchronous>, transform_indices = @transform_2, window_bounds = array<i64: 108, 128>}, {pipeline_mode = #tpu.pipeline_mode<synchronous>, transform_indices = @transform_3, window_bounds = array<i64: 32, 1>}, {pipeline_mode = #tpu.pipeline_mode<synchronous>, transform_indices = @transform_4, window_bounds = array<i64: 32, 1>}, {pipeline_mode = #tpu.pipeline_mode<synchronous>, transform_indices = @transform_5, window_bounds = array<i64: 8, 512>}, {pipeline_mode = #tpu.pipeline_mode<synchronous>, transform_indices = @transform_6, window_bounds = array<i64: 8, 512>}, {pipeline_mode = #tpu.pipeline_mode<synchronous>, transform_indices = @transform_7, window_bounds = array<i64: 8, 512>}]} {
    %c0 = arith.constant 0 : index
    %c0_0 = arith.constant 0 : index
    %c0_1 = arith.constant 0 : index
    %c0_2 = arith.constant 0 : index
    %0 = vector.load %arg1[%c0, %c0_0, %c0_1, %c0_2] : memref<2x18x18x4xf32, #tpu.memory_space<vmem>>, vector<2x18x18x4xf32>
    %c0_3 = arith.constant 0 : index
    %c0_4 = arith.constant 0 : index
    %c0_5 = arith.constant 0 : index
    %c0_6 = arith.constant 0 : index
    %1 = vector.load %arg2[%c0_3, %c0_4, %c0_5, %c0_6] : memref<2x18x18x8xf32, #tpu.memory_space<vmem>>, vector<2x18x18x8xf32>
    %2 = vector.extract_strided_slice %0 {offsets = [0, 0, 0, 0], sizes = [2, 16, 16, 4], strides = [1, 1, 1, 1]} : vector<2x18x18x4xf32> to vector<2x16x16x4xf32>
    %3 = vector.shape_cast %2 : vector<2x16x16x4xf32> to vector<512x4xf32>
    %4 = vector.extract_strided_slice %1 {offsets = [0, 0, 0, 0], sizes = [2, 16, 16, 8], strides = [1, 1, 1, 1]} : vector<2x18x18x8xf32> to vector<2x16x16x8xf32>
    %5 = vector.shape_cast %4 : vector<2x16x16x8xf32> to vector<512x8xf32>
    %6 = vector.extract_strided_slice %0 {offsets = [0, 0, 1, 0], sizes = [2, 16, 16, 4], strides = [1, 1, 1, 1]} : vector<2x18x18x4xf32> to vector<2x16x16x4xf32>
    %7 = vector.shape_cast %6 : vector<2x16x16x4xf32> to vector<512x4xf32>
    %8 = vector.extract_strided_slice %1 {offsets = [0, 0, 1, 0], sizes = [2, 16, 16, 8], strides = [1, 1, 1, 1]} : vector<2x18x18x8xf32> to vector<2x16x16x8xf32>
    %9 = vector.shape_cast %8 : vector<2x16x16x8xf32> to vector<512x8xf32>
    %10 = vector.extract_strided_slice %0 {offsets = [0, 0, 2, 0], sizes = [2, 16, 16, 4], strides = [1, 1, 1, 1]} : vector<2x18x18x4xf32> to vector<2x16x16x4xf32>
    %11 = vector.shape_cast %10 : vector<2x16x16x4xf32> to vector<512x4xf32>
    %12 = vector.extract_strided_slice %1 {offsets = [0, 0, 2, 0], sizes = [2, 16, 16, 8], strides = [1, 1, 1, 1]} : vector<2x18x18x8xf32> to vector<2x16x16x8xf32>
    %13 = vector.shape_cast %12 : vector<2x16x16x8xf32> to vector<512x8xf32>
    %14 = vector.extract_strided_slice %0 {offsets = [0, 1, 0, 0], sizes = [2, 16, 16, 4], strides = [1, 1, 1, 1]} : vector<2x18x18x4xf32> to vector<2x16x16x4xf32>
    %15 = vector.shape_cast %14 : vector<2x16x16x4xf32> to vector<512x4xf32>
    %16 = vector.extract_strided_slice %1 {offsets = [0, 1, 0, 0], sizes = [2, 16, 16, 8], strides = [1, 1, 1, 1]} : vector<2x18x18x8xf32> to vector<2x16x16x8xf32>
    %17 = vector.shape_cast %16 : vector<2x16x16x8xf32> to vector<512x8xf32>
    %18 = vector.extract_strided_slice %0 {offsets = [0, 1, 1, 0], sizes = [2, 16, 16, 4], strides = [1, 1, 1, 1]} : vector<2x18x18x4xf32> to vector<2x16x16x4xf32>
    %19 = vector.shape_cast %18 : vector<2x16x16x4xf32> to vector<512x4xf32>
    %20 = vector.extract_strided_slice %1 {offsets = [0, 1, 1, 0], sizes = [2, 16, 16, 8], strides = [1, 1, 1, 1]} : vector<2x18x18x8xf32> to vector<2x16x16x8xf32>
    %21 = vector.shape_cast %20 : vector<2x16x16x8xf32> to vector<512x8xf32>
    %22 = vector.extract_strided_slice %0 {offsets = [0, 1, 2, 0], sizes = [2, 16, 16, 4], strides = [1, 1, 1, 1]} : vector<2x18x18x4xf32> to vector<2x16x16x4xf32>
    %23 = vector.shape_cast %22 : vector<2x16x16x4xf32> to vector<512x4xf32>
    %24 = vector.extract_strided_slice %1 {offsets = [0, 1, 2, 0], sizes = [2, 16, 16, 8], strides = [1, 1, 1, 1]} : vector<2x18x18x8xf32> to vector<2x16x16x8xf32>
    %25 = vector.shape_cast %24 : vector<2x16x16x8xf32> to vector<512x8xf32>
    %26 = vector.extract_strided_slice %0 {offsets = [0, 2, 0, 0], sizes = [2, 16, 16, 4], strides = [1, 1, 1, 1]} : vector<2x18x18x4xf32> to vector<2x16x16x4xf32>
    %27 = vector.shape_cast %26 : vector<2x16x16x4xf32> to vector<512x4xf32>
    %28 = vector.extract_strided_slice %1 {offsets = [0, 2, 0, 0], sizes = [2, 16, 16, 8], strides = [1, 1, 1, 1]} : vector<2x18x18x8xf32> to vector<2x16x16x8xf32>
    %29 = vector.shape_cast %28 : vector<2x16x16x8xf32> to vector<512x8xf32>
    %30 = vector.extract_strided_slice %0 {offsets = [0, 2, 1, 0], sizes = [2, 16, 16, 4], strides = [1, 1, 1, 1]} : vector<2x18x18x4xf32> to vector<2x16x16x4xf32>
    %31 = vector.shape_cast %30 : vector<2x16x16x4xf32> to vector<512x4xf32>
    %32 = vector.extract_strided_slice %1 {offsets = [0, 2, 1, 0], sizes = [2, 16, 16, 8], strides = [1, 1, 1, 1]} : vector<2x18x18x8xf32> to vector<2x16x16x8xf32>
    %33 = vector.shape_cast %32 : vector<2x16x16x8xf32> to vector<512x8xf32>
    %34 = vector.extract_strided_slice %0 {offsets = [0, 2, 2, 0], sizes = [2, 16, 16, 4], strides = [1, 1, 1, 1]} : vector<2x18x18x4xf32> to vector<2x16x16x4xf32>
    %35 = vector.shape_cast %34 : vector<2x16x16x4xf32> to vector<512x4xf32>
    %36 = vector.extract_strided_slice %1 {offsets = [0, 2, 2, 0], sizes = [2, 16, 16, 8], strides = [1, 1, 1, 1]} : vector<2x18x18x8xf32> to vector<2x16x16x8xf32>
    %37 = vector.shape_cast %36 : vector<2x16x16x8xf32> to vector<512x8xf32>
    %38 = tpu.concatenate %3, %5, %7, %9, %11, %13, %15, %17, %19, %21, %23, %25, %27, %29, %31, %33 in 1 : vector<512x4xf32>, vector<512x8xf32>, vector<512x4xf32>, vector<512x8xf32>, vector<512x4xf32>, vector<512x8xf32>, vector<512x4xf32>, vector<512x8xf32>, vector<512x4xf32>, vector<512x8xf32>, vector<512x4xf32>, vector<512x8xf32>, vector<512x4xf32>, vector<512x8xf32>, vector<512x4xf32>, vector<512x8xf32> -> vector<512x96xf32>
    %39 = tpu.concatenate %35, %37 in 1 : vector<512x4xf32>, vector<512x8xf32> -> vector<512x12xf32>
    %40 = tpu.concatenate %38, %39 in 1 : vector<512x96xf32>, vector<512x12xf32> -> vector<512x108xf32>
    %c0_7 = arith.constant 0 : index
    %c0_8 = arith.constant 0 : index
    %41 = vector.load %arg3[%c0_7, %c0_8] : memref<108x128xf32, #tpu.memory_space<vmem>>, vector<108x128xf32>
    %cst = arith.constant dense<0.000000e+00> : vector<512x128xf32>
    %42 = tpu.matmul %40, %41, %cst {dimension_numbers = #tpu.dot_dimension_numbers<[1], [0], [0], [1], [0, 0, 1, 1], [], []>} : vector<512x108xf32>, vector<108x128xf32>, vector<512x128xf32> -> vector<512x128xf32>
    %43 = tpu.transpose %42, [1, 0] : vector<512x128xf32> -> vector<128x512xf32>
    %44 = vector.extract_strided_slice %43 {offsets = [0, 0], sizes = [32, 512], strides = [1, 1]} : vector<128x512xf32> to vector<32x512xf32>
    %cst_9 = arith.constant dense<0.000000e+00> : vector<32xf32>
    %45 = vector.multi_reduction <add>, %44, %cst_9 [1] : vector<32x512xf32> to vector<32xf32>
    %46 = vector.shape_cast %45 : vector<32xf32> to vector<32x1xf32>
    %cst_10 = arith.constant 0.001953125 : f32
    %47 = vector.broadcast %cst_10 : f32 to vector<32x1xf32>
    %48 = arith.mulf %46, %47 : vector<32x1xf32>
    %49 = vector.broadcast %48 : vector<32x1xf32> to vector<32x512xf32>
    %50 = arith.subf %44, %49 : vector<32x512xf32>
    %51 = arith.mulf %50, %50 : vector<32x512xf32>
    %cst_11 = arith.constant dense<0.000000e+00> : vector<32xf32>
    %52 = vector.multi_reduction <add>, %51, %cst_11 [1] : vector<32x512xf32> to vector<32xf32>
    %53 = vector.shape_cast %52 : vector<32xf32> to vector<32x1xf32>
    %cst_12 = arith.constant 0.001953125 : f32
    %54 = vector.broadcast %cst_12 : f32 to vector<32x1xf32>
    %55 = arith.mulf %53, %54 : vector<32x1xf32>
    %cst_13 = arith.constant 9.99999974E-6 : f32
    %56 = vector.broadcast %cst_13 : f32 to vector<32x1xf32>
    %57 = arith.addf %55, %56 : vector<32x1xf32>
    %58 = math.rsqrt %57 : vector<32x1xf32>
    %59 = vector.broadcast %58 : vector<32x1xf32> to vector<32x512xf32>
    %60 = arith.mulf %50, %59 : vector<32x512xf32>
    %c0_14 = arith.constant 0 : index
    %c0_15 = arith.constant 0 : index
    %61 = vector.load %arg4[%c0_14, %c0_15] : memref<32x1xf32, #tpu.memory_space<vmem>>, vector<32x1xf32>
    %62 = vector.broadcast %61 : vector<32x1xf32> to vector<32x512xf32>
    %63 = arith.mulf %60, %62 : vector<32x512xf32>
    %c0_16 = arith.constant 0 : index
    %c0_17 = arith.constant 0 : index
    %64 = vector.load %arg5[%c0_16, %c0_17] : memref<32x1xf32, #tpu.memory_space<vmem>>, vector<32x1xf32>
    %65 = vector.broadcast %64 : vector<32x1xf32> to vector<32x512xf32>
    %66 = arith.addf %63, %65 : vector<32x512xf32>
    %67 = tpu.iota {dimensions = array<i32: 0>} : vector<32x1xi32>
    %c24_i32 = arith.constant 24 : i32
    %68 = vector.broadcast %c24_i32 : i32 to vector<32x1xi32>
    %69 = arith.cmpi slt, %67, %68 : vector<32x1xi32>
    %cst_18 = arith.constant 5.000000e-01 : f32
    %70 = vector.broadcast %cst_18 : f32 to vector<32x512xf32>
    %71 = arith.mulf %70, %66 : vector<32x512xf32>
    %72 = vector.shape_cast %69 : vector<32x1xi1> to vector<32x1xi1>
    %73 = vector.broadcast %72 : vector<32x1xi1> to vector<32x512xi1>
    %74 = arith.select %73, %71, %66 : vector<32x512xi1>, vector<32x512xf32>
    %75 = math.tanh %74 : vector<32x512xf32>
    %cst_19 = arith.constant 1.000000e+00 : f32
    %76 = vector.broadcast %cst_19 : f32 to vector<32x512xf32>
    %77 = arith.addf %75, %76 : vector<32x512xf32>
    %cst_20 = arith.constant 5.000000e-01 : f32
    %78 = vector.broadcast %cst_20 : f32 to vector<32x512xf32>
    %79 = arith.mulf %78, %77 : vector<32x512xf32>
    %80 = vector.shape_cast %69 : vector<32x1xi1> to vector<32x1xi1>
    %81 = vector.broadcast %80 : vector<32x1xi1> to vector<32x512xi1>
    %82 = arith.select %81, %79, %75 : vector<32x512xi1>, vector<32x512xf32>
    %83 = vector.extract_strided_slice %82 {offsets = [0, 0], sizes = [8, 512], strides = [1, 1]} : vector<32x512xf32> to vector<8x512xf32>
    %84 = vector.extract_strided_slice %82 {offsets = [8, 0], sizes = [8, 512], strides = [1, 1]} : vector<32x512xf32> to vector<8x512xf32>
    %85 = vector.extract_strided_slice %82 {offsets = [16, 0], sizes = [8, 512], strides = [1, 1]} : vector<32x512xf32> to vector<8x512xf32>
    %86 = vector.extract_strided_slice %82 {offsets = [24, 0], sizes = [8, 512], strides = [1, 1]} : vector<32x512xf32> to vector<8x512xf32>
    %c0_21 = arith.constant 0 : index
    %c0_22 = arith.constant 0 : index
    %87 = vector.load %arg6[%c0_21, %c0_22] : memref<8x512xf32, #tpu.memory_space<vmem>>, vector<8x512xf32>
    %88 = arith.mulf %84, %87 : vector<8x512xf32>
    %89 = arith.mulf %83, %86 : vector<8x512xf32>
    %90 = arith.addf %88, %89 : vector<8x512xf32>
    %91 = math.tanh %90 : vector<8x512xf32>
    %92 = arith.mulf %85, %91 : vector<8x512xf32>
    %c0_23 = arith.constant 0 : index
    %c0_24 = arith.constant 0 : index
    %93 = vector.load %arg7[%c0_23, %c0_24] : memref<8x512xf32, #tpu.memory_space<vmem>>, vector<8x512xf32>
    tpu.vector_store %arg7[%c0_23, %c0_24], %92 {strides = array<i32>} : memref<8x512xf32, #tpu.memory_space<vmem>>, vector<8x512xf32>,
    %c0_25 = arith.constant 0 : index
    %c0_26 = arith.constant 0 : index
    %94 = vector.load %arg8[%c0_25, %c0_26] : memref<8x512xf32, #tpu.memory_space<vmem>>, vector<8x512xf32>
    tpu.vector_store %arg8[%c0_25, %c0_26], %90 {strides = array<i32>} : memref<8x512xf32, #tpu.memory_space<vmem>>, vector<8x512xf32>,
    return
  }
  func.func @transform_0(%arg0: i32) -> (i32, i32, i32, i32) {
    %c0_i32 = arith.constant 0 : i32
    %c0_i32_0 = arith.constant 0 : i32
    %c0_i32_1 = arith.constant 0 : i32
    %c0_i32_2 = arith.constant 0 : i32
    %c0_i32_3 = arith.constant 0 : i32
    return %c0_i32, %c0_i32_0, %c0_i32_1, %c0_i32_2 : i32, i32, i32, i32
  }
  func.func @transform_1(%arg0: i32) -> (i32, i32, i32, i32) {
    %c0_i32 = arith.constant 0 : i32
    %c0_i32_0 = arith.constant 0 : i32
    %c0_i32_1 = arith.constant 0 : i32
    %c0_i32_2 = arith.constant 0 : i32
    %c0_i32_3 = arith.constant 0 : i32
    return %c0_i32, %c0_i32_0, %c0_i32_1, %c0_i32_2 : i32, i32, i32, i32
  }
  func.func @transform_2(%arg0: i32) -> (i32, i32) {
    %c0_i32 = arith.constant 0 : i32
    %c0_i32_0 = arith.constant 0 : i32
    %c0_i32_1 = arith.constant 0 : i32
    return %c0_i32, %c0_i32_0 : i32, i32
  }
  func.func @transform_3(%arg0: i32) -> (i32, i32) {
    %c0_i32 = arith.constant 0 : i32
    %c0_i32_0 = arith.constant 0 : i32
    %c0_i32_1 = arith.constant 0 : i32
    return %c0_i32, %c0_i32_0 : i32, i32
  }
  func.func @transform_4(%arg0: i32) -> (i32, i32) {
    %c0_i32 = arith.constant 0 : i32
    %c0_i32_0 = arith.constant 0 : i32
    %c0_i32_1 = arith.constant 0 : i32
    return %c0_i32, %c0_i32_0 : i32, i32
  }
  func.func @transform_5(%arg0: i32) -> (i32, i32) {
    %c0_i32 = arith.constant 0 : i32
    %c0_i32_0 = arith.constant 0 : i32
    %c0_i32_1 = arith.constant 0 : i32
    return %c0_i32, %c0_i32_0 : i32, i32
  }
  func.func @transform_6(%arg0: i32) -> (i32, i32) {
    %c0_i32 = arith.constant 0 : i32
    %c0_i32_0 = arith.constant 0 : i32
    %c0_i32_1 = arith.constant 0 : i32
    return %c0_i32, %c0_i32_0 : i32, i32
  }
  func.func @transform_7(%arg0: i32) -> (i32, i32) {
    %c0_i32 = arith.constant 0 : i32
    %c0_i32_0 = arith.constant 0 : i32
    %c0_i32_1 = arith.constant 0 : i32
    return %c0_i32, %c0_i32_0 : i32, i32
  }
}

</mosaic_0001>

<llo_original>
// kernel: conv_lstm_cell.1
$region0: #{conv_lstm_cell.1}
  #allocation0 [shape = 'u32[]', space=smem, size = 0x4, offset = 0x4, fixed_abs, tag = 'smem constant byte address 0x4 - core index']
  #allocation1 [shape = 'u32[144,128]{1,0:T(1,128)}', space=vmem, size = 0x12000, scoped, tag = 'internal scratch']
  %s0 = inlined_call_operand.vmem [shape: f32[2,18,18,4], index: 0, kind: input, shape index: {}]
  %s1 = inlined_call_operand.vmem [shape: f32[2,18,18,8], index: 1, kind: input, shape index: {}]
  %s2 = inlined_call_operand.vmem [shape: f32[108,128], index: 2, kind: input, shape index: {}]
  %s3 = inlined_call_operand.vmem [shape: f32[32,1], index: 3, kind: input, shape index: {}]
  %s4 = inlined_call_operand.vmem [shape: f32[32,1], index: 4, kind: input, shape index: {}]
  %s5 = inlined_call_operand.vmem [shape: f32[8,512], index: 5, kind: input, shape index: {}]
  %s6 = inlined_call_operand.vmem [shape: f32[8,512], index: 6, kind: output, shape index: {0}]
  %s7 = inlined_call_operand.vmem [shape: f32[8,512], index: 7, kind: output, shape index: {1}]
  %8 = xla_tuple %s6, %s7
  %s9 = sld [smem:[#allocation0]]
  $region42: #{conv_lstm_cell.1} parent=0
    _
  %s11 = ssub.s32 1, %s9
  %s12 = scalar_select 0, %s11, %s9
  // Predicated region
  $region2: #{conv_lstm_cell.1} parent=0 // pred_check
    _
  $region3: #{conv_lstm_cell.1} parent=0 // pred_check_branch
    %14 = sbr.rel (0) target = $region5
  $region4: #{conv_lstm_cell.1} parent=0 // pred_region
    _
  $region5: #{conv_lstm_cell.1} parent=0 // pred_fallthru
    _
  // Predicated region
  $region6: #{conv_lstm_cell.1} parent=0 // pred_check
    _
  $region7: #{conv_lstm_cell.1} parent=0 // pred_check_branch
    %16 = sbr.rel (0) target = $region9
  $region8: #{conv_lstm_cell.1} parent=0 // pred_region
    _
  $region9: #{conv_lstm_cell.1} parent=0 // pred_fallthru
    _
  // Predicated region
  $region10: #{conv_lstm_cell.1} parent=0 // pred_check
    _
  $region11: #{conv_lstm_cell.1} parent=0 // pred_check_branch
    %18 = sbr.rel (0) target = $region13
  $region12: #{conv_lstm_cell.1} parent=0 // pred_region
    _
  $region13: #{conv_lstm_cell.1} parent=0 // pred_fallthru
    _
  // Predicated region
  $region14: #{conv_lstm_cell.1} parent=0 // pred_check
    _
  $region15: #{conv_lstm_cell.1} parent=0 // pred_check_branch
    %20 = sbr.rel (0) target = $region17
  $region16: #{conv_lstm_cell.1} parent=0 // pred_region
    _
  $region17: #{conv_lstm_cell.1} parent=0 // pred_fallthru
    _
  // Predicated region
  $region18: #{conv_lstm_cell.1} parent=0 // pred_check
    _
  $region19: #{conv_lstm_cell.1} parent=0 // pred_check_branch
    %22 = sbr.rel (0) target = $region21
  $region20: #{conv_lstm_cell.1} parent=0 // pred_region
    _
  $region21: #{conv_lstm_cell.1} parent=0 // pred_fallthru
    _
  // Predicated region
  $region22: #{conv_lstm_cell.1} parent=0 // pred_check
    _
  $region23: #{conv_lstm_cell.1} parent=0 // pred_check_branch
    %24 = sbr.rel (0) target = $region25
  $region24: #{conv_lstm_cell.1} parent=0 // pred_region
    _
  $region25: #{conv_lstm_cell.1} parent=0 // pred_fallthru
    _
  %v25 = vld [vmem:[%s0] sm:$0xff]
  %v26 = vld [vmem:[%s0 + $0x8] sm:$0xff]
  %v27 = vld [vmem:[%s0 + $0x10] sm:$0x3]
  %v28 = vld [vmem:[%s0 + $0x18] sm:$0xff]
  %v29 = vld [vmem:[%s0 + $0x20] sm:$0xff]
  %v30 = vld [vmem:[%s0 + $0x28] sm:$0x3]
  %v31 = vld [vmem:[%s0 + $0x30] sm:$0xff]
  %v32 = vld [vmem:[%s0 + $0x38] sm:$0xff]
  %v33 = vld [vmem:[%s0 + $0x40] sm:$0x3]
  %v34 = vld [vmem:[%s0 + $0x48] sm:$0xff]
  %v35 = vld [vmem:[%s0 + $0x50] sm:$0xff]
  %v36 = vld [vmem:[%s0 + $0x58] sm:$0x3]
  %v37 = vld [vmem:[%s0 + $0x60] sm:$0xff]
  %v38 = vld [vmem:[%s0 + $0x68] sm:$0xff]
  %v39 = vld [vmem:[%s0 + $0x70] sm:$0x3]
  %v40 = vld [vmem:[%s0 + $0x78] sm:$0xff]
  %v41 = vld [vmem:[%s0 + $0x80] sm:$0xff]
  %v42 = vld [vmem:[%s0 + $0x88] sm:$0x3]
  %v43 = vld [vmem:[%s0 + $0x90] sm:$0xff]
  %v44 = vld [vmem:[%s0 + $0x98] sm:$0xff]
  %v45 = vld [vmem:[%s0 + $0xa0] sm:$0x3]
  %v46 = vld [vmem:[%s0 + $0xa8] sm:$0xff]
  %v47 = vld [vmem:[%s0 + $0xb0] sm:$0xff]
  %v48 = vld [vmem:[%s0 + $0xb8] sm:$0x3]
  %v49 = vld [vmem:[%s0 + $0xc0] sm:$0xff]
  %v50 = vld [vmem:[%s0 + $0xc8] sm:$0xff]
  %v51 = vld [vmem:[%s0 + $0xd0] sm:$0x3]
  %v52 = vld [vmem:[%s0 + $0xd8] sm:$0xff]
  %v53 = vld [vmem:[%s0 + $0xe0] sm:$0xff]
  %v54 = vld [vmem:[%s0 + $0xe8] sm:$0x3]
  %v55 = vld [vmem:[%s0 + $0xf0] sm:$0xff]
  %v56 = vld [vmem:[%s0 + $0xf8] sm:$0xff]
  %v57 = vld [vmem:[%s0 + $0x100] sm:$0x3]
  %v58 = vld [vmem:[%s0 + $0x108] sm:$0xff]
  %v59 = vld [vmem:[%s0 + $0x110] sm:$0xff]
  %v60 = vld [vmem:[%s0 + $0x118] sm:$0x3]
  %v61 = vld [vmem:[%s0 + $0x120] sm:$0xff]
  %v62 = vld [vmem:[%s0 + $0x128] sm:$0xff]
  %v63 = vld [vmem:[%s0 + $0x130] sm:$0x3]
  %v64 = vld [vmem:[%s0 + $0x138] sm:$0xff]
  %v65 = vld [vmem:[%s0 + $0x140] sm:$0xff]
  %v66 = vld [vmem:[%s0 + $0x148] sm:$0x3]
  %v67 = vld [vmem:[%s0 + $0x150] sm:$0xff]
  %v68 = vld [vmem:[%s0 + $0x158] sm:$0xff]
  %v69 = vld [vmem:[%s0 + $0x160] sm:$0x3]
  %v70 = vld [vmem:[%s0 + $0x168] sm:$0xff]
  %v71 = vld [vmem:[%s0 + $0x170] sm:$0xff]
  %v72 = vld [vmem:[%s0 + $0x178] sm:$0x3]
  %v73 = vld [vmem:[%s0 + $0x180] sm:$0xff]
  %v74 = vld [vmem:[%s0 + $0x188] sm:$0xff]
  %v75 = vld [vmem:[%s0 + $0x190] sm:$0x3]
  %v76 = vld [vmem:[%s0 + $0x198] sm:$0xff]
  %v77 = vld [vmem:[%s0 + $0x1a0] sm:$0xff]
  %v78 = vld [vmem:[%s0 + $0x1a8] sm:$0x3]
  %v79 = vld [vmem:[%s0 + $0x1b0] sm:$0xff]
  %v80 = vld [vmem:[%s0 + $0x1b8] sm:$0xff]
  %v81 = vld [vmem:[%s0 + $0x1c0] sm:$0x3]
  %v82 = vld [vmem:[%s0 + $0x1c8] sm:$0xff]
  %v83 = vld [vmem:[%s0 + $0x1d0] sm:$0xff]
  %v84 = vld [vmem:[%s0 + $0x1d8] sm:$0x3]
  %v85 = vld [vmem:[%s0 + $0x1e0] sm:$0xff]
  %v86 = vld [vmem:[%s0 + $0x1e8] sm:$0xff]
  %v87 = vld [vmem:[%s0 + $0x1f0] sm:$0x3]
  %v88 = vld [vmem:[%s0 + $0x1f8] sm:$0xff]
  %v89 = vld [vmem:[%s0 + $0x200] sm:$0xff]
  %v90 = vld [vmem:[%s0 + $0x208] sm:$0x3]
  %v91 = vld [vmem:[%s0 + $0x210] sm:$0xff]
  %v92 = vld [vmem:[%s0 + $0x218] sm:$0xff]
  %v93 = vld [vmem:[%s0 + $0x220] sm:$0x3]
  %v94 = vld [vmem:[%s0 + $0x228] sm:$0xff]
  %v95 = vld [vmem:[%s0 + $0x230] sm:$0xff]
  %v96 = vld [vmem:[%s0 + $0x238] sm:$0x3]
  %v97 = vld [vmem:[%s0 + $0x240] sm:$0xff]
  %v98 = vld [vmem:[%s0 + $0x248] sm:$0xff]
  %v99 = vld [vmem:[%s0 + $0x250] sm:$0x3]
  %v100 = vld [vmem:[%s0 + $0x258] sm:$0xff]
  %v101 = vld [vmem:[%s0 + $0x260] sm:$0xff]
  %v102 = vld [vmem:[%s0 + $0x268] sm:$0x3]
  %v103 = vld [vmem:[%s0 + $0x270] sm:$0xff]
  %v104 = vld [vmem:[%s0 + $0x278] sm:$0xff]
  %v105 = vld [vmem:[%s0 + $0x280] sm:$0x3]
  %v106 = vld [vmem:[%s0 + $0x288] sm:$0xff]
  %v107 = vld [vmem:[%s0 + $0x290] sm:$0xff]
  %v108 = vld [vmem:[%s0 + $0x298] sm:$0x3]
  %v109 = vld [vmem:[%s0 + $0x2a0] sm:$0xff]
  %v110 = vld [vmem:[%s0 + $0x2a8] sm:$0xff]
  %v111 = vld [vmem:[%s0 + $0x2b0] sm:$0x3]
  %v112 = vld [vmem:[%s0 + $0x2b8] sm:$0xff]
  %v113 = vld [vmem:[%s0 + $0x2c0] sm:$0xff]
  %v114 = vld [vmem:[%s0 + $0x2c8] sm:$0x3]
  %v115 = vld [vmem:[%s0 + $0x2d0] sm:$0xff]
  %v116 = vld [vmem:[%s0 + $0x2d8] sm:$0xff]
  %v117 = vld [vmem:[%s0 + $0x2e0] sm:$0x3]
  %v118 = vld [vmem:[%s0 + $0x2e8] sm:$0xff]
  %v119 = vld [vmem:[%s0 + $0x2f0] sm:$0xff]
  %v120 = vld [vmem:[%s0 + $0x2f8] sm:$0x3]
  %v121 = vld [vmem:[%s0 + $0x300] sm:$0xff]
  %v122 = vld [vmem:[%s0 + $0x308] sm:$0xff]
  %v123 = vld [vmem:[%s0 + $0x310] sm:$0x3]
  %v124 = vld [vmem:[%s0 + $0x318] sm:$0xff]
  %v125 = vld [vmem:[%s0 + $0x320] sm:$0xff]
  %v126 = vld [vmem:[%s0 + $0x328] sm:$0x3]
  %v127 = vld [vmem:[%s0 + $0x330] sm:$0xff]
  %v128 = vld [vmem:[%s0 + $0x338] sm:$0xff]
  %v129 = vld [vmem:[%s0 + $0x340] sm:$0x3]
  %v130 = vld [vmem:[%s0 + $0x348] sm:$0xff]
  %v131 = vld [vmem:[%s0 + $0x350] sm:$0xff]
  %v132 = vld [vmem:[%s0 + $0x358] sm:$0x3]
  %v133 = vld [vmem:[%s1] sm:$0xff]
  %v134 = vld [vmem:[%s1 + $0x8] sm:$0xff]
  %v135 = vld [vmem:[%s1 + $0x10] sm:$0x3]
  %v136 = vld [vmem:[%s1 + $0x18] sm:$0xff]
  %v137 = vld [vmem:[%s1 + $0x20] sm:$0xff]
  %v138 = vld [vmem:[%s1 + $0x28] sm:$0x3]
  %v139 = vld [vmem:[%s1 + $0x30] sm:$0xff]
  %v140 = vld [vmem:[%s1 + $0x38] sm:$0xff]
  %v141 = vld [vmem:[%s1 + $0x40] sm:$0x3]
  %v142 = vld [vmem:[%s1 + $0x48] sm:$0xff]
  %v143 = vld [vmem:[%s1 + $0x50] sm:$0xff]
  %v144 = vld [vmem:[%s1 + $0x58] sm:$0x3]
  %v145 = vld [vmem:[%s1 + $0x60] sm:$0xff]
  %v146 = vld [vmem:[%s1 + $0x68] sm:$0xff]
  %v147 = vld [vmem:[%s1 + $0x70] sm:$0x3]
  %v148 = vld [vmem:[%s1 + $0x78] sm:$0xff]
  %v149 = vld [vmem:[%s1 + $0x80] sm:$0xff]
  %v150 = vld [vmem:[%s1 + $0x88] sm:$0x3]
  %v151 = vld [vmem:[%s1 + $0x90] sm:$0xff]
  %v152 = vld [vmem:[%s1 + $0x98] sm:$0xff]
  %v153 = vld [vmem:[%s1 + $0xa0] sm:$0x3]
  %v154 = vld [vmem:[%s1 + $0xa8] sm:$0xff]
  %v155 = vld [vmem:[%s1 + $0xb0] sm:$0xff]
  %v156 = vld [vmem:[%s1 + $0xb8] sm:$0x3]
  %v157 = vld [vmem:[%s1 + $0xc0] sm:$0xff]
  %v158 = vld [vmem:[%s1 + $0xc8] sm:$0xff]
  %v159 = vld [vmem:[%s1 + $0xd0] sm:$0x3]
  %v160 = vld [vmem:[%s1 + $0xd8] sm:$0xff]
  %v161 = vld [vmem:[%s1 + $0xe0] sm:$0xff]
  %v162 = vld [vmem:[%s1 + $0xe8] sm:$0x3]
  %v163 = vld [vmem:[%s1 + $0xf0] sm:$0xff]
  %v164 = vld [vmem:[%s1 + $0xf8] sm:$0xff]
  %v165 = vld [vmem:[%s1 + $0x100] sm:$0x3]
  %v166 = vld [vmem:[%s1 + $0x108] sm:$0xff]
  %v167 = vld [vmem:[%s1 + $0x110] sm:$0xff]
  %v168 = vld [vmem:[%s1 + $0x118] sm:$0x3]
  %v169 = vld [vmem:[%s1 + $0x120] sm:$0xff]
  %v170 = vld [vmem:[%s1 + $0x128] sm:$0xff]
  %v171 = vld [vmem:[%s1 + $0x130] sm:$0x3]
  %v172 = vld [vmem:[%s1 + $0x138] sm:$0xff]
  %v173 = vld [vmem:[%s1 + $0x140] sm:$0xff]
  %v174 = vld [vmem:[%s1 + $0x148] sm:$0x3]
  %v175 = vld [vmem:[%s1 + $0x150] sm:$0xff]
  %v176 = vld [vmem:[%s1 + $0x158] sm:$0xff]
  %v177 = vld [vmem:[%s1 + $0x160] sm:$0x3]
  %v178 = vld [vmem:[%s1 + $0x168] sm:$0xff]
  %v179 = vld [vmem:[%s1 + $0x170] sm:$0xff]
  %v180 = vld [vmem:[%s1 + $0x178] sm:$0x3]
  %v181 = vld [vmem:[%s1 + $0x180] sm:$0xff]
  %v182 = vld [vmem:[%s1 + $0x188] sm:$0xff]
  %v183 = vld [vmem:[%s1 + $0x190] sm:$0x3]
  %v184 = vld [vmem:[%s1 + $0x198] sm:$0xff]
  %v185 = vld [vmem:[%s1 + $0x1a0] sm:$0xff]
  %v186 = vld [vmem:[%s1 + $0x1a8] sm:$0x3]
  %v187 = vld [vmem:[%s1 + $0x1b0] sm:$0xff]
  %v188 = vld [vmem:[%s1 + $0x1b8] sm:$0xff]
  %v189 = vld [vmem:[%s1 + $0x1c0] sm:$0x3]
  %v190 = vld [vmem:[%s1 + $0x1c8] sm:$0xff]
  %v191 = vld [vmem:[%s1 + $0x1d0] sm:$0xff]
  %v192 = vld [vmem:[%s1 + $0x1d8] sm:$0x3]
  %v193 = vld [vmem:[%s1 + $0x1e0] sm:$0xff]
  %v194 = vld [vmem:[%s1 + $0x1e8] sm:$0xff]
  %v195 = vld [vmem:[%s1 + $0x1f0] sm:$0x3]
  %v196 = vld [vmem:[%s1 + $0x1f8] sm:$0xff]
  %v197 = vld [vmem:[%s1 + $0x200] sm:$0xff]
  %v198 = vld [vmem:[%s1 + $0x208] sm:$0x3]
  %v199 = vld [vmem:[%s1 + $0x210] sm:$0xff]
  %v200 = vld [vmem:[%s1 + $0x218] sm:$0xff]
  %v201 = vld [vmem:[%s1 + $0x220] sm:$0x3]
  %v202 = vld [vmem:[%s1 + $0x228] sm:$0xff]
  %v203 = vld [vmem:[%s1 + $0x230] sm:$0xff]
  %v204 = vld [vmem:[%s1 + $0x238] sm:$0x3]
  %v205 = vld [vmem:[%s1 + $0x240] sm:$0xff]
  %v206 = vld [vmem:[%s1 + $0x248] sm:$0xff]
  %v207 = vld [vmem:[%s1 + $0x250] sm:$0x3]
  %v208 = vld [vmem:[%s1 + $0x258] sm:$0xff]
  %v209 = vld [vmem:[%s1 + $0x260] sm:$0xff]
  %v210 = vld [vmem:[%s1 + $0x268] sm:$0x3]
  %v211 = vld [vmem:[%s1 + $0x270] sm:$0xff]
  %v212 = vld [vmem:[%s1 + $0x278] sm:$0xff]
  %v213 = vld [vmem:[%s1 + $0x280] sm:$0x3]
  %v214 = vld [vmem:[%s1 + $0x288] sm:$0xff]
  %v215 = vld [vmem:[%s1 + $0x290] sm:$0xff]
  %v216 = vld [vmem:[%s1 + $0x298] sm:$0x3]
  %v217 = vld [vmem:[%s1 + $0x2a0] sm:$0xff]
  %v218 = vld [vmem:[%s1 + $0x2a8] sm:$0xff]
  %v219 = vld [vmem:[%s1 + $0x2b0] sm:$0x3]
  %v220 = vld [vmem:[%s1 + $0x2b8] sm:$0xff]
  %v221 = vld [vmem:[%s1 + $0x2c0] sm:$0xff]
  %v222 = vld [vmem:[%s1 + $0x2c8] sm:$0x3]
  %v223 = vld [vmem:[%s1 + $0x2d0] sm:$0xff]
  %v224 = vld [vmem:[%s1 + $0x2d8] sm:$0xff]
  %v225 = vld [vmem:[%s1 + $0x2e0] sm:$0x3]
  %v226 = vld [vmem:[%s1 + $0x2e8] sm:$0xff]
  %v227 = vld [vmem:[%s1 + $0x2f0] sm:$0xff]
  %v228 = vld [vmem:[%s1 + $0x2f8] sm:$0x3]
  %v229 = vld [vmem:[%s1 + $0x300] sm:$0xff]
  %v230 = vld [vmem:[%s1 + $0x308] sm:$0xff]
  %v231 = vld [vmem:[%s1 + $0x310] sm:$0x3]
  %v232 = vld [vmem:[%s1 + $0x318] sm:$0xff]
  %v233 = vld [vmem:[%s1 + $0x320] sm:$0xff]
  %v234 = vld [vmem:[%s1 + $0x328] sm:$0x3]
  %v235 = vld [vmem:[%s1 + $0x330] sm:$0xff]
  %v236 = vld [vmem:[%s1 + $0x338] sm:$0xff]
  %v237 = vld [vmem:[%s1 + $0x340] sm:$0x3]
  %v238 = vld [vmem:[%s1 + $0x348] sm:$0xff]
  %v239 = vld [vmem:[%s1 + $0x350] sm:$0xff]
  %v240 = vld [vmem:[%s1 + $0x358] sm:$0x3]
  %vm337 = vcmask 1046528
  %v338 = vrot.slane %v25, 1
  %v339 = vrot.slane %v26, 1
  %v340 = vsel %vm337, %v338, %v339
  %v341 = vrot.slane %v27, 1
  %v342 = vsel %vm337, %v339, %v341
  %v343 = vrot.slane %v28, 1
  %v344 = vrot.slane %v29, 1
  %v345 = vsel %vm337, %v343, %v344
  %v346 = vrot.slane %v30, 1
  %v347 = vsel %vm337, %v344, %v346
  %v348 = vrot.slane %v31, 1
  %v349 = vrot.slane %v32, 1
  %v350 = vsel %vm337, %v348, %v349
  %v351 = vrot.slane %v33, 1
  %v352 = vsel %vm337, %v349, %v351
  %v353 = vrot.slane %v34, 1
  %v354 = vrot.slane %v35, 1
  %v355 = vsel %vm337, %v353, %v354
  %v356 = vrot.slane %v36, 1
  %v357 = vsel %vm337, %v354, %v356
  %v358 = vrot.slane %v37, 1
  %v359 = vrot.slane %v38, 1
  %v360 = vsel %vm337, %v358, %v359
  %v361 = vrot.slane %v39, 1
  %v362 = vsel %vm337, %v359, %v361
  %v363 = vrot.slane %v40, 1
  %v364 = vrot.slane %v41, 1
  %v365 = vsel %vm337, %v363, %v364
  %v366 = vrot.slane %v42, 1
  %v367 = vsel %vm337, %v364, %v366
  %v368 = vrot.slane %v43, 1
  %v369 = vrot.slane %v44, 1
  %v370 = vsel %vm337, %v368, %v369
  %v371 = vrot.slane %v45, 1
  %v372 = vsel %vm337, %v369, %v371
  %v373 = vrot.slane %v46, 1
  %v374 = vrot.slane %v47, 1
  %v375 = vsel %vm337, %v373, %v374
  %v376 = vrot.slane %v48, 1
  %v377 = vsel %vm337, %v374, %v376
  %v378 = vrot.slane %v49, 1
  %v379 = vrot.slane %v50, 1
  %v380 = vsel %vm337, %v378, %v379
  %v381 = vrot.slane %v51, 1
  %v382 = vsel %vm337, %v379, %v381
  %v383 = vrot.slane %v52, 1
  %v384 = vrot.slane %v53, 1
  %v385 = vsel %vm337, %v383, %v384
  %v386 = vrot.slane %v54, 1
  %v387 = vsel %vm337, %v384, %v386
  %v388 = vrot.slane %v55, 1
  %v389 = vrot.slane %v56, 1
  %v390 = vsel %vm337, %v388, %v389
  %v391 = vrot.slane %v57, 1
  %v392 = vsel %vm337, %v389, %v391
  %v393 = vrot.slane %v58, 1
  %v394 = vrot.slane %v59, 1
  %v395 = vsel %vm337, %v393, %v394
  %v396 = vrot.slane %v60, 1
  %v397 = vsel %vm337, %v394, %v396
  %v398 = vrot.slane %v61, 1
  %v399 = vrot.slane %v62, 1
  %v400 = vsel %vm337, %v398, %v399
  %v401 = vrot.slane %v63, 1
  %v402 = vsel %vm337, %v399, %v401
  %v403 = vrot.slane %v64, 1
  %v404 = vrot.slane %v65, 1
  %v405 = vsel %vm337, %v403, %v404
  %v406 = vrot.slane %v66, 1
  %v407 = vsel %vm337, %v404, %v406
  %v408 = vrot.slane %v67, 1
  %v409 = vrot.slane %v68, 1
  %v410 = vsel %vm337, %v408, %v409
  %v411 = vrot.slane %v69, 1
  %v412 = vsel %vm337, %v409, %v411
  %v413 = vrot.slane %v70, 1
  %v414 = vrot.slane %v71, 1
  %v415 = vsel %vm337, %v413, %v414
  %v416 = vrot.slane %v72, 1
  %v417 = vsel %vm337, %v414, %v416
  %v418 = vrot.slane %v79, 1
  %v419 = vrot.slane %v80, 1
  %v420 = vsel %vm337, %v418, %v419
  %v421 = vrot.slane %v81, 1
  %v422 = vsel %vm337, %v419, %v421
  %v423 = vrot.slane %v82, 1
  %v424 = vrot.slane %v83, 1
  %v425 = vsel %vm337, %v423, %v424
  %v426 = vrot.slane %v84, 1
  %v427 = vsel %vm337, %v424, %v426
  %v428 = vrot.slane %v85, 1
  %v429 = vrot.slane %v86, 1
  %v430 = vsel %vm337, %v428, %v429
  %v431 = vrot.slane %v87, 1
  %v432 = vsel %vm337, %v429, %v431
  %v433 = vrot.slane %v88, 1
  %v434 = vrot.slane %v89, 1
  %v435 = vsel %vm337, %v433, %v434
  %v436 = vrot.slane %v90, 1
  %v437 = vsel %vm337, %v434, %v436
  %v438 = vrot.slane %v91, 1
  %v439 = vrot.slane %v92, 1
  %v440 = vsel %vm337, %v438, %v439
  %v441 = vrot.slane %v93, 1
  %v442 = vsel %vm337, %v439, %v441
  %v443 = vrot.slane %v94, 1
  %v444 = vrot.slane %v95, 1
  %v445 = vsel %vm337, %v443, %v444
  %v446 = vrot.slane %v96, 1
  %v447 = vsel %vm337, %v444, %v446
  %v448 = vrot.slane %v97, 1
  %v449 = vrot.slane %v98, 1
  %v450 = vsel %vm337, %v448, %v449
  %v451 = vrot.slane %v99, 1
  %v452 = vsel %vm337, %v449, %v451
  %v453 = vrot.slane %v100, 1
  %v454 = vrot.slane %v101, 1
  %v455 = vsel %vm337, %v453, %v454
  %v456 = vrot.slane %v102, 1
  %v457 = vsel %vm337, %v454, %v456
  %v458 = vrot.slane %v103, 1
  %v459 = vrot.slane %v104, 1
  %v460 = vsel %vm337, %v458, %v459
  %v461 = vrot.slane %v105, 1
  %v462 = vsel %vm337, %v459, %v461
  %v463 = vrot.slane %v106, 1
  %v464 = vrot.slane %v107, 1
  %v465 = vsel %vm337, %v463, %v464
  %v466 = vrot.slane %v108, 1
  %v467 = vsel %vm337, %v464, %v466
  %v468 = vrot.slane %v109, 1
  %v469 = vrot.slane %v110, 1
  %v470 = vsel %vm337, %v468, %v469
  %v471 = vrot.slane %v111, 1
  %v472 = vsel %vm337, %v469, %v471
  %v473 = vrot.slane %v112, 1
  %v474 = vrot.slane %v113, 1
  %v475 = vsel %vm337, %v473, %v474
  %v476 = vrot.slane %v114, 1
  %v477 = vsel %vm337, %v474, %v476
  %v478 = vrot.slane %v115, 1
  %v479 = vrot.slane %v116, 1
  %v480 = vsel %vm337, %v478, %v479
  %v481 = vrot.slane %v117, 1
  %v482 = vsel %vm337, %v479, %v481
  %v483 = vrot.slane %v118, 1
  %v484 = vrot.slane %v119, 1
  %v485 = vsel %vm337, %v483, %v484
  %v486 = vrot.slane %v120, 1
  %v487 = vsel %vm337, %v484, %v486
  %v488 = vrot.slane %v121, 1
  %v489 = vrot.slane %v122, 1
  %v490 = vsel %vm337, %v488, %v489
  %v491 = vrot.slane %v123, 1
  %v492 = vsel %vm337, %v489, %v491
  %v493 = vrot.slane %v124, 1
  %v494 = vrot.slane %v125, 1
  %v495 = vsel %vm337, %v493, %v494
  %v496 = vrot.slane %v126, 1
  %v497 = vsel %vm337, %v494, %v496
  %v594 = vrot.slane %v133, 1
  %v595 = vrot.slane %v134, 1
  %v596 = vsel %vm337, %v594, %v595
  %v597 = vrot.slane %v135, 1
  %v598 = vsel %vm337, %v595, %v597
  %v599 = vrot.slane %v136, 1
  %v600 = vrot.slane %v137, 1
  %v601 = vsel %vm337, %v599, %v600
  %v602 = vrot.slane %v138, 1
  %v603 = vsel %vm337, %v600, %v602
  %v604 = vrot.slane %v139, 1
  %v605 = vrot.slane %v140, 1
  %v606 = vsel %vm337, %v604, %v605
  %v607 = vrot.slane %v141, 1
  %v608 = vsel %vm337, %v605, %v607
  %v609 = vrot.slane %v142, 1
  %v610 = vrot.slane %v143, 1
  %v611 = vsel %vm337, %v609, %v610
  %v612 = vrot.slane %v144, 1
  %v613 = vsel %vm337, %v610, %v612
  %v614 = vrot.slane %v145, 1
  %v615 = vrot.slane %v146, 1
  %v616 = vsel %vm337, %v614, %v615
  %v617 = vrot.slane %v147, 1
  %v618 = vsel %vm337, %v615, %v617
  %v619 = vrot.slane %v148, 1
  %v620 = vrot.slane %v149, 1
  %v621 = vsel %vm337, %v619, %v620
  %v622 = vrot.slane %v150, 1
  %v623 = vsel %vm337, %v620, %v622
  %v624 = vrot.slane %v151, 1
  %v625 = vrot.slane %v152, 1
  %v626 = vsel %vm337, %v624, %v625
  %v627 = vrot.slane %v153, 1
  %v628 = vsel %vm337, %v625, %v627
  %v629 = vrot.slane %v154, 1
  %v630 = vrot.slane %v155, 1
  %v631 = vsel %vm337, %v629, %v630
  %v632 = vrot.slane %v156, 1
  %v633 = vsel %vm337, %v630, %v632
  %v634 = vrot.slane %v157, 1
  %v635 = vrot.slane %v158, 1
  %v636 = vsel %vm337, %v634, %v635
  %v637 = vrot.slane %v159, 1
  %v638 = vsel %vm337, %v635, %v637
  %v639 = vrot.slane %v160, 1
  %v640 = vrot.slane %v161, 1
  %v641 = vsel %vm337, %v639, %v640
  %v642 = vrot.slane %v162, 1
  %v643 = vsel %vm337, %v640, %v642
  %v644 = vrot.slane %v163, 1
  %v645 = vrot.slane %v164, 1
  %v646 = vsel %vm337, %v644, %v645
  %v647 = vrot.slane %v165, 1
  %v648 = vsel %vm337, %v645, %v647
  %v649 = vrot.slane %v166, 1
  %v650 = vrot.slane %v167, 1
  %v651 = vsel %vm337, %v649, %v650
  %v652 = vrot.slane %v168, 1
  %v653 = vsel %vm337, %v650, %v652
  %v654 = vrot.slane %v169, 1
  %v655 = vrot.slane %v170, 1
  %v656 = vsel %vm337, %v654, %v655
  %v657 = vrot.slane %v171, 1
  %v658 = vsel %vm337, %v655, %v657
  %v659 = vrot.slane %v172, 1
  %v660 = vrot.slane %v173, 1
  %v661 = vsel %vm337, %v659, %v660
  %v662 = vrot.slane %v174, 1
  %v663 = vsel %vm337, %v660, %v662
  %v664 = vrot.slane %v175, 1
  %v665 = vrot.slane %v176, 1
  %v666 = vsel %vm337, %v664, %v665
  %v667 = vrot.slane %v177, 1
  %v668 = vsel %vm337, %v665, %v667
  %v669 = vrot.slane %v178, 1
  %v670 = vrot.slane %v179, 1
  %v671 = vsel %vm337, %v669, %v670
  %v672 = vrot.slane %v180, 1
  %v673 = vsel %vm337, %v670, %v672
  %v674 = vrot.slane %v187, 1
  %v675 = vrot.slane %v188, 1
  %v676 = vsel %vm337, %v674, %v675
  %v677 = vrot.slane %v189, 1
  %v678 = vsel %vm337, %v675, %v677
  %v679 = vrot.slane %v190, 1
  %v680 = vrot.slane %v191, 1
  %v681 = vsel %vm337, %v679, %v680
  %v682 = vrot.slane %v192, 1
  %v683 = vsel %vm337, %v680, %v682
  %v684 = vrot.slane %v193, 1
  %v685 = vrot.slane %v194, 1
  %v686 = vsel %vm337, %v684, %v685
  %v687 = vrot.slane %v195, 1
  %v688 = vsel %vm337, %v685, %v687
  %v689 = vrot.slane %v196, 1
  %v690 = vrot.slane %v197, 1
  %v691 = vsel %vm337, %v689, %v690
  %v692 = vrot.slane %v198, 1
  %v693 = vsel %vm337, %v690, %v692
  %v694 = vrot.slane %v199, 1
  %v695 = vrot.slane %v200, 1
  %v696 = vsel %vm337, %v694, %v695
  %v697 = vrot.slane %v201, 1
  %v698 = vsel %vm337, %v695, %v697
  %v699 = vrot.slane %v202, 1
  %v700 = vrot.slane %v203, 1
  %v701 = vsel %vm337, %v699, %v700
  %v702 = vrot.slane %v204, 1
  %v703 = vsel %vm337, %v700, %v702
  %v704 = vrot.slane %v205, 1
  %v705 = vrot.slane %v206, 1
  %v706 = vsel %vm337, %v704, %v705
  %v707 = vrot.slane %v207, 1
  %v708 = vsel %vm337, %v705, %v707
  %v709 = vrot.slane %v208, 1
  %v710 = vrot.slane %v209, 1
  %v711 = vsel %vm337, %v709, %v710
  %v712 = vrot.slane %v210, 1
  %v713 = vsel %vm337, %v710, %v712
  %v714 = vrot.slane %v211, 1
  %v715 = vrot.slane %v212, 1
  %v716 = vsel %vm337, %v714, %v715
  %v717 = vrot.slane %v213, 1
  %v718 = vsel %vm337, %v715, %v717
  %v719 = vrot.slane %v214, 1
  %v720 = vrot.slane %v215, 1
  %v721 = vsel %vm337, %v719, %v720
  %v722 = vrot.slane %v216, 1
  %v723 = vsel %vm337, %v720, %v722
  %v724 = vrot.slane %v217, 1
  %v725 = vrot.slane %v218, 1
  %v726 = vsel %vm337, %v724, %v725
  %v727 = vrot.slane %v219, 1
  %v728 = vsel %vm337, %v725, %v727
  %v729 = vrot.slane %v220, 1
  %v730 = vrot.slane %v221, 1
  %v731 = vsel %vm337, %v729, %v730
  %v732 = vrot.slane %v222, 1
  %v733 = vsel %vm337, %v730, %v732
  %v734 = vrot.slane %v223, 1
  %v735 = vrot.slane %v224, 1
  %v736 = vsel %vm337, %v734, %v735
  %v737 = vrot.slane %v225, 1
  %v738 = vsel %vm337, %v735, %v737
  %v739 = vrot.slane %v226, 1
  %v740 = vrot.slane %v227, 1
  %v741 = vsel %vm337, %v739, %v740
  %v742 = vrot.slane %v228, 1
  %v743 = vsel %vm337, %v740, %v742
  %v744 = vrot.slane %v229, 1
  %v745 = vrot.slane %v230, 1
  %v746 = vsel %vm337, %v744, %v745
  %v747 = vrot.slane %v231, 1
  %v748 = vsel %vm337, %v745, %v747
  %v749 = vrot.slane %v232, 1
  %v750 = vrot.slane %v233, 1
  %v751 = vsel %vm337, %v749, %v750
  %v752 = vrot.slane %v234, 1
  %v753 = vsel %vm337, %v750, %v752
  %vm754 = vcmask 1045504
  %v755 = vrot.slane %v25, 2
  %v756 = vrot.slane %v26, 2
  %v757 = vsel %vm754, %v755, %v756
  %v758 = vrot.slane %v27, 2
  %v759 = vsel %vm754, %v756, %v758
  %v760 = vrot.slane %v28, 2
  %v761 = vrot.slane %v29, 2
  %v762 = vsel %vm754, %v760, %v761
  %v763 = vrot.slane %v30, 2
  %v764 = vsel %vm754, %v761, %v763
  %v765 = vrot.slane %v31, 2
  %v766 = vrot.slane %v32, 2
  %v767 = vsel %vm754, %v765, %v766
  %v768 = vrot.slane %v33, 2
  %v769 = vsel %vm754, %v766, %v768
  %v770 = vrot.slane %v34, 2
  %v771 = vrot.slane %v35, 2
  %v772 = vsel %vm754, %v770, %v771
  %v773 = vrot.slane %v36, 2
  %v774 = vsel %vm754, %v771, %v773
  %v775 = vrot.slane %v37, 2
  %v776 = vrot.slane %v38, 2
  %v777 = vsel %vm754, %v775, %v776
  %v778 = vrot.slane %v39, 2
  %v779 = vsel %vm754, %v776, %v778
  %v780 = vrot.slane %v40, 2
  %v781 = vrot.slane %v41, 2
  %v782 = vsel %vm754, %v780, %v781
  %v783 = vrot.slane %v42, 2
  %v784 = vsel %vm754, %v781, %v783
  %v785 = vrot.slane %v43, 2
  %v786 = vrot.slane %v44, 2
  %v787 = vsel %vm754, %v785, %v786
  %v788 = vrot.slane %v45, 2
  %v789 = vsel %vm754, %v786, %v788
  %v790 = vrot.slane %v46, 2
  %v791 = vrot.slane %v47, 2
  %v792 = vsel %vm754, %v790, %v791
  %v793 = vrot.slane %v48, 2
  %v794 = vsel %vm754, %v791, %v793
  %v795 = vrot.slane %v49, 2
  %v796 = vrot.slane %v50, 2
  %v797 = vsel %vm754, %v795, %v796
  %v798 = vrot.slane %v51, 2
  %v799 = vsel %vm754, %v796, %v798
  %v800 = vrot.slane %v52, 2
  %v801 = vrot.slane %v53, 2
  %v802 = vsel %vm754, %v800, %v801
  %v803 = vrot.slane %v54, 2
  %v804 = vsel %vm754, %v801, %v803
  %v805 = vrot.slane %v55, 2
  %v806 = vrot.slane %v56, 2
  %v807 = vsel %vm754, %v805, %v806
  %v808 = vrot.slane %v57, 2
  %v809 = vsel %vm754, %v806, %v808
  %v810 = vrot.slane %v58, 2
  %v811 = vrot.slane %v59, 2
  %v812 = vsel %vm754, %v810, %v811
  %v813 = vrot.slane %v60, 2
  %v814 = vsel %vm754, %v811, %v813
  %v815 = vrot.slane %v61, 2
  %v816 = vrot.slane %v62, 2
  %v817 = vsel %vm754, %v815, %v816
  %v818 = vrot.slane %v63, 2
  %v819 = vsel %vm754, %v816, %v818
  %v820 = vrot.slane %v64, 2
  %v821 = vrot.slane %v65, 2
  %v822 = vsel %vm754, %v820, %v821
  %v823 = vrot.slane %v66, 2
  %v824 = vsel %vm754, %v821, %v823
  %v825 = vrot.slane %v67, 2
  %v826 = vrot.slane %v68, 2
  %v827 = vsel %vm754, %v825, %v826
  %v828 = vrot.slane %v69, 2
  %v829 = vsel %vm754, %v826, %v828
  %v830 = vrot.slane %v70, 2
  %v831 = vrot.slane %v71, 2
  %v832 = vsel %vm754, %v830, %v831
  %v833 = vrot.slane %v72, 2
  %v834 = vsel %vm754, %v831, %v833
  %v835 = vrot.slane %v79, 2
  %v836 = vrot.slane %v80, 2
  %v837 = vsel %vm754, %v835, %v836
  %v838 = vrot.slane %v81, 2
  %v839 = vsel %vm754, %v836, %v838
  %v840 = vrot.slane %v82, 2
  %v841 = vrot.slane %v83, 2
  %v842 = vsel %vm754, %v840, %v841
  %v843 = vrot.slane %v84, 2
  %v844 = vsel %vm754, %v841, %v843
  %v845 = vrot.slane %v85, 2
  %v846 = vrot.slane %v86, 2
  %v847 = vsel %vm754, %v845, %v846
  %v848 = vrot.slane %v87, 2
  %v849 = vsel %vm754, %v846, %v848
  %v850 = vrot.slane %v88, 2
  %v851 = vrot.slane %v89, 2
  %v852 = vsel %vm754, %v850, %v851
  %v853 = vrot.slane %v90, 2
  %v854 = vsel %vm754, %v851, %v853
  %v855 = vrot.slane %v91, 2
  %v856 = vrot.slane %v92, 2
  %v857 = vsel %vm754, %v855, %v856
  %v858 = vrot.slane %v93, 2
  %v859 = vsel %vm754, %v856, %v858
  %v860 = vrot.slane %v94, 2
  %v861 = vrot.slane %v95, 2
  %v862 = vsel %vm754, %v860, %v861
  %v863 = vrot.slane %v96, 2
  %v864 = vsel %vm754, %v861, %v863
  %v865 = vrot.slane %v97, 2
  %v866 = vrot.slane %v98, 2
  %v867 = vsel %vm754, %v865, %v866
  %v868 = vrot.slane %v99, 2
  %v869 = vsel %vm754, %v866, %v868
  %v870 = vrot.slane %v100, 2
  %v871 = vrot.slane %v101, 2
  %v872 = vsel %vm754, %v870, %v871
  %v873 = vrot.slane %v102, 2
  %v874 = vsel %vm754, %v871, %v873
  %v875 = vrot.slane %v103, 2
  %v876 = vrot.slane %v104, 2
  %v877 = vsel %vm754, %v875, %v876
  %v878 = vrot.slane %v105, 2
  %v879 = vsel %vm754, %v876, %v878
  %v880 = vrot.slane %v106, 2
  %v881 = vrot.slane %v107, 2
  %v882 = vsel %vm754, %v880, %v881
  %v883 = vrot.slane %v108, 2
  %v884 = vsel %vm754, %v881, %v883
  %v885 = vrot.slane %v109, 2
  %v886 = vrot.slane %v110, 2
  %v887 = vsel %vm754, %v885, %v886
  %v888 = vrot.slane %v111, 2
  %v889 = vsel %vm754, %v886, %v888
  %v890 = vrot.slane %v112, 2
  %v891 = vrot.slane %v113, 2
  %v892 = vsel %vm754, %v890, %v891
  %v893 = vrot.slane %v114, 2
  %v894 = vsel %vm754, %v891, %v893
  %v895 = vrot.slane %v115, 2
  %v896 = vrot.slane %v116, 2
  %v897 = vsel %vm754, %v895, %v896
  %v898 = vrot.slane %v117, 2
  %v899 = vsel %vm754, %v896, %v898
  %v900 = vrot.slane %v118, 2
  %v901 = vrot.slane %v119, 2
  %v902 = vsel %vm754, %v900, %v901
  %v903 = vrot.slane %v120, 2
  %v904 = vsel %vm754, %v901, %v903
  %v905 = vrot.slane %v121, 2
  %v906 = vrot.slane %v122, 2
  %v907 = vsel %vm754, %v905, %v906
  %v908 = vrot.slane %v123, 2
  %v909 = vsel %vm754, %v906, %v908
  %v910 = vrot.slane %v124, 2
  %v911 = vrot.slane %v125, 2
  %v912 = vsel %vm754, %v910, %v911
  %v913 = vrot.slane %v126, 2
  %v914 = vsel %vm754, %v911, %v913
  %v915 = vrot.slane %v133, 2
  %v916 = vrot.slane %v134, 2
  %v917 = vsel %vm754, %v915, %v916
  %v918 = vrot.slane %v135, 2
  %v919 = vsel %vm754, %v916, %v918
  %v920 = vrot.slane %v136, 2
  %v921 = vrot.slane %v137, 2
  %v922 = vsel %vm754, %v920, %v921
  %v923 = vrot.slane %v138, 2
  %v924 = vsel %vm754, %v921, %v923
  %v925 = vrot.slane %v139, 2
  %v926 = vrot.slane %v140, 2
  %v927 = vsel %vm754, %v925, %v926
  %v928 = vrot.slane %v141, 2
  %v929 = vsel %vm754, %v926, %v928
  %v930 = vrot.slane %v142, 2
  %v931 = vrot.slane %v143, 2
  %v932 = vsel %vm754, %v930, %v931
  %v933 = vrot.slane %v144, 2
  %v934 = vsel %vm754, %v931, %v933
  %v935 = vrot.slane %v145, 2
  %v936 = vrot.slane %v146, 2
  %v937 = vsel %vm754, %v935, %v936
  %v938 = vrot.slane %v147, 2
  %v939 = vsel %vm754, %v936, %v938
  %v940 = vrot.slane %v148, 2
  %v941 = vrot.slane %v149, 2
  %v942 = vsel %vm754, %v940, %v941
  %v943 = vrot.slane %v150, 2
  %v944 = vsel %vm754, %v941, %v943
  %v945 = vrot.slane %v151, 2
  %v946 = vrot.slane %v152, 2
  %v947 = vsel %vm754, %v945, %v946
  %v948 = vrot.slane %v153, 2
  %v949 = vsel %vm754, %v946, %v948
  %v950 = vrot.slane %v154, 2
  %v951 = vrot.slane %v155, 2
  %v952 = vsel %vm754, %v950, %v951
  %v953 = vrot.slane %v156, 2
  %v954 = vsel %vm754, %v951, %v953
  %v955 = vrot.slane %v157, 2
  %v956 = vrot.slane %v158, 2
  %v957 = vsel %vm754, %v955, %v956
  %v958 = vrot.slane %v159, 2
  %v959 = vsel %vm754, %v956, %v958
  %v960 = vrot.slane %v160, 2
  %v961 = vrot.slane %v161, 2
  %v962 = vsel %vm754, %v960, %v961
  %v963 = vrot.slane %v162, 2
  %v964 = vsel %vm754, %v961, %v963
  %v965 = vrot.slane %v163, 2
  %v966 = vrot.slane %v164, 2
  %v967 = vsel %vm754, %v965, %v966
  %v968 = vrot.slane %v165, 2
  %v969 = vsel %vm754, %v966, %v968
  %v970 = vrot.slane %v166, 2
  %v971 = vrot.slane %v167, 2
  %v972 = vsel %vm754, %v970, %v971
  %v973 = vrot.slane %v168, 2
  %v974 = vsel %vm754, %v971, %v973
  %v975 = vrot.slane %v169, 2
  %v976 = vrot.slane %v170, 2
  %v977 = vsel %vm754, %v975, %v976
  %v978 = vrot.slane %v171, 2
  %v979 = vsel %vm754, %v976, %v978
  %v980 = vrot.slane %v172, 2
  %v981 = vrot.slane %v173, 2
  %v982 = vsel %vm754, %v980, %v981
  %v983 = vrot.slane %v174, 2
  %v984 = vsel %vm754, %v981, %v983
  %v985 = vrot.slane %v175, 2
  %v986 = vrot.slane %v176, 2
  %v987 = vsel %vm754, %v985, %v986
  %v988 = vrot.slane %v177, 2
  %v989 = vsel %vm754, %v986, %v988
  %v990 = vrot.slane %v178, 2
  %v991 = vrot.slane %v179, 2
  %v992 = vsel %vm754, %v990, %v991
  %v993 = vrot.slane %v180, 2
  %v994 = vsel %vm754, %v991, %v993
  %v995 = vrot.slane %v187, 2
  %v996 = vrot.slane %v188, 2
  %v997 = vsel %vm754, %v995, %v996
  %v998 = vrot.slane %v189, 2
  %v999 = vsel %vm754, %v996, %v998
  %v1000 = vrot.slane %v190, 2
  %v1001 = vrot.slane %v191, 2
  %v1002 = vsel %vm754, %v1000, %v1001
  %v1003 = vrot.slane %v192, 2
  %v1004 = vsel %vm754, %v1001, %v1003
  %v1005 = vrot.slane %v193, 2
  %v1006 = vrot.slane %v194, 2
  %v1007 = vsel %vm754, %v1005, %v1006
  %v1008 = vrot.slane %v195, 2
  %v1009 = vsel %vm754, %v1006, %v1008
  %v1010 = vrot.slane %v196, 2
  %v1011 = vrot.slane %v197, 2
  %v1012 = vsel %vm754, %v1010, %v1011
  %v1013 = vrot.slane %v198, 2
  %v1014 = vsel %vm754, %v1011, %v1013
  %v1015 = vrot.slane %v199, 2
  %v1016 = vrot.slane %v200, 2
  %v1017 = vsel %vm754, %v1015, %v1016
  %v1018 = vrot.slane %v201, 2
  %v1019 = vsel %vm754, %v1016, %v1018
  %v1020 = vrot.slane %v202, 2
  %v1021 = vrot.slane %v203, 2
  %v1022 = vsel %vm754, %v1020, %v1021
  %v1023 = vrot.slane %v204, 2
  %v1024 = vsel %vm754, %v1021, %v1023
  %v1025 = vrot.slane %v205, 2
  %v1026 = vrot.slane %v206, 2
  %v1027 = vsel %vm754, %v1025, %v1026
  %v1028 = vrot.slane %v207, 2
  %v1029 = vsel %vm754, %v1026, %v1028
  %v1030 = vrot.slane %v208, 2
  %v1031 = vrot.slane %v209, 2
  %v1032 = vsel %vm754, %v1030, %v1031
  %v1033 = vrot.slane %v210, 2
  %v1034 = vsel %vm754, %v1031, %v1033
  %v1035 = vrot.slane %v211, 2
  %v1036 = vrot.slane %v212, 2
  %v1037 = vsel %vm754, %v1035, %v1036
  %v1038 = vrot.slane %v213, 2
  %v1039 = vsel %vm754, %v1036, %v1038
  %v1040 = vrot.slane %v214, 2
  %v1041 = vrot.slane %v215, 2
  %v1042 = vsel %vm754, %v1040, %v1041
  %v1043 = vrot.slane %v216, 2
  %v1044 = vsel %vm754, %v1041, %v1043
  %v1045 = vrot.slane %v217, 2
  %v1046 = vrot.slane %v218, 2
  %v1047 = vsel %vm754, %v1045, %v1046
  %v1048 = vrot.slane %v219, 2
  %v1049 = vsel %vm754, %v1046, %v1048
  %v1050 = vrot.slane %v220, 2
  %v1051 = vrot.slane %v221, 2
  %v1052 = vsel %vm754, %v1050, %v1051
  %v1053 = vrot.slane %v222, 2
  %v1054 = vsel %vm754, %v1051, %v1053
  %v1055 = vrot.slane %v223, 2
  %v1056 = vrot.slane %v224, 2
  %v1057 = vsel %vm754, %v1055, %v1056
  %v1058 = vrot.slane %v225, 2
  %v1059 = vsel %vm754, %v1056, %v1058
  %v1060 = vrot.slane %v226, 2
  %v1061 = vrot.slane %v227, 2
  %v1062 = vsel %vm754, %v1060, %v1061
  %v1063 = vrot.slane %v228, 2
  %v1064 = vsel %vm754, %v1061, %v1063
  %v1065 = vrot.slane %v229, 2
  %v1066 = vrot.slane %v230, 2
  %v1067 = vsel %vm754, %v1065, %v1066
  %v1068 = vrot.slane %v231, 2
  %v1069 = vsel %vm754, %v1066, %v1068
  %v1070 = vrot.slane %v232, 2
  %v1071 = vrot.slane %v233, 2
  %v1072 = vsel %vm754, %v1070, %v1071
  %v1073 = vrot.slane %v234, 2
  %v1074 = vsel %vm754, %v1071, %v1073
  %v1081 = vrot.slane %v73, 1
  %v1082 = vrot.slane %v74, 1
  %v1083 = vsel %vm337, %v1081, %v1082
  %v1084 = vrot.slane %v75, 1
  %v1085 = vsel %vm337, %v1082, %v1084
  %v1086 = vrot.slane %v127, 1
  %v1087 = vrot.slane %v128, 1
  %v1088 = vsel %vm337, %v1086, %v1087
  %v1089 = vrot.slane %v129, 1
  %v1090 = vsel %vm337, %v1087, %v1089
  %v1097 = vrot.slane %v181, 1
  %v1098 = vrot.slane %v182, 1
  %v1099 = vsel %vm337, %v1097, %v1098
  %v1100 = vrot.slane %v183, 1
  %v1101 = vsel %vm337, %v1098, %v1100
  %v1102 = vrot.slane %v235, 1
  %v1103 = vrot.slane %v236, 1
  %v1104 = vsel %vm337, %v1102, %v1103
  %v1105 = vrot.slane %v237, 1
  %v1106 = vsel %vm337, %v1103, %v1105
  %v1107 = vrot.slane %v73, 2
  %v1108 = vrot.slane %v74, 2
  %v1109 = vsel %vm754, %v1107, %v1108
  %v1110 = vrot.slane %v75, 2
  %v1111 = vsel %vm754, %v1108, %v1110
  %v1112 = vrot.slane %v127, 2
  %v1113 = vrot.slane %v128, 2
  %v1114 = vsel %vm754, %v1112, %v1113
  %v1115 = vrot.slane %v129, 2
  %v1116 = vsel %vm754, %v1113, %v1115
  %v1117 = vrot.slane %v181, 2
  %v1118 = vrot.slane %v182, 2
  %v1119 = vsel %vm754, %v1117, %v1118
  %v1120 = vrot.slane %v183, 2
  %v1121 = vsel %vm754, %v1118, %v1120
  %v1122 = vrot.slane %v235, 2
  %v1123 = vrot.slane %v236, 2
  %v1124 = vsel %vm754, %v1122, %v1123
  %v1125 = vrot.slane %v237, 2
  %v1126 = vsel %vm754, %v1123, %v1125
  %v1133 = vrot.slane %v76, 1
  %v1134 = vrot.slane %v77, 1
  %v1135 = vsel %vm337, %v1133, %v1134
  %v1136 = vrot.slane %v78, 1
  %v1137 = vsel %vm337, %v1134, %v1136
  %v1138 = vrot.slane %v130, 1
  %v1139 = vrot.slane %v131, 1
  %v1140 = vsel %vm337, %v1138, %v1139
  %v1141 = vrot.slane %v132, 1
  %v1142 = vsel %vm337, %v1139, %v1141
  %v1149 = vrot.slane %v184, 1
  %v1150 = vrot.slane %v185, 1
  %v1151 = vsel %vm337, %v1149, %v1150
  %v1152 = vrot.slane %v186, 1
  %v1153 = vsel %vm337, %v1150, %v1152
  %v1154 = vrot.slane %v238, 1
  %v1155 = vrot.slane %v239, 1
  %v1156 = vsel %vm337, %v1154, %v1155
  %v1157 = vrot.slane %v240, 1
  %v1158 = vsel %vm337, %v1155, %v1157
  %v1159 = vrot.slane %v76, 2
  %v1160 = vrot.slane %v77, 2
  %v1161 = vsel %vm754, %v1159, %v1160
  %v1162 = vrot.slane %v78, 2
  %v1163 = vsel %vm754, %v1160, %v1162
  %v1164 = vrot.slane %v130, 2
  %v1165 = vrot.slane %v131, 2
  %v1166 = vsel %vm754, %v1164, %v1165
  %v1167 = vrot.slane %v132, 2
  %v1168 = vsel %vm754, %v1165, %v1167
  %v1233 = vrot.slane %v184, 2
  %v1234 = vrot.slane %v185, 2
  %v1235 = vsel %vm754, %v1233, %v1234
  %v1236 = vrot.slane %v186, 2
  %v1237 = vsel %vm754, %v1234, %v1236
  %v1238 = vrot.slane %v238, 2
  %v1239 = vrot.slane %v239, 2
  %v1240 = vsel %vm754, %v1238, %v1239
  %v1241 = vrot.slane %v240, 2
  %v1242 = vsel %vm754, %v1239, %v1241
  %1243 = vrot.lane.b32.xlu0 %v133, 4
  %v1244 = vpop.permute.xlu0 %1243
  %1245 = vrot.lane.b32.xlu0 %v134, 4
  %v1246 = vpop.permute.xlu0 %1245
  %1247 = vrot.lane.b32.xlu0 %v136, 4
  %v1248 = vpop.permute.xlu0 %1247
  %1249 = vrot.lane.b32.xlu0 %v137, 4
  %v1250 = vpop.permute.xlu0 %1249
  %1251 = vrot.lane.b32.xlu0 %v139, 4
  %v1252 = vpop.permute.xlu0 %1251
  %1253 = vrot.lane.b32.xlu0 %v140, 4
  %v1254 = vpop.permute.xlu0 %1253
  %1255 = vrot.lane.b32.xlu0 %v142, 4
  %v1256 = vpop.permute.xlu0 %1255
  %1257 = vrot.lane.b32.xlu0 %v143, 4
  %v1258 = vpop.permute.xlu0 %1257
  %1259 = vrot.lane.b32.xlu0 %v145, 4
  %v1260 = vpop.permute.xlu0 %1259
  %1261 = vrot.lane.b32.xlu0 %v146, 4
  %v1262 = vpop.permute.xlu0 %1261
  %1263 = vrot.lane.b32.xlu0 %v148, 4
  %v1264 = vpop.permute.xlu0 %1263
  %1265 = vrot.lane.b32.xlu0 %v149, 4
  %v1266 = vpop.permute.xlu0 %1265
  %1267 = vrot.lane.b32.xlu0 %v151, 4
  %v1268 = vpop.permute.xlu0 %1267
  %1269 = vrot.lane.b32.xlu0 %v152, 4
  %v1270 = vpop.permute.xlu0 %1269
  %1271 = vrot.lane.b32.xlu0 %v154, 4
  %v1272 = vpop.permute.xlu0 %1271
  %1273 = vrot.lane.b32.xlu0 %v155, 4
  %v1274 = vpop.permute.xlu0 %1273
  %1275 = vrot.lane.b32.xlu0 %v157, 4
  %v1276 = vpop.permute.xlu0 %1275
  %1277 = vrot.lane.b32.xlu0 %v158, 4
  %v1278 = vpop.permute.xlu0 %1277
  %1279 = vrot.lane.b32.xlu0 %v160, 4
  %v1280 = vpop.permute.xlu0 %1279
  %1281 = vrot.lane.b32.xlu0 %v161, 4
  %v1282 = vpop.permute.xlu0 %1281
  %1283 = vrot.lane.b32.xlu0 %v163, 4
  %v1284 = vpop.permute.xlu0 %1283
  %1285 = vrot.lane.b32.xlu0 %v164, 4
  %v1286 = vpop.permute.xlu0 %1285
  %1287 = vrot.lane.b32.xlu0 %v166, 4
  %v1288 = vpop.permute.xlu0 %1287
  %1289 = vrot.lane.b32.xlu0 %v167, 4
  %v1290 = vpop.permute.xlu0 %1289
  %1291 = vrot.lane.b32.xlu0 %v169, 4
  %v1292 = vpop.permute.xlu0 %1291
  %1293 = vrot.lane.b32.xlu0 %v170, 4
  %v1294 = vpop.permute.xlu0 %1293
  %1295 = vrot.lane.b32.xlu0 %v172, 4
  %v1296 = vpop.permute.xlu0 %1295
  %1297 = vrot.lane.b32.xlu0 %v173, 4
  %v1298 = vpop.permute.xlu0 %1297
  %1299 = vrot.lane.b32.xlu0 %v175, 4
  %v1300 = vpop.permute.xlu0 %1299
  %1301 = vrot.lane.b32.xlu0 %v176, 4
  %v1302 = vpop.permute.xlu0 %1301
  %1303 = vrot.lane.b32.xlu0 %v178, 4
  %v1304 = vpop.permute.xlu0 %1303
  %1305 = vrot.lane.b32.xlu0 %v179, 4
  %v1306 = vpop.permute.xlu0 %1305
  %1307 = vrot.lane.b32.xlu0 %v187, 4
  %v1308 = vpop.permute.xlu0 %1307
  %1309 = vrot.lane.b32.xlu0 %v188, 4
  %v1310 = vpop.permute.xlu0 %1309
  %1311 = vrot.lane.b32.xlu0 %v190, 4
  %v1312 = vpop.permute.xlu0 %1311
  %1313 = vrot.lane.b32.xlu0 %v191, 4
  %v1314 = vpop.permute.xlu0 %1313
  %1315 = vrot.lane.b32.xlu0 %v193, 4
  %v1316 = vpop.permute.xlu0 %1315
  %1317 = vrot.lane.b32.xlu0 %v194, 4
  %v1318 = vpop.permute.xlu0 %1317
  %1319 = vrot.lane.b32.xlu0 %v196, 4
  %v1320 = vpop.permute.xlu0 %1319
  %1321 = vrot.lane.b32.xlu0 %v197, 4
  %v1322 = vpop.permute.xlu0 %1321
  %1323 = vrot.lane.b32.xlu0 %v199, 4
  %v1324 = vpop.permute.xlu0 %1323
  %1325 = vrot.lane.b32.xlu0 %v200, 4
  %v1326 = vpop.permute.xlu0 %1325
  %1327 = vrot.lane.b32.xlu0 %v202, 4
  %v1328 = vpop.permute.xlu0 %1327
  %1329 = vrot.lane.b32.xlu0 %v203, 4
  %v1330 = vpop.permute.xlu0 %1329
  %1331 = vrot.lane.b32.xlu0 %v205, 4
  %v1332 = vpop.permute.xlu0 %1331
  %1333 = vrot.lane.b32.xlu0 %v206, 4
  %v1334 = vpop.permute.xlu0 %1333
  %1335 = vrot.lane.b32.xlu0 %v208, 4
  %v1336 = vpop.permute.xlu0 %1335
  %1337 = vrot.lane.b32.xlu0 %v209, 4
  %v1338 = vpop.permute.xlu0 %1337
  %1339 = vrot.lane.b32.xlu0 %v211, 4
  %v1340 = vpop.permute.xlu0 %1339
  %1341 = vrot.lane.b32.xlu0 %v212, 4
  %v1342 = vpop.permute.xlu0 %1341
  %1343 = vrot.lane.b32.xlu0 %v214, 4
  %v1344 = vpop.permute.xlu0 %1343
  %1345 = vrot.lane.b32.xlu0 %v215, 4
  %v1346 = vpop.permute.xlu0 %1345
  %1347 = vrot.lane.b32.xlu0 %v217, 4
  %v1348 = vpop.permute.xlu0 %1347
  %1349 = vrot.lane.b32.xlu0 %v218, 4
  %v1350 = vpop.permute.xlu0 %1349
  %1351 = vrot.lane.b32.xlu0 %v220, 4
  %v1352 = vpop.permute.xlu0 %1351
  %1353 = vrot.lane.b32.xlu0 %v221, 4
  %v1354 = vpop.permute.xlu0 %1353
  %1355 = vrot.lane.b32.xlu0 %v223, 4
  %v1356 = vpop.permute.xlu0 %1355
  %1357 = vrot.lane.b32.xlu0 %v224, 4
  %v1358 = vpop.permute.xlu0 %1357
  %1359 = vrot.lane.b32.xlu0 %v226, 4
  %v1360 = vpop.permute.xlu0 %1359
  %1361 = vrot.lane.b32.xlu0 %v227, 4
  %v1362 = vpop.permute.xlu0 %1361
  %1363 = vrot.lane.b32.xlu0 %v229, 4
  %v1364 = vpop.permute.xlu0 %1363
  %1365 = vrot.lane.b32.xlu0 %v230, 4
  %v1366 = vpop.permute.xlu0 %1365
  %1367 = vrot.lane.b32.xlu0 %v232, 4
  %v1368 = vpop.permute.xlu0 %1367
  %1369 = vrot.lane.b32.xlu0 %v233, 4
  %v1370 = vpop.permute.xlu0 %1369
  %1435 = vrot.lane.b32.xlu0 %v340, 12
  %v1436 = vpop.permute.xlu0 %1435
  %1437 = vrot.lane.b32.xlu0 %v342, 12
  %v1438 = vpop.permute.xlu0 %1437
  %1439 = vrot.lane.b32.xlu0 %v345, 12
  %v1440 = vpop.permute.xlu0 %1439
  %1441 = vrot.lane.b32.xlu0 %v347, 12
  %v1442 = vpop.permute.xlu0 %1441
  %1443 = vrot.lane.b32.xlu0 %v350, 12
  %v1444 = vpop.permute.xlu0 %1443
  %1445 = vrot.lane.b32.xlu0 %v352, 12
  %v1446 = vpop.permute.xlu0 %1445
  %1447 = vrot.lane.b32.xlu0 %v355, 12
  %v1448 = vpop.permute.xlu0 %1447
  %1449 = vrot.lane.b32.xlu0 %v357, 12
  %v1450 = vpop.permute.xlu0 %1449
  %1451 = vrot.lane.b32.xlu0 %v360, 12
  %v1452 = vpop.permute.xlu0 %1451
  %1453 = vrot.lane.b32.xlu0 %v362, 12
  %v1454 = vpop.permute.xlu0 %1453
  %1455 = vrot.lane.b32.xlu0 %v365, 12
  %v1456 = vpop.permute.xlu0 %1455
  %1457 = vrot.lane.b32.xlu0 %v367, 12
  %v1458 = vpop.permute.xlu0 %1457
  %1459 = vrot.lane.b32.xlu0 %v370, 12
  %v1460 = vpop.permute.xlu0 %1459
  %1461 = vrot.lane.b32.xlu0 %v372, 12
  %v1462 = vpop.permute.xlu0 %1461
  %1463 = vrot.lane.b32.xlu0 %v375, 12
  %v1464 = vpop.permute.xlu0 %1463
  %1465 = vrot.lane.b32.xlu0 %v377, 12
  %v1466 = vpop.permute.xlu0 %1465
  %1467 = vrot.lane.b32.xlu0 %v380, 12
  %v1468 = vpop.permute.xlu0 %1467
  %1469 = vrot.lane.b32.xlu0 %v382, 12
  %v1470 = vpop.permute.xlu0 %1469
  %1471 = vrot.lane.b32.xlu0 %v385, 12
  %v1472 = vpop.permute.xlu0 %1471
  %1473 = vrot.lane.b32.xlu0 %v387, 12
  %v1474 = vpop.permute.xlu0 %1473
  %1475 = vrot.lane.b32.xlu0 %v390, 12
  %v1476 = vpop.permute.xlu0 %1475
  %1477 = vrot.lane.b32.xlu0 %v392, 12
  %v1478 = vpop.permute.xlu0 %1477
  %1479 = vrot.lane.b32.xlu0 %v395, 12
  %v1480 = vpop.permute.xlu0 %1479
  %1481 = vrot.lane.b32.xlu0 %v397, 12
  %v1482 = vpop.permute.xlu0 %1481
  %1483 = vrot.lane.b32.xlu0 %v400, 12
  %v1484 = vpop.permute.xlu0 %1483
  %1485 = vrot.lane.b32.xlu0 %v402, 12
  %v1486 = vpop.permute.xlu0 %1485
  %1487 = vrot.lane.b32.xlu0 %v405, 12
  %v1488 = vpop.permute.xlu0 %1487
  %1489 = vrot.lane.b32.xlu0 %v407, 12
  %v1490 = vpop.permute.xlu0 %1489
  %1491 = vrot.lane.b32.xlu0 %v410, 12
  %v1492 = vpop.permute.xlu0 %1491
  %1493 = vrot.lane.b32.xlu0 %v412, 12
  %v1494 = vpop.permute.xlu0 %1493
  %1495 = vrot.lane.b32.xlu0 %v415, 12
  %v1496 = vpop.permute.xlu0 %1495
  %1497 = vrot.lane.b32.xlu0 %v417, 12
  %v1498 = vpop.permute.xlu0 %1497
  %1499 = vrot.lane.b32.xlu0 %v420, 12
  %v1500 = vpop.permute.xlu0 %1499
  %1501 = vrot.lane.b32.xlu0 %v422, 12
  %v1502 = vpop.permute.xlu0 %1501
  %1503 = vrot.lane.b32.xlu0 %v425, 12
  %v1504 = vpop.permute.xlu0 %1503
  %1505 = vrot.lane.b32.xlu0 %v427, 12
  %v1506 = vpop.permute.xlu0 %1505
  %1507 = vrot.lane.b32.xlu0 %v430, 12
  %v1508 = vpop.permute.xlu0 %1507
  %1509 = vrot.lane.b32.xlu0 %v432, 12
  %v1510 = vpop.permute.xlu0 %1509
  %1511 = vrot.lane.b32.xlu0 %v435, 12
  %v1512 = vpop.permute.xlu0 %1511
  %1513 = vrot.lane.b32.xlu0 %v437, 12
  %v1514 = vpop.permute.xlu0 %1513
  %1515 = vrot.lane.b32.xlu0 %v440, 12
  %v1516 = vpop.permute.xlu0 %1515
  %1517 = vrot.lane.b32.xlu0 %v442, 12
  %v1518 = vpop.permute.xlu0 %1517
  %1519 = vrot.lane.b32.xlu0 %v445, 12
  %v1520 = vpop.permute.xlu0 %1519
  %1521 = vrot.lane.b32.xlu0 %v447, 12
  %v1522 = vpop.permute.xlu0 %1521
  %1523 = vrot.lane.b32.xlu0 %v450, 12
  %v1524 = vpop.permute.xlu0 %1523
  %1525 = vrot.lane.b32.xlu0 %v452, 12
  %v1526 = vpop.permute.xlu0 %1525
  %1527 = vrot.lane.b32.xlu0 %v455, 12
  %v1528 = vpop.permute.xlu0 %1527
  %1529 = vrot.lane.b32.xlu0 %v457, 12
  %v1530 = vpop.permute.xlu0 %1529
  %1531 = vrot.lane.b32.xlu0 %v460, 12
  %v1532 = vpop.permute.xlu0 %1531
  %1533 = vrot.lane.b32.xlu0 %v462, 12
  %v1534 = vpop.permute.xlu0 %1533
  %1535 = vrot.lane.b32.xlu0 %v465, 12
  %v1536 = vpop.permute.xlu0 %1535
  %1537 = vrot.lane.b32.xlu0 %v467, 12
  %v1538 = vpop.permute.xlu0 %1537
  %1539 = vrot.lane.b32.xlu0 %v470, 12
  %v1540 = vpop.permute.xlu0 %1539
  %1541 = vrot.lane.b32.xlu0 %v472, 12
  %v1542 = vpop.permute.xlu0 %1541
  %1543 = vrot.lane.b32.xlu0 %v475, 12
  %v1544 = vpop.permute.xlu0 %1543
  %1545 = vrot.lane.b32.xlu0 %v477, 12
  %v1546 = vpop.permute.xlu0 %1545
  %1547 = vrot.lane.b32.xlu0 %v480, 12
  %v1548 = vpop.permute.xlu0 %1547
  %1549 = vrot.lane.b32.xlu0 %v482, 12
  %v1550 = vpop.permute.xlu0 %1549
  %1551 = vrot.lane.b32.xlu0 %v485, 12
  %v1552 = vpop.permute.xlu0 %1551
  %1553 = vrot.lane.b32.xlu0 %v487, 12
  %v1554 = vpop.permute.xlu0 %1553
  %1555 = vrot.lane.b32.xlu0 %v490, 12
  %v1556 = vpop.permute.xlu0 %1555
  %1557 = vrot.lane.b32.xlu0 %v492, 12
  %v1558 = vpop.permute.xlu0 %1557
  %1559 = vrot.lane.b32.xlu0 %v495, 12
  %v1560 = vpop.permute.xlu0 %1559
  %1561 = vrot.lane.b32.xlu0 %v497, 12
  %v1562 = vpop.permute.xlu0 %1561
  %1627 = vrot.lane.b32.xlu0 %v596, 16
  %v1628 = vpop.permute.xlu0 %1627
  %1629 = vrot.lane.b32.xlu0 %v598, 16
  %v1630 = vpop.permute.xlu0 %1629
  %1631 = vrot.lane.b32.xlu0 %v601, 16
  %v1632 = vpop.permute.xlu0 %1631
  %1633 = vrot.lane.b32.xlu0 %v603, 16
  %v1634 = vpop.permute.xlu0 %1633
  %1635 = vrot.lane.b32.xlu0 %v606, 16
  %v1636 = vpop.permute.xlu0 %1635
  %1637 = vrot.lane.b32.xlu0 %v608, 16
  %v1638 = vpop.permute.xlu0 %1637
  %1639 = vrot.lane.b32.xlu0 %v611, 16
  %v1640 = vpop.permute.xlu0 %1639
  %1641 = vrot.lane.b32.xlu0 %v613, 16
  %v1642 = vpop.permute.xlu0 %1641
  %1643 = vrot.lane.b32.xlu0 %v616, 16
  %v1644 = vpop.permute.xlu0 %1643
  %1645 = vrot.lane.b32.xlu0 %v618, 16
  %v1646 = vpop.permute.xlu0 %1645
  %1647 = vrot.lane.b32.xlu0 %v621, 16
  %v1648 = vpop.permute.xlu0 %1647
  %1649 = vrot.lane.b32.xlu0 %v623, 16
  %v1650 = vpop.permute.xlu0 %1649
  %1651 = vrot.lane.b32.xlu0 %v626, 16
  %v1652 = vpop.permute.xlu0 %1651
  %1653 = vrot.lane.b32.xlu0 %v628, 16
  %v1654 = vpop.permute.xlu0 %1653
  %1655 = vrot.lane.b32.xlu0 %v631, 16
  %v1656 = vpop.permute.xlu0 %1655
  %1657 = vrot.lane.b32.xlu0 %v633, 16
  %v1658 = vpop.permute.xlu0 %1657
  %1659 = vrot.lane.b32.xlu0 %v636, 16
  %v1660 = vpop.permute.xlu0 %1659
  %1661 = vrot.lane.b32.xlu0 %v638, 16
  %v1662 = vpop.permute.xlu0 %1661
  %1663 = vrot.lane.b32.xlu0 %v641, 16
  %v1664 = vpop.permute.xlu0 %1663
  %1665 = vrot.lane.b32.xlu0 %v643, 16
  %v1666 = vpop.permute.xlu0 %1665
  %1667 = vrot.lane.b32.xlu0 %v646, 16
  %v1668 = vpop.permute.xlu0 %1667
  %1669 = vrot.lane.b32.xlu0 %v648, 16
  %v1670 = vpop.permute.xlu0 %1669
  %1671 = vrot.lane.b32.xlu0 %v651, 16
  %v1672 = vpop.permute.xlu0 %1671
  %1673 = vrot.lane.b32.xlu0 %v653, 16
  %v1674 = vpop.permute.xlu0 %1673
  %1675 = vrot.lane.b32.xlu0 %v656, 16
  %v1676 = vpop.permute.xlu0 %1675
  %1677 = vrot.lane.b32.xlu0 %v658, 16
  %v1678 = vpop.permute.xlu0 %1677
  %1679 = vrot.lane.b32.xlu0 %v661, 16
  %v1680 = vpop.permute.xlu0 %1679
  %1681 = vrot.lane.b32.xlu0 %v663, 16
  %v1682 = vpop.permute.xlu0 %1681
  %1683 = vrot.lane.b32.xlu0 %v666, 16
  %v1684 = vpop.permute.xlu0 %1683
  %1685 = vrot.lane.b32.xlu0 %v668, 16
  %v1686 = vpop.permute.xlu0 %1685
  %1687 = vrot.lane.b32.xlu0 %v671, 16
  %v1688 = vpop.permute.xlu0 %1687
  %1689 = vrot.lane.b32.xlu0 %v673, 16
  %v1690 = vpop.permute.xlu0 %1689
  %1691 = vrot.lane.b32.xlu0 %v676, 16
  %v1692 = vpop.permute.xlu0 %1691
  %1693 = vrot.lane.b32.xlu0 %v678, 16
  %v1694 = vpop.permute.xlu0 %1693
  %1695 = vrot.lane.b32.xlu0 %v681, 16
  %v1696 = vpop.permute.xlu0 %1695
  %1697 = vrot.lane.b32.xlu0 %v683, 16
  %v1698 = vpop.permute.xlu0 %1697
  %1699 = vrot.lane.b32.xlu0 %v686, 16
  %v1700 = vpop.permute.xlu0 %1699
  %1701 = vrot.lane.b32.xlu0 %v688, 16
  %v1702 = vpop.permute.xlu0 %1701
  %1703 = vrot.lane.b32.xlu0 %v691, 16
  %v1704 = vpop.permute.xlu0 %1703
  %1705 = vrot.lane.b32.xlu0 %v693, 16
  %v1706 = vpop.permute.xlu0 %1705
  %1707 = vrot.lane.b32.xlu0 %v696, 16
  %v1708 = vpop.permute.xlu0 %1707
  %1709 = vrot.lane.b32.xlu0 %v698, 16
  %v1710 = vpop.permute.xlu0 %1709
  %1711 = vrot.lane.b32.xlu0 %v701, 16
  %v1712 = vpop.permute.xlu0 %1711
  %1713 = vrot.lane.b32.xlu0 %v703, 16
  %v1714 = vpop.permute.xlu0 %1713
  %1715 = vrot.lane.b32.xlu0 %v706, 16
  %v1716 = vpop.permute.xlu0 %1715
  %1717 = vrot.lane.b32.xlu0 %v708, 16
  %v1718 = vpop.permute.xlu0 %1717
  %1719 = vrot.lane.b32.xlu0 %v711, 16
  %v1720 = vpop.permute.xlu0 %1719
  %1721 = vrot.lane.b32.xlu0 %v713, 16
  %v1722 = vpop.permute.xlu0 %1721
  %1723 = vrot.lane.b32.xlu0 %v716, 16
  %v1724 = vpop.permute.xlu0 %1723
  %1725 = vrot.lane.b32.xlu0 %v718, 16
  %v1726 = vpop.permute.xlu0 %1725
  %1727 = vrot.lane.b32.xlu0 %v721, 16
  %v1728 = vpop.permute.xlu0 %1727
  %1729 = vrot.lane.b32.xlu0 %v723, 16
  %v1730 = vpop.permute.xlu0 %1729
  %1731 = vrot.lane.b32.xlu0 %v726, 16
  %v1732 = vpop.permute.xlu0 %1731
  %1733 = vrot.lane.b32.xlu0 %v728, 16
  %v1734 = vpop.permute.xlu0 %1733
  %1735 = vrot.lane.b32.xlu0 %v731, 16
  %v1736 = vpop.permute.xlu0 %1735
  %1737 = vrot.lane.b32.xlu0 %v733, 16
  %v1738 = vpop.permute.xlu0 %1737
  %1739 = vrot.lane.b32.xlu0 %v736, 16
  %v1740 = vpop.permute.xlu0 %1739
  %1741 = vrot.lane.b32.xlu0 %v738, 16
  %v1742 = vpop.permute.xlu0 %1741
  %1743 = vrot.lane.b32.xlu0 %v741, 16
  %v1744 = vpop.permute.xlu0 %1743
  %1745 = vrot.lane.b32.xlu0 %v743, 16
  %v1746 = vpop.permute.xlu0 %1745
  %1747 = vrot.lane.b32.xlu0 %v746, 16
  %v1748 = vpop.permute.xlu0 %1747
  %1749 = vrot.lane.b32.xlu0 %v748, 16
  %v1750 = vpop.permute.xlu0 %1749
  %1751 = vrot.lane.b32.xlu0 %v751, 16
  %v1752 = vpop.permute.xlu0 %1751
  %1753 = vrot.lane.b32.xlu0 %v753, 16
  %v1754 = vpop.permute.xlu0 %1753
  %1819 = vrot.lane.b32.xlu0 %v757, 24
  %v1820 = vpop.permute.xlu0 %1819
  %1821 = vrot.lane.b32.xlu0 %v759, 24
  %v1822 = vpop.permute.xlu0 %1821
  %1823 = vrot.lane.b32.xlu0 %v762, 24
  %v1824 = vpop.permute.xlu0 %1823
  %1825 = vrot.lane.b32.xlu0 %v764, 24
  %v1826 = vpop.permute.xlu0 %1825
  %1827 = vrot.lane.b32.xlu0 %v767, 24
  %v1828 = vpop.permute.xlu0 %1827
  %1829 = vrot.lane.b32.xlu0 %v769, 24
  %v1830 = vpop.permute.xlu0 %1829
  %1831 = vrot.lane.b32.xlu0 %v772, 24
  %v1832 = vpop.permute.xlu0 %1831
  %1833 = vrot.lane.b32.xlu0 %v774, 24
  %v1834 = vpop.permute.xlu0 %1833
  %1835 = vrot.lane.b32.xlu0 %v777, 24
  %v1836 = vpop.permute.xlu0 %1835
  %1837 = vrot.lane.b32.xlu0 %v779, 24
  %v1838 = vpop.permute.xlu0 %1837
  %1839 = vrot.lane.b32.xlu0 %v782, 24
  %v1840 = vpop.permute.xlu0 %1839
  %1841 = vrot.lane.b32.xlu0 %v784, 24
  %v1842 = vpop.permute.xlu0 %1841
  %1843 = vrot.lane.b32.xlu0 %v787, 24
  %v1844 = vpop.permute.xlu0 %1843
  %1845 = vrot.lane.b32.xlu0 %v789, 24
  %v1846 = vpop.permute.xlu0 %1845
  %1847 = vrot.lane.b32.xlu0 %v792, 24
  %v1848 = vpop.permute.xlu0 %1847
  %1849 = vrot.lane.b32.xlu0 %v794, 24
  %v1850 = vpop.permute.xlu0 %1849
  %1851 = vrot.lane.b32.xlu0 %v797, 24
  %v1852 = vpop.permute.xlu0 %1851
  %1853 = vrot.lane.b32.xlu0 %v799, 24
  %v1854 = vpop.permute.xlu0 %1853
  %1855 = vrot.lane.b32.xlu0 %v802, 24
  %v1856 = vpop.permute.xlu0 %1855
  %1857 = vrot.lane.b32.xlu0 %v804, 24
  %v1858 = vpop.permute.xlu0 %1857
  %1859 = vrot.lane.b32.xlu0 %v807, 24
  %v1860 = vpop.permute.xlu0 %1859
  %1861 = vrot.lane.b32.xlu0 %v809, 24
  %v1862 = vpop.permute.xlu0 %1861
  %1863 = vrot.lane.b32.xlu0 %v812, 24
  %v1864 = vpop.permute.xlu0 %1863
  %1865 = vrot.lane.b32.xlu0 %v814, 24
  %v1866 = vpop.permute.xlu0 %1865
  %1867 = vrot.lane.b32.xlu0 %v817, 24
  %v1868 = vpop.permute.xlu0 %1867
  %1869 = vrot.lane.b32.xlu0 %v819, 24
  %v1870 = vpop.permute.xlu0 %1869
  %1871 = vrot.lane.b32.xlu0 %v822, 24
  %v1872 = vpop.permute.xlu0 %1871
  %1873 = vrot.lane.b32.xlu0 %v824, 24
  %v1874 = vpop.permute.xlu0 %1873
  %1875 = vrot.lane.b32.xlu0 %v827, 24
  %v1876 = vpop.permute.xlu0 %1875
  %1877 = vrot.lane.b32.xlu0 %v829, 24
  %v1878 = vpop.permute.xlu0 %1877
  %1879 = vrot.lane.b32.xlu0 %v832, 24
  %v1880 = vpop.permute.xlu0 %1879
  %1881 = vrot.lane.b32.xlu0 %v834, 24
  %v1882 = vpop.permute.xlu0 %1881
  %1883 = vrot.lane.b32.xlu0 %v837, 24
  %v1884 = vpop.permute.xlu0 %1883
  %1885 = vrot.lane.b32.xlu0 %v839, 24
  %v1886 = vpop.permute.xlu0 %1885
  %1887 = vrot.lane.b32.xlu0 %v842, 24
  %v1888 = vpop.permute.xlu0 %1887
  %1889 = vrot.lane.b32.xlu0 %v844, 24
  %v1890 = vpop.permute.xlu0 %1889
  %1891 = vrot.lane.b32.xlu0 %v847, 24
  %v1892 = vpop.permute.xlu0 %1891
  %1893 = vrot.lane.b32.xlu0 %v849, 24
  %v1894 = vpop.permute.xlu0 %1893
  %1895 = vrot.lane.b32.xlu0 %v852, 24
  %v1896 = vpop.permute.xlu0 %1895
  %1897 = vrot.lane.b32.xlu0 %v854, 24
  %v1898 = vpop.permute.xlu0 %1897
  %1899 = vrot.lane.b32.xlu0 %v857, 24
  %v1900 = vpop.permute.xlu0 %1899
  %1901 = vrot.lane.b32.xlu0 %v859, 24
  %v1902 = vpop.permute.xlu0 %1901
  %1903 = vrot.lane.b32.xlu0 %v862, 24
  %v1904 = vpop.permute.xlu0 %1903
  %1905 = vrot.lane.b32.xlu0 %v864, 24
  %v1906 = vpop.permute.xlu0 %1905
  %1907 = vrot.lane.b32.xlu0 %v867, 24
  %v1908 = vpop.permute.xlu0 %1907
  %1909 = vrot.lane.b32.xlu0 %v869, 24
  %v1910 = vpop.permute.xlu0 %1909
  %1911 = vrot.lane.b32.xlu0 %v872, 24
  %v1912 = vpop.permute.xlu0 %1911
  %1913 = vrot.lane.b32.xlu0 %v874, 24
  %v1914 = vpop.permute.xlu0 %1913
  %1915 = vrot.lane.b32.xlu0 %v877, 24
  %v1916 = vpop.permute.xlu0 %1915
  %1917 = vrot.lane.b32.xlu0 %v879, 24
  %v1918 = vpop.permute.xlu0 %1917
  %1919 = vrot.lane.b32.xlu0 %v882, 24
  %v1920 = vpop.permute.xlu0 %1919
  %1921 = vrot.lane.b32.xlu0 %v884, 24
  %v1922 = vpop.permute.xlu0 %1921
  %1923 = vrot.lane.b32.xlu0 %v887, 24
  %v1924 = vpop.permute.xlu0 %1923
  %1925 = vrot.lane.b32.xlu0 %v889, 24
  %v1926 = vpop.permute.xlu0 %1925
  %1927 = vrot.lane.b32.xlu0 %v892, 24
  %v1928 = vpop.permute.xlu0 %1927
  %1929 = vrot.lane.b32.xlu0 %v894, 24
  %v1930 = vpop.permute.xlu0 %1929
  %1931 = vrot.lane.b32.xlu0 %v897, 24
  %v1932 = vpop.permute.xlu0 %1931
  %1933 = vrot.lane.b32.xlu0 %v899, 24
  %v1934 = vpop.permute.xlu0 %1933
  %1935 = vrot.lane.b32.xlu0 %v902, 24
  %v1936 = vpop.permute.xlu0 %1935
  %1937 = vrot.lane.b32.xlu0 %v904, 24
  %v1938 = vpop.permute.xlu0 %1937
  %1939 = vrot.lane.b32.xlu0 %v907, 24
  %v1940 = vpop.permute.xlu0 %1939
  %1941 = vrot.lane.b32.xlu0 %v909, 24
  %v1942 = vpop.permute.xlu0 %1941
  %1943 = vrot.lane.b32.xlu0 %v912, 24
  %v1944 = vpop.permute.xlu0 %1943
  %1945 = vrot.lane.b32.xlu0 %v914, 24
  %v1946 = vpop.permute.xlu0 %1945
  %2011 = vrot.lane.b32.xlu0 %v917, 28
  %v2012 = vpop.permute.xlu0 %2011
  %2013 = vrot.lane.b32.xlu0 %v919, 28
  %v2014 = vpop.permute.xlu0 %2013
  %2015 = vrot.lane.b32.xlu0 %v922, 28
  %v2016 = vpop.permute.xlu0 %2015
  %2017 = vrot.lane.b32.xlu0 %v924, 28
  %v2018 = vpop.permute.xlu0 %2017
  %2019 = vrot.lane.b32.xlu0 %v927, 28
  %v2020 = vpop.permute.xlu0 %2019
  %2021 = vrot.lane.b32.xlu0 %v929, 28
  %v2022 = vpop.permute.xlu0 %2021
  %2023 = vrot.lane.b32.xlu0 %v932, 28
  %v2024 = vpop.permute.xlu0 %2023
  %2025 = vrot.lane.b32.xlu0 %v934, 28
  %v2026 = vpop.permute.xlu0 %2025
  %2027 = vrot.lane.b32.xlu0 %v937, 28
  %v2028 = vpop.permute.xlu0 %2027
  %2029 = vrot.lane.b32.xlu0 %v939, 28
  %v2030 = vpop.permute.xlu0 %2029
  %2031 = vrot.lane.b32.xlu0 %v942, 28
  %v2032 = vpop.permute.xlu0 %2031
  %2033 = vrot.lane.b32.xlu0 %v944, 28
  %v2034 = vpop.permute.xlu0 %2033
  %2035 = vrot.lane.b32.xlu0 %v947, 28
  %v2036 = vpop.permute.xlu0 %2035
  %2037 = vrot.lane.b32.xlu0 %v949, 28
  %v2038 = vpop.permute.xlu0 %2037
  %2039 = vrot.lane.b32.xlu0 %v952, 28
  %v2040 = vpop.permute.xlu0 %2039
  %2041 = vrot.lane.b32.xlu0 %v954, 28
  %v2042 = vpop.permute.xlu0 %2041
  %2043 = vrot.lane.b32.xlu0 %v957, 28
  %v2044 = vpop.permute.xlu0 %2043
  %2045 = vrot.lane.b32.xlu0 %v959, 28
  %v2046 = vpop.permute.xlu0 %2045
  %2047 = vrot.lane.b32.xlu0 %v962, 28
  %v2048 = vpop.permute.xlu0 %2047
  %2049 = vrot.lane.b32.xlu0 %v964, 28
  %v2050 = vpop.permute.xlu0 %2049
  %2051 = vrot.lane.b32.xlu0 %v967, 28
  %v2052 = vpop.permute.xlu0 %2051
  %2053 = vrot.lane.b32.xlu0 %v969, 28
  %v2054 = vpop.permute.xlu0 %2053
  %2055 = vrot.lane.b32.xlu0 %v972, 28
  %v2056 = vpop.permute.xlu0 %2055
  %2057 = vrot.lane.b32.xlu0 %v974, 28
  %v2058 = vpop.permute.xlu0 %2057
  %2059 = vrot.lane.b32.xlu0 %v977, 28
  %v2060 = vpop.permute.xlu0 %2059
  %2061 = vrot.lane.b32.xlu0 %v979, 28
  %v2062 = vpop.permute.xlu0 %2061
  %2063 = vrot.lane.b32.xlu0 %v982, 28
  %v2064 = vpop.permute.xlu0 %2063
  %2065 = vrot.lane.b32.xlu0 %v984, 28
  %v2066 = vpop.permute.xlu0 %2065
  %2067 = vrot.lane.b32.xlu0 %v987, 28
  %v2068 = vpop.permute.xlu0 %2067
  %2069 = vrot.lane.b32.xlu0 %v989, 28
  %v2070 = vpop.permute.xlu0 %2069
  %2071 = vrot.lane.b32.xlu0 %v992, 28
  %v2072 = vpop.permute.xlu0 %2071
  %2073 = vrot.lane.b32.xlu0 %v994, 28
  %v2074 = vpop.permute.xlu0 %2073
  %2075 = vrot.lane.b32.xlu0 %v997, 28
  %v2076 = vpop.permute.xlu0 %2075
  %2077 = vrot.lane.b32.xlu0 %v999, 28
  %v2078 = vpop.permute.xlu0 %2077
  %2079 = vrot.lane.b32.xlu0 %v1002, 28
  %v2080 = vpop.permute.xlu0 %2079
  %2081 = vrot.lane.b32.xlu0 %v1004, 28
  %v2082 = vpop.permute.xlu0 %2081
  %2083 = vrot.lane.b32.xlu0 %v1007, 28
  %v2084 = vpop.permute.xlu0 %2083
  %2085 = vrot.lane.b32.xlu0 %v1009, 28
  %v2086 = vpop.permute.xlu0 %2085
  %2087 = vrot.lane.b32.xlu0 %v1012, 28
  %v2088 = vpop.permute.xlu0 %2087
  %2089 = vrot.lane.b32.xlu0 %v1014, 28
  %v2090 = vpop.permute.xlu0 %2089
  %2091 = vrot.lane.b32.xlu0 %v1017, 28
  %v2092 = vpop.permute.xlu0 %2091
  %2093 = vrot.lane.b32.xlu0 %v1019, 28
  %v2094 = vpop.permute.xlu0 %2093
  %2095 = vrot.lane.b32.xlu0 %v1022, 28
  %v2096 = vpop.permute.xlu0 %2095
  %2097 = vrot.lane.b32.xlu0 %v1024, 28
  %v2098 = vpop.permute.xlu0 %2097
  %2099 = vrot.lane.b32.xlu0 %v1027, 28
  %v2100 = vpop.permute.xlu0 %2099
  %2101 = vrot.lane.b32.xlu0 %v1029, 28
  %v2102 = vpop.permute.xlu0 %2101
  %2103 = vrot.lane.b32.xlu0 %v1032, 28
  %v2104 = vpop.permute.xlu0 %2103
  %2105 = vrot.lane.b32.xlu0 %v1034, 28
  %v2106 = vpop.permute.xlu0 %2105
  %2107 = vrot.lane.b32.xlu0 %v1037, 28
  %v2108 = vpop.permute.xlu0 %2107
  %2109 = vrot.lane.b32.xlu0 %v1039, 28
  %v2110 = vpop.permute.xlu0 %2109
  %2111 = vrot.lane.b32.xlu0 %v1042, 28
  %v2112 = vpop.permute.xlu0 %2111
  %2113 = vrot.lane.b32.xlu0 %v1044, 28
  %v2114 = vpop.permute.xlu0 %2113
  %2115 = vrot.lane.b32.xlu0 %v1047, 28
  %v2116 = vpop.permute.xlu0 %2115
  %2117 = vrot.lane.b32.xlu0 %v1049, 28
  %v2118 = vpop.permute.xlu0 %2117
  %2119 = vrot.lane.b32.xlu0 %v1052, 28
  %v2120 = vpop.permute.xlu0 %2119
  %2121 = vrot.lane.b32.xlu0 %v1054, 28
  %v2122 = vpop.permute.xlu0 %2121
  %2123 = vrot.lane.b32.xlu0 %v1057, 28
  %v2124 = vpop.permute.xlu0 %2123
  %2125 = vrot.lane.b32.xlu0 %v1059, 28
  %v2126 = vpop.permute.xlu0 %2125
  %2127 = vrot.lane.b32.xlu0 %v1062, 28
  %v2128 = vpop.permute.xlu0 %2127
  %2129 = vrot.lane.b32.xlu0 %v1064, 28
  %v2130 = vpop.permute.xlu0 %2129
  %2131 = vrot.lane.b32.xlu0 %v1067, 28
  %v2132 = vpop.permute.xlu0 %2131
  %2133 = vrot.lane.b32.xlu0 %v1069, 28
  %v2134 = vpop.permute.xlu0 %2133
  %2135 = vrot.lane.b32.xlu0 %v1072, 28
  %v2136 = vpop.permute.xlu0 %2135
  %2137 = vrot.lane.b32.xlu0 %v1074, 28
  %v2138 = vpop.permute.xlu0 %2137
  %2203 = vrot.lane.b32.xlu0 %v28, 36
  %v2204 = vpop.permute.xlu0 %2203
  %2205 = vrot.lane.b32.xlu0 %v29, 36
  %v2206 = vpop.permute.xlu0 %2205
  %2207 = vrot.lane.b32.xlu0 %v31, 36
  %v2208 = vpop.permute.xlu0 %2207
  %2209 = vrot.lane.b32.xlu0 %v32, 36
  %v2210 = vpop.permute.xlu0 %2209
  %2211 = vrot.lane.b32.xlu0 %v34, 36
  %v2212 = vpop.permute.xlu0 %2211
  %2213 = vrot.lane.b32.xlu0 %v35, 36
  %v2214 = vpop.permute.xlu0 %2213
  %2215 = vrot.lane.b32.xlu0 %v37, 36
  %v2216 = vpop.permute.xlu0 %2215
  %2217 = vrot.lane.b32.xlu0 %v38, 36
  %v2218 = vpop.permute.xlu0 %2217
  %2219 = vrot.lane.b32.xlu0 %v40, 36
  %v2220 = vpop.permute.xlu0 %2219
  %2221 = vrot.lane.b32.xlu0 %v41, 36
  %v2222 = vpop.permute.xlu0 %2221
  %2223 = vrot.lane.b32.xlu0 %v43, 36
  %v2224 = vpop.permute.xlu0 %2223
  %2225 = vrot.lane.b32.xlu0 %v44, 36
  %v2226 = vpop.permute.xlu0 %2225
  %2227 = vrot.lane.b32.xlu0 %v46, 36
  %v2228 = vpop.permute.xlu0 %2227
  %2229 = vrot.lane.b32.xlu0 %v47, 36
  %v2230 = vpop.permute.xlu0 %2229
  %2231 = vrot.lane.b32.xlu0 %v49, 36
  %v2232 = vpop.permute.xlu0 %2231
  %2233 = vrot.lane.b32.xlu0 %v50, 36
  %v2234 = vpop.permute.xlu0 %2233
  %2235 = vrot.lane.b32.xlu0 %v52, 36
  %v2236 = vpop.permute.xlu0 %2235
  %2237 = vrot.lane.b32.xlu0 %v53, 36
  %v2238 = vpop.permute.xlu0 %2237
  %2239 = vrot.lane.b32.xlu0 %v55, 36
  %v2240 = vpop.permute.xlu0 %2239
  %2241 = vrot.lane.b32.xlu0 %v56, 36
  %v2242 = vpop.permute.xlu0 %2241
  %2243 = vrot.lane.b32.xlu0 %v58, 36
  %v2244 = vpop.permute.xlu0 %2243
  %2245 = vrot.lane.b32.xlu0 %v59, 36
  %v2246 = vpop.permute.xlu0 %2245
  %2247 = vrot.lane.b32.xlu0 %v61, 36
  %v2248 = vpop.permute.xlu0 %2247
  %2249 = vrot.lane.b32.xlu0 %v62, 36
  %v2250 = vpop.permute.xlu0 %2249
  %2251 = vrot.lane.b32.xlu0 %v64, 36
  %v2252 = vpop.permute.xlu0 %2251
  %2253 = vrot.lane.b32.xlu0 %v65, 36
  %v2254 = vpop.permute.xlu0 %2253
  %2255 = vrot.lane.b32.xlu0 %v67, 36
  %v2256 = vpop.permute.xlu0 %2255
  %2257 = vrot.lane.b32.xlu0 %v68, 36
  %v2258 = vpop.permute.xlu0 %2257
  %2259 = vrot.lane.b32.xlu0 %v70, 36
  %v2260 = vpop.permute.xlu0 %2259
  %2261 = vrot.lane.b32.xlu0 %v71, 36
  %v2262 = vpop.permute.xlu0 %2261
  %2263 = vrot.lane.b32.xlu0 %v73, 36
  %v2264 = vpop.permute.xlu0 %2263
  %2265 = vrot.lane.b32.xlu0 %v74, 36
  %v2266 = vpop.permute.xlu0 %2265
  %2267 = vrot.lane.b32.xlu0 %v82, 36
  %v2268 = vpop.permute.xlu0 %2267
  %2269 = vrot.lane.b32.xlu0 %v83, 36
  %v2270 = vpop.permute.xlu0 %2269
  %2271 = vrot.lane.b32.xlu0 %v85, 36
  %v2272 = vpop.permute.xlu0 %2271
  %2273 = vrot.lane.b32.xlu0 %v86, 36
  %v2274 = vpop.permute.xlu0 %2273
  %2275 = vrot.lane.b32.xlu0 %v88, 36
  %v2276 = vpop.permute.xlu0 %2275
  %2277 = vrot.lane.b32.xlu0 %v89, 36
  %v2278 = vpop.permute.xlu0 %2277
  %2279 = vrot.lane.b32.xlu0 %v91, 36
  %v2280 = vpop.permute.xlu0 %2279
  %2281 = vrot.lane.b32.xlu0 %v92, 36
  %v2282 = vpop.permute.xlu0 %2281
  %2283 = vrot.lane.b32.xlu0 %v94, 36
  %v2284 = vpop.permute.xlu0 %2283
  %2285 = vrot.lane.b32.xlu0 %v95, 36
  %v2286 = vpop.permute.xlu0 %2285
  %2287 = vrot.lane.b32.xlu0 %v97, 36
  %v2288 = vpop.permute.xlu0 %2287
  %2289 = vrot.lane.b32.xlu0 %v98, 36
  %v2290 = vpop.permute.xlu0 %2289
  %2291 = vrot.lane.b32.xlu0 %v100, 36
  %v2292 = vpop.permute.xlu0 %2291
  %2293 = vrot.lane.b32.xlu0 %v101, 36
  %v2294 = vpop.permute.xlu0 %2293
  %2295 = vrot.lane.b32.xlu0 %v103, 36
  %v2296 = vpop.permute.xlu0 %2295
  %2297 = vrot.lane.b32.xlu0 %v104, 36
  %v2298 = vpop.permute.xlu0 %2297
  %2299 = vrot.lane.b32.xlu0 %v106, 36
  %v2300 = vpop.permute.xlu0 %2299
  %2301 = vrot.lane.b32.xlu0 %v107, 36
  %v2302 = vpop.permute.xlu0 %2301
  %2303 = vrot.lane.b32.xlu0 %v109, 36
  %v2304 = vpop.permute.xlu0 %2303
  %2305 = vrot.lane.b32.xlu0 %v110, 36
  %v2306 = vpop.permute.xlu0 %2305
  %2307 = vrot.lane.b32.xlu0 %v112, 36
  %v2308 = vpop.permute.xlu0 %2307
  %2309 = vrot.lane.b32.xlu0 %v113, 36
  %v2310 = vpop.permute.xlu0 %2309
  %2311 = vrot.lane.b32.xlu0 %v115, 36
  %v2312 = vpop.permute.xlu0 %2311
  %2313 = vrot.lane.b32.xlu0 %v116, 36
  %v2314 = vpop.permute.xlu0 %2313
  %2315 = vrot.lane.b32.xlu0 %v118, 36
  %v2316 = vpop.permute.xlu0 %2315
  %2317 = vrot.lane.b32.xlu0 %v119, 36
  %v2318 = vpop.permute.xlu0 %2317
  %2319 = vrot.lane.b32.xlu0 %v121, 36
  %v2320 = vpop.permute.xlu0 %2319
  %2321 = vrot.lane.b32.xlu0 %v122, 36
  %v2322 = vpop.permute.xlu0 %2321
  %2323 = vrot.lane.b32.xlu0 %v124, 36
  %v2324 = vpop.permute.xlu0 %2323
  %2325 = vrot.lane.b32.xlu0 %v125, 36
  %v2326 = vpop.permute.xlu0 %2325
  %2327 = vrot.lane.b32.xlu0 %v127, 36
  %v2328 = vpop.permute.xlu0 %2327
  %2329 = vrot.lane.b32.xlu0 %v128, 36
  %v2330 = vpop.permute.xlu0 %2329
  %2395 = vrot.lane.b32.xlu0 %v136, 40
  %v2396 = vpop.permute.xlu0 %2395
  %2397 = vrot.lane.b32.xlu0 %v137, 40
  %v2398 = vpop.permute.xlu0 %2397
  %2399 = vrot.lane.b32.xlu0 %v139, 40
  %v2400 = vpop.permute.xlu0 %2399
  %2401 = vrot.lane.b32.xlu0 %v140, 40
  %v2402 = vpop.permute.xlu0 %2401
  %2403 = vrot.lane.b32.xlu0 %v142, 40
  %v2404 = vpop.permute.xlu0 %2403
  %2405 = vrot.lane.b32.xlu0 %v143, 40
  %v2406 = vpop.permute.xlu0 %2405
  %2407 = vrot.lane.b32.xlu0 %v145, 40
  %v2408 = vpop.permute.xlu0 %2407
  %2409 = vrot.lane.b32.xlu0 %v146, 40
  %v2410 = vpop.permute.xlu0 %2409
  %2411 = vrot.lane.b32.xlu0 %v148, 40
  %v2412 = vpop.permute.xlu0 %2411
  %2413 = vrot.lane.b32.xlu0 %v149, 40
  %v2414 = vpop.permute.xlu0 %2413
  %2415 = vrot.lane.b32.xlu0 %v151, 40
  %v2416 = vpop.permute.xlu0 %2415
  %2417 = vrot.lane.b32.xlu0 %v152, 40
  %v2418 = vpop.permute.xlu0 %2417
  %2419 = vrot.lane.b32.xlu0 %v154, 40
  %v2420 = vpop.permute.xlu0 %2419
  %2421 = vrot.lane.b32.xlu0 %v155, 40
  %v2422 = vpop.permute.xlu0 %2421
  %2423 = vrot.lane.b32.xlu0 %v157, 40
  %v2424 = vpop.permute.xlu0 %2423
  %2425 = vrot.lane.b32.xlu0 %v158, 40
  %v2426 = vpop.permute.xlu0 %2425
  %2427 = vrot.lane.b32.xlu0 %v160, 40
  %v2428 = vpop.permute.xlu0 %2427
  %2429 = vrot.lane.b32.xlu0 %v161, 40
  %v2430 = vpop.permute.xlu0 %2429
  %2431 = vrot.lane.b32.xlu0 %v163, 40
  %v2432 = vpop.permute.xlu0 %2431
  %2433 = vrot.lane.b32.xlu0 %v164, 40
  %v2434 = vpop.permute.xlu0 %2433
  %2435 = vrot.lane.b32.xlu0 %v166, 40
  %v2436 = vpop.permute.xlu0 %2435
  %2437 = vrot.lane.b32.xlu0 %v167, 40
  %v2438 = vpop.permute.xlu0 %2437
  %2439 = vrot.lane.b32.xlu0 %v169, 40
  %v2440 = vpop.permute.xlu0 %2439
  %2441 = vrot.lane.b32.xlu0 %v170, 40
  %v2442 = vpop.permute.xlu0 %2441
  %2443 = vrot.lane.b32.xlu0 %v172, 40
  %v2444 = vpop.permute.xlu0 %2443
  %2445 = vrot.lane.b32.xlu0 %v173, 40
  %v2446 = vpop.permute.xlu0 %2445
  %2447 = vrot.lane.b32.xlu0 %v175, 40
  %v2448 = vpop.permute.xlu0 %2447
  %2449 = vrot.lane.b32.xlu0 %v176, 40
  %v2450 = vpop.permute.xlu0 %2449
  %2451 = vrot.lane.b32.xlu0 %v178, 40
  %v2452 = vpop.permute.xlu0 %2451
  %2453 = vrot.lane.b32.xlu0 %v179, 40
  %v2454 = vpop.permute.xlu0 %2453
  %2455 = vrot.lane.b32.xlu0 %v181, 40
  %v2456 = vpop.permute.xlu0 %2455
  %2457 = vrot.lane.b32.xlu0 %v182, 40
  %v2458 = vpop.permute.xlu0 %2457
  %2459 = vrot.lane.b32.xlu0 %v190, 40
  %v2460 = vpop.permute.xlu0 %2459
  %2461 = vrot.lane.b32.xlu0 %v191, 40
  %v2462 = vpop.permute.xlu0 %2461
  %2463 = vrot.lane.b32.xlu0 %v193, 40
  %v2464 = vpop.permute.xlu0 %2463
  %2465 = vrot.lane.b32.xlu0 %v194, 40
  %v2466 = vpop.permute.xlu0 %2465
  %2467 = vrot.lane.b32.xlu0 %v196, 40
  %v2468 = vpop.permute.xlu0 %2467
  %2469 = vrot.lane.b32.xlu0 %v197, 40
  %v2470 = vpop.permute.xlu0 %2469
  %2471 = vrot.lane.b32.xlu0 %v199, 40
  %v2472 = vpop.permute.xlu0 %2471
  %2473 = vrot.lane.b32.xlu0 %v200, 40
  %v2474 = vpop.permute.xlu0 %2473
  %2475 = vrot.lane.b32.xlu0 %v202, 40
  %v2476 = vpop.permute.xlu0 %2475
  %2477 = vrot.lane.b32.xlu0 %v203, 40
  %v2478 = vpop.permute.xlu0 %2477
  %2479 = vrot.lane.b32.xlu0 %v205, 40
  %v2480 = vpop.permute.xlu0 %2479
  %2481 = vrot.lane.b32.xlu0 %v206, 40
  %v2482 = vpop.permute.xlu0 %2481
  %2483 = vrot.lane.b32.xlu0 %v208, 40
  %v2484 = vpop.permute.xlu0 %2483
  %2485 = vrot.lane.b32.xlu0 %v209, 40
  %v2486 = vpop.permute.xlu0 %2485
  %2487 = vrot.lane.b32.xlu0 %v211, 40
  %v2488 = vpop.permute.xlu0 %2487
  %2489 = vrot.lane.b32.xlu0 %v212, 40
  %v2490 = vpop.permute.xlu0 %2489
  %2491 = vrot.lane.b32.xlu0 %v214, 40
  %v2492 = vpop.permute.xlu0 %2491
  %2493 = vrot.lane.b32.xlu0 %v215, 40
  %v2494 = vpop.permute.xlu0 %2493
  %2495 = vrot.lane.b32.xlu0 %v217, 40
  %v2496 = vpop.permute.xlu0 %2495
  %2497 = vrot.lane.b32.xlu0 %v218, 40
  %v2498 = vpop.permute.xlu0 %2497
  %2499 = vrot.lane.b32.xlu0 %v220, 40
  %v2500 = vpop.permute.xlu0 %2499
  %2501 = vrot.lane.b32.xlu0 %v221, 40
  %v2502 = vpop.permute.xlu0 %2501
  %2503 = vrot.lane.b32.xlu0 %v223, 40
  %v2504 = vpop.permute.xlu0 %2503
  %2505 = vrot.lane.b32.xlu0 %v224, 40
  %v2506 = vpop.permute.xlu0 %2505
  %2507 = vrot.lane.b32.xlu0 %v226, 40
  %v2508 = vpop.permute.xlu0 %2507
  %2509 = vrot.lane.b32.xlu0 %v227, 40
  %v2510 = vpop.permute.xlu0 %2509
  %2511 = vrot.lane.b32.xlu0 %v229, 40
  %v2512 = vpop.permute.xlu0 %2511
  %2513 = vrot.lane.b32.xlu0 %v230, 40
  %v2514 = vpop.permute.xlu0 %2513
  %2515 = vrot.lane.b32.xlu0 %v232, 40
  %v2516 = vpop.permute.xlu0 %2515
  %2517 = vrot.lane.b32.xlu0 %v233, 40
  %v2518 = vpop.permute.xlu0 %2517
  %2519 = vrot.lane.b32.xlu0 %v235, 40
  %v2520 = vpop.permute.xlu0 %2519
  %2521 = vrot.lane.b32.xlu0 %v236, 40
  %v2522 = vpop.permute.xlu0 %2521
  %2587 = vrot.lane.b32.xlu0 %v345, 48
  %v2588 = vpop.permute.xlu0 %2587
  %2589 = vrot.lane.b32.xlu0 %v347, 48
  %v2590 = vpop.permute.xlu0 %2589
  %2591 = vrot.lane.b32.xlu0 %v350, 48
  %v2592 = vpop.permute.xlu0 %2591
  %2593 = vrot.lane.b32.xlu0 %v352, 48
  %v2594 = vpop.permute.xlu0 %2593
  %2595 = vrot.lane.b32.xlu0 %v355, 48
  %v2596 = vpop.permute.xlu0 %2595
  %2597 = vrot.lane.b32.xlu0 %v357, 48
  %v2598 = vpop.permute.xlu0 %2597
  %2599 = vrot.lane.b32.xlu0 %v360, 48
  %v2600 = vpop.permute.xlu0 %2599
  %2601 = vrot.lane.b32.xlu0 %v362, 48
  %v2602 = vpop.permute.xlu0 %2601
  %2603 = vrot.lane.b32.xlu0 %v365, 48
  %v2604 = vpop.permute.xlu0 %2603
  %2605 = vrot.lane.b32.xlu0 %v367, 48
  %v2606 = vpop.permute.xlu0 %2605
  %2607 = vrot.lane.b32.xlu0 %v370, 48
  %v2608 = vpop.permute.xlu0 %2607
  %2609 = vrot.lane.b32.xlu0 %v372, 48
  %v2610 = vpop.permute.xlu0 %2609
  %2611 = vrot.lane.b32.xlu0 %v375, 48
  %v2612 = vpop.permute.xlu0 %2611
  %2613 = vrot.lane.b32.xlu0 %v377, 48
  %v2614 = vpop.permute.xlu0 %2613
  %2615 = vrot.lane.b32.xlu0 %v380, 48
  %v2616 = vpop.permute.xlu0 %2615
  %2617 = vrot.lane.b32.xlu0 %v382, 48
  %v2618 = vpop.permute.xlu0 %2617
  %2619 = vrot.lane.b32.xlu0 %v385, 48
  %v2620 = vpop.permute.xlu0 %2619
  %2621 = vrot.lane.b32.xlu0 %v387, 48
  %v2622 = vpop.permute.xlu0 %2621
  %2623 = vrot.lane.b32.xlu0 %v390, 48
  %v2624 = vpop.permute.xlu0 %2623
  %2625 = vrot.lane.b32.xlu0 %v392, 48
  %v2626 = vpop.permute.xlu0 %2625
  %2627 = vrot.lane.b32.xlu0 %v395, 48
  %v2628 = vpop.permute.xlu0 %2627
  %2629 = vrot.lane.b32.xlu0 %v397, 48
  %v2630 = vpop.permute.xlu0 %2629
  %2631 = vrot.lane.b32.xlu0 %v400, 48
  %v2632 = vpop.permute.xlu0 %2631
  %2633 = vrot.lane.b32.xlu0 %v402, 48
  %v2634 = vpop.permute.xlu0 %2633
  %2635 = vrot.lane.b32.xlu0 %v405, 48
  %v2636 = vpop.permute.xlu0 %2635
  %2637 = vrot.lane.b32.xlu0 %v407, 48
  %v2638 = vpop.permute.xlu0 %2637
  %2639 = vrot.lane.b32.xlu0 %v410, 48
  %v2640 = vpop.permute.xlu0 %2639
  %2641 = vrot.lane.b32.xlu0 %v412, 48
  %v2642 = vpop.permute.xlu0 %2641
  %2643 = vrot.lane.b32.xlu0 %v415, 48
  %v2644 = vpop.permute.xlu0 %2643
  %2645 = vrot.lane.b32.xlu0 %v417, 48
  %v2646 = vpop.permute.xlu0 %2645
  %2647 = vrot.lane.b32.xlu0 %v1083, 48
  %v2648 = vpop.permute.xlu0 %2647
  %2649 = vrot.lane.b32.xlu0 %v1085, 48
  %v2650 = vpop.permute.xlu0 %2649
  %2651 = vrot.lane.b32.xlu0 %v425, 48
  %v2652 = vpop.permute.xlu0 %2651
  %2653 = vrot.lane.b32.xlu0 %v427, 48
  %v2654 = vpop.permute.xlu0 %2653
  %2655 = vrot.lane.b32.xlu0 %v430, 48
  %v2656 = vpop.permute.xlu0 %2655
  %2657 = vrot.lane.b32.xlu0 %v432, 48
  %v2658 = vpop.permute.xlu0 %2657
  %2659 = vrot.lane.b32.xlu0 %v435, 48
  %v2660 = vpop.permute.xlu0 %2659
  %2661 = vrot.lane.b32.xlu0 %v437, 48
  %v2662 = vpop.permute.xlu0 %2661
  %2663 = vrot.lane.b32.xlu0 %v440, 48
  %v2664 = vpop.permute.xlu0 %2663
  %2665 = vrot.lane.b32.xlu0 %v442, 48
  %v2666 = vpop.permute.xlu0 %2665
  %2667 = vrot.lane.b32.xlu0 %v445, 48
  %v2668 = vpop.permute.xlu0 %2667
  %2669 = vrot.lane.b32.xlu0 %v447, 48
  %v2670 = vpop.permute.xlu0 %2669
  %2671 = vrot.lane.b32.xlu0 %v450, 48
  %v2672 = vpop.permute.xlu0 %2671
  %2673 = vrot.lane.b32.xlu0 %v452, 48
  %v2674 = vpop.permute.xlu0 %2673
  %2675 = vrot.lane.b32.xlu0 %v455, 48
  %v2676 = vpop.permute.xlu0 %2675
  %2677 = vrot.lane.b32.xlu0 %v457, 48
  %v2678 = vpop.permute.xlu0 %2677
  %2679 = vrot.lane.b32.xlu0 %v460, 48
  %v2680 = vpop.permute.xlu0 %2679
  %2681 = vrot.lane.b32.xlu0 %v462, 48
  %v2682 = vpop.permute.xlu0 %2681
  %2683 = vrot.lane.b32.xlu0 %v465, 48
  %v2684 = vpop.permute.xlu0 %2683
  %2685 = vrot.lane.b32.xlu0 %v467, 48
  %v2686 = vpop.permute.xlu0 %2685
  %2687 = vrot.lane.b32.xlu0 %v470, 48
  %v2688 = vpop.permute.xlu0 %2687
  %2689 = vrot.lane.b32.xlu0 %v472, 48
  %v2690 = vpop.permute.xlu0 %2689
  %2691 = vrot.lane.b32.xlu0 %v475, 48
  %v2692 = vpop.permute.xlu0 %2691
  %2693 = vrot.lane.b32.xlu0 %v477, 48
  %v2694 = vpop.permute.xlu0 %2693
  %2695 = vrot.lane.b32.xlu0 %v480, 48
  %v2696 = vpop.permute.xlu0 %2695
  %2697 = vrot.lane.b32.xlu0 %v482, 48
  %v2698 = vpop.permute.xlu0 %2697
  %2699 = vrot.lane.b32.xlu0 %v485, 48
  %v2700 = vpop.permute.xlu0 %2699
  %2701 = vrot.lane.b32.xlu0 %v487, 48
  %v2702 = vpop.permute.xlu0 %2701
  %2703 = vrot.lane.b32.xlu0 %v490, 48
  %v2704 = vpop.permute.xlu0 %2703
  %2705 = vrot.lane.b32.xlu0 %v492, 48
  %v2706 = vpop.permute.xlu0 %2705
  %2707 = vrot.lane.b32.xlu0 %v495, 48
  %v2708 = vpop.permute.xlu0 %2707
  %2709 = vrot.lane.b32.xlu0 %v497, 48
  %v2710 = vpop.permute.xlu0 %2709
  %2711 = vrot.lane.b32.xlu0 %v1088, 48
  %v2712 = vpop.permute.xlu0 %2711
  %2713 = vrot.lane.b32.xlu0 %v1090, 48
  %v2714 = vpop.permute.xlu0 %2713
  %2779 = vrot.lane.b32.xlu0 %v601, 52
  %v2780 = vpop.permute.xlu0 %2779
  %2781 = vrot.lane.b32.xlu0 %v603, 52
  %v2782 = vpop.permute.xlu0 %2781
  %2783 = vrot.lane.b32.xlu0 %v606, 52
  %v2784 = vpop.permute.xlu0 %2783
  %2785 = vrot.lane.b32.xlu0 %v608, 52
  %v2786 = vpop.permute.xlu0 %2785
  %2787 = vrot.lane.b32.xlu0 %v611, 52
  %v2788 = vpop.permute.xlu0 %2787
  %2789 = vrot.lane.b32.xlu0 %v613, 52
  %v2790 = vpop.permute.xlu0 %2789
  %2791 = vrot.lane.b32.xlu0 %v616, 52
  %v2792 = vpop.permute.xlu0 %2791
  %2793 = vrot.lane.b32.xlu0 %v618, 52
  %v2794 = vpop.permute.xlu0 %2793
  %2795 = vrot.lane.b32.xlu0 %v621, 52
  %v2796 = vpop.permute.xlu0 %2795
  %2797 = vrot.lane.b32.xlu0 %v623, 52
  %v2798 = vpop.permute.xlu0 %2797
  %2799 = vrot.lane.b32.xlu0 %v626, 52
  %v2800 = vpop.permute.xlu0 %2799
  %2801 = vrot.lane.b32.xlu0 %v628, 52
  %v2802 = vpop.permute.xlu0 %2801
  %2803 = vrot.lane.b32.xlu0 %v631, 52
  %v2804 = vpop.permute.xlu0 %2803
  %2805 = vrot.lane.b32.xlu0 %v633, 52
  %v2806 = vpop.permute.xlu0 %2805
  %2807 = vrot.lane.b32.xlu0 %v636, 52
  %v2808 = vpop.permute.xlu0 %2807
  %2809 = vrot.lane.b32.xlu0 %v638, 52
  %v2810 = vpop.permute.xlu0 %2809
  %2811 = vrot.lane.b32.xlu0 %v641, 52
  %v2812 = vpop.permute.xlu0 %2811
  %2813 = vrot.lane.b32.xlu0 %v643, 52
  %v2814 = vpop.permute.xlu0 %2813
  %2815 = vrot.lane.b32.xlu0 %v646, 52
  %v2816 = vpop.permute.xlu0 %2815
  %2817 = vrot.lane.b32.xlu0 %v648, 52
  %v2818 = vpop.permute.xlu0 %2817
  %2819 = vrot.lane.b32.xlu0 %v651, 52
  %v2820 = vpop.permute.xlu0 %2819
  %2821 = vrot.lane.b32.xlu0 %v653, 52
  %v2822 = vpop.permute.xlu0 %2821
  %2823 = vrot.lane.b32.xlu0 %v656, 52
  %v2824 = vpop.permute.xlu0 %2823
  %2825 = vrot.lane.b32.xlu0 %v658, 52
  %v2826 = vpop.permute.xlu0 %2825
  %2827 = vrot.lane.b32.xlu0 %v661, 52
  %v2828 = vpop.permute.xlu0 %2827
  %2829 = vrot.lane.b32.xlu0 %v663, 52
  %v2830 = vpop.permute.xlu0 %2829
  %2831 = vrot.lane.b32.xlu0 %v666, 52
  %v2832 = vpop.permute.xlu0 %2831
  %2833 = vrot.lane.b32.xlu0 %v668, 52
  %v2834 = vpop.permute.xlu0 %2833
  %2835 = vrot.lane.b32.xlu0 %v671, 52
  %v2836 = vpop.permute.xlu0 %2835
  %2837 = vrot.lane.b32.xlu0 %v673, 52
  %v2838 = vpop.permute.xlu0 %2837
  %2839 = vrot.lane.b32.xlu0 %v1099, 52
  %v2840 = vpop.permute.xlu0 %2839
  %2841 = vrot.lane.b32.xlu0 %v1101, 52
  %v2842 = vpop.permute.xlu0 %2841
  %2843 = vrot.lane.b32.xlu0 %v681, 52
  %v2844 = vpop.permute.xlu0 %2843
  %2845 = vrot.lane.b32.xlu0 %v683, 52
  %v2846 = vpop.permute.xlu0 %2845
  %2847 = vrot.lane.b32.xlu0 %v686, 52
  %v2848 = vpop.permute.xlu0 %2847
  %2849 = vrot.lane.b32.xlu0 %v688, 52
  %v2850 = vpop.permute.xlu0 %2849
  %2851 = vrot.lane.b32.xlu0 %v691, 52
  %v2852 = vpop.permute.xlu0 %2851
  %2853 = vrot.lane.b32.xlu0 %v693, 52
  %v2854 = vpop.permute.xlu0 %2853
  %2855 = vrot.lane.b32.xlu0 %v696, 52
  %v2856 = vpop.permute.xlu0 %2855
  %2857 = vrot.lane.b32.xlu0 %v698, 52
  %v2858 = vpop.permute.xlu0 %2857
  %2859 = vrot.lane.b32.xlu0 %v701, 52
  %v2860 = vpop.permute.xlu0 %2859
  %2861 = vrot.lane.b32.xlu0 %v703, 52
  %v2862 = vpop.permute.xlu0 %2861
  %2863 = vrot.lane.b32.xlu0 %v706, 52
  %v2864 = vpop.permute.xlu0 %2863
  %2865 = vrot.lane.b32.xlu0 %v708, 52
  %v2866 = vpop.permute.xlu0 %2865
  %2867 = vrot.lane.b32.xlu0 %v711, 52
  %v2868 = vpop.permute.xlu0 %2867
  %2869 = vrot.lane.b32.xlu0 %v713, 52
  %v2870 = vpop.permute.xlu0 %2869
  %2871 = vrot.lane.b32.xlu0 %v716, 52
  %v2872 = vpop.permute.xlu0 %2871
  %2873 = vrot.lane.b32.xlu0 %v718, 52
  %v2874 = vpop.permute.xlu0 %2873
  %2875 = vrot.lane.b32.xlu0 %v721, 52
  %v2876 = vpop.permute.xlu0 %2875
  %2877 = vrot.lane.b32.xlu0 %v723, 52
  %v2878 = vpop.permute.xlu0 %2877
  %2879 = vrot.lane.b32.xlu0 %v726, 52
  %v2880 = vpop.permute.xlu0 %2879
  %2881 = vrot.lane.b32.xlu0 %v728, 52
  %v2882 = vpop.permute.xlu0 %2881
  %2883 = vrot.lane.b32.xlu0 %v731, 52
  %v2884 = vpop.permute.xlu0 %2883
  %2885 = vrot.lane.b32.xlu0 %v733, 52
  %v2886 = vpop.permute.xlu0 %2885
  %2887 = vrot.lane.b32.xlu0 %v736, 52
  %v2888 = vpop.permute.xlu0 %2887
  %2889 = vrot.lane.b32.xlu0 %v738, 52
  %v2890 = vpop.permute.xlu0 %2889
  %2891 = vrot.lane.b32.xlu0 %v741, 52
  %v2892 = vpop.permute.xlu0 %2891
  %2893 = vrot.lane.b32.xlu0 %v743, 52
  %v2894 = vpop.permute.xlu0 %2893
  %2895 = vrot.lane.b32.xlu0 %v746, 52
  %v2896 = vpop.permute.xlu0 %2895
  %2897 = vrot.lane.b32.xlu0 %v748, 52
  %v2898 = vpop.permute.xlu0 %2897
  %2899 = vrot.lane.b32.xlu0 %v751, 52
  %v2900 = vpop.permute.xlu0 %2899
  %2901 = vrot.lane.b32.xlu0 %v753, 52
  %v2902 = vpop.permute.xlu0 %2901
  %2903 = vrot.lane.b32.xlu0 %v1104, 52
  %v2904 = vpop.permute.xlu0 %2903
  %2905 = vrot.lane.b32.xlu0 %v1106, 52
  %v2906 = vpop.permute.xlu0 %2905
  %2971 = vrot.lane.b32.xlu0 %v762, 60
  %v2972 = vpop.permute.xlu0 %2971
  %2973 = vrot.lane.b32.xlu0 %v764, 60
  %v2974 = vpop.permute.xlu0 %2973
  %2975 = vrot.lane.b32.xlu0 %v767, 60
  %v2976 = vpop.permute.xlu0 %2975
  %2977 = vrot.lane.b32.xlu0 %v769, 60
  %v2978 = vpop.permute.xlu0 %2977
  %2979 = vrot.lane.b32.xlu0 %v772, 60
  %v2980 = vpop.permute.xlu0 %2979
  %2981 = vrot.lane.b32.xlu0 %v774, 60
  %v2982 = vpop.permute.xlu0 %2981
  %2983 = vrot.lane.b32.xlu0 %v777, 60
  %v2984 = vpop.permute.xlu0 %2983
  %2985 = vrot.lane.b32.xlu0 %v779, 60
  %v2986 = vpop.permute.xlu0 %2985
  %2987 = vrot.lane.b32.xlu0 %v782, 60
  %v2988 = vpop.permute.xlu0 %2987
  %2989 = vrot.lane.b32.xlu0 %v784, 60
  %v2990 = vpop.permute.xlu0 %2989
  %2991 = vrot.lane.b32.xlu0 %v787, 60
  %v2992 = vpop.permute.xlu0 %2991
  %2993 = vrot.lane.b32.xlu0 %v789, 60
  %v2994 = vpop.permute.xlu0 %2993
  %2995 = vrot.lane.b32.xlu0 %v792, 60
  %v2996 = vpop.permute.xlu0 %2995
  %2997 = vrot.lane.b32.xlu0 %v794, 60
  %v2998 = vpop.permute.xlu0 %2997
  %2999 = vrot.lane.b32.xlu0 %v797, 60
  %v3000 = vpop.permute.xlu0 %2999
  %3001 = vrot.lane.b32.xlu0 %v799, 60
  %v3002 = vpop.permute.xlu0 %3001
  %3003 = vrot.lane.b32.xlu0 %v802, 60
  %v3004 = vpop.permute.xlu0 %3003
  %3005 = vrot.lane.b32.xlu0 %v804, 60
  %v3006 = vpop.permute.xlu0 %3005
  %3007 = vrot.lane.b32.xlu0 %v807, 60
  %v3008 = vpop.permute.xlu0 %3007
  %3009 = vrot.lane.b32.xlu0 %v809, 60
  %v3010 = vpop.permute.xlu0 %3009
  %3011 = vrot.lane.b32.xlu0 %v812, 60
  %v3012 = vpop.permute.xlu0 %3011
  %3013 = vrot.lane.b32.xlu0 %v814, 60
  %v3014 = vpop.permute.xlu0 %3013
  %3015 = vrot.lane.b32.xlu0 %v817, 60
  %v3016 = vpop.permute.xlu0 %3015
  %3017 = vrot.lane.b32.xlu0 %v819, 60
  %v3018 = vpop.permute.xlu0 %3017
  %3019 = vrot.lane.b32.xlu0 %v822, 60
  %v3020 = vpop.permute.xlu0 %3019
  %3021 = vrot.lane.b32.xlu0 %v824, 60
  %v3022 = vpop.permute.xlu0 %3021
  %3023 = vrot.lane.b32.xlu0 %v827, 60
  %v3024 = vpop.permute.xlu0 %3023
  %3025 = vrot.lane.b32.xlu0 %v829, 60
  %v3026 = vpop.permute.xlu0 %3025
  %3027 = vrot.lane.b32.xlu0 %v832, 60
  %v3028 = vpop.permute.xlu0 %3027
  %3029 = vrot.lane.b32.xlu0 %v834, 60
  %v3030 = vpop.permute.xlu0 %3029
  %3031 = vrot.lane.b32.xlu0 %v1109, 60
  %v3032 = vpop.permute.xlu0 %3031
  %3033 = vrot.lane.b32.xlu0 %v1111, 60
  %v3034 = vpop.permute.xlu0 %3033
  %3035 = vrot.lane.b32.xlu0 %v842, 60
  %v3036 = vpop.permute.xlu0 %3035
  %3037 = vrot.lane.b32.xlu0 %v844, 60
  %v3038 = vpop.permute.xlu0 %3037
  %3039 = vrot.lane.b32.xlu0 %v847, 60
  %v3040 = vpop.permute.xlu0 %3039
  %3041 = vrot.lane.b32.xlu0 %v849, 60
  %v3042 = vpop.permute.xlu0 %3041
  %3043 = vrot.lane.b32.xlu0 %v852, 60
  %v3044 = vpop.permute.xlu0 %3043
  %3045 = vrot.lane.b32.xlu0 %v854, 60
  %v3046 = vpop.permute.xlu0 %3045
  %3047 = vrot.lane.b32.xlu0 %v857, 60
  %v3048 = vpop.permute.xlu0 %3047
  %3049 = vrot.lane.b32.xlu0 %v859, 60
  %v3050 = vpop.permute.xlu0 %3049
  %3051 = vrot.lane.b32.xlu0 %v862, 60
  %v3052 = vpop.permute.xlu0 %3051
  %3053 = vrot.lane.b32.xlu0 %v864, 60
  %v3054 = vpop.permute.xlu0 %3053
  %3055 = vrot.lane.b32.xlu0 %v867, 60
  %v3056 = vpop.permute.xlu0 %3055
  %3057 = vrot.lane.b32.xlu0 %v869, 60
  %v3058 = vpop.permute.xlu0 %3057
  %3059 = vrot.lane.b32.xlu0 %v872, 60
  %v3060 = vpop.permute.xlu0 %3059
  %3061 = vrot.lane.b32.xlu0 %v874, 60
  %v3062 = vpop.permute.xlu0 %3061
  %3063 = vrot.lane.b32.xlu0 %v877, 60
  %v3064 = vpop.permute.xlu0 %3063
  %3065 = vrot.lane.b32.xlu0 %v879, 60
  %v3066 = vpop.permute.xlu0 %3065
  %3067 = vrot.lane.b32.xlu0 %v882, 60
  %v3068 = vpop.permute.xlu0 %3067
  %3069 = vrot.lane.b32.xlu0 %v884, 60
  %v3070 = vpop.permute.xlu0 %3069
  %3071 = vrot.lane.b32.xlu0 %v887, 60
  %v3072 = vpop.permute.xlu0 %3071
  %3073 = vrot.lane.b32.xlu0 %v889, 60
  %v3074 = vpop.permute.xlu0 %3073
  %3075 = vrot.lane.b32.xlu0 %v892, 60
  %v3076 = vpop.permute.xlu0 %3075
  %3077 = vrot.lane.b32.xlu0 %v894, 60
  %v3078 = vpop.permute.xlu0 %3077
  %3079 = vrot.lane.b32.xlu0 %v897, 60
  %v3080 = vpop.permute.xlu0 %3079
  %3081 = vrot.lane.b32.xlu0 %v899, 60
  %v3082 = vpop.permute.xlu0 %3081
  %3083 = vrot.lane.b32.xlu0 %v902, 60
  %v3084 = vpop.permute.xlu0 %3083
  %3085 = vrot.lane.b32.xlu0 %v904, 60
  %v3086 = vpop.permute.xlu0 %3085
  %3087 = vrot.lane.b32.xlu0 %v907, 60
  %v3088 = vpop.permute.xlu0 %3087
  %3089 = vrot.lane.b32.xlu0 %v909, 60
  %v3090 = vpop.permute.xlu0 %3089
  %3091 = vrot.lane.b32.xlu0 %v912, 60
  %v3092 = vpop.permute.xlu0 %3091
  %3093 = vrot.lane.b32.xlu0 %v914, 60
  %v3094 = vpop.permute.xlu0 %3093
  %3095 = vrot.lane.b32.xlu0 %v1114, 60
  %v3096 = vpop.permute.xlu0 %3095
  %3097 = vrot.lane.b32.xlu0 %v1116, 60
  %v3098 = vpop.permute.xlu0 %3097
  %3163 = vrot.lane.b32.xlu0 %v922, 64
  %v3164 = vpop.permute.xlu0 %3163
  %3165 = vrot.lane.b32.xlu0 %v924, 64
  %v3166 = vpop.permute.xlu0 %3165
  %3167 = vrot.lane.b32.xlu0 %v927, 64
  %v3168 = vpop.permute.xlu0 %3167
  %3169 = vrot.lane.b32.xlu0 %v929, 64
  %v3170 = vpop.permute.xlu0 %3169
  %3171 = vrot.lane.b32.xlu0 %v932, 64
  %v3172 = vpop.permute.xlu0 %3171
  %3173 = vrot.lane.b32.xlu0 %v934, 64
  %v3174 = vpop.permute.xlu0 %3173
  %3175 = vrot.lane.b32.xlu0 %v937, 64
  %v3176 = vpop.permute.xlu0 %3175
  %3177 = vrot.lane.b32.xlu0 %v939, 64
  %v3178 = vpop.permute.xlu0 %3177
  %3179 = vrot.lane.b32.xlu0 %v942, 64
  %v3180 = vpop.permute.xlu0 %3179
  %3181 = vrot.lane.b32.xlu0 %v944, 64
  %v3182 = vpop.permute.xlu0 %3181
  %3183 = vrot.lane.b32.xlu0 %v947, 64
  %v3184 = vpop.permute.xlu0 %3183
  %3185 = vrot.lane.b32.xlu0 %v949, 64
  %v3186 = vpop.permute.xlu0 %3185
  %3187 = vrot.lane.b32.xlu0 %v952, 64
  %v3188 = vpop.permute.xlu0 %3187
  %3189 = vrot.lane.b32.xlu0 %v954, 64
  %v3190 = vpop.permute.xlu0 %3189
  %3191 = vrot.lane.b32.xlu0 %v957, 64
  %v3192 = vpop.permute.xlu0 %3191
  %3193 = vrot.lane.b32.xlu0 %v959, 64
  %v3194 = vpop.permute.xlu0 %3193
  %3195 = vrot.lane.b32.xlu0 %v962, 64
  %v3196 = vpop.permute.xlu0 %3195
  %3197 = vrot.lane.b32.xlu0 %v964, 64
  %v3198 = vpop.permute.xlu0 %3197
  %3199 = vrot.lane.b32.xlu0 %v967, 64
  %v3200 = vpop.permute.xlu0 %3199
  %3201 = vrot.lane.b32.xlu0 %v969, 64
  %v3202 = vpop.permute.xlu0 %3201
  %3203 = vrot.lane.b32.xlu0 %v972, 64
  %v3204 = vpop.permute.xlu0 %3203
  %3205 = vrot.lane.b32.xlu0 %v974, 64
  %v3206 = vpop.permute.xlu0 %3205
  %3207 = vrot.lane.b32.xlu0 %v977, 64
  %v3208 = vpop.permute.xlu0 %3207
  %3209 = vrot.lane.b32.xlu0 %v979, 64
  %v3210 = vpop.permute.xlu0 %3209
  %3211 = vrot.lane.b32.xlu0 %v982, 64
  %v3212 = vpop.permute.xlu0 %3211
  %3213 = vrot.lane.b32.xlu0 %v984, 64
  %v3214 = vpop.permute.xlu0 %3213
  %3215 = vrot.lane.b32.xlu0 %v987, 64
  %v3216 = vpop.permute.xlu0 %3215
  %3217 = vrot.lane.b32.xlu0 %v989, 64
  %v3218 = vpop.permute.xlu0 %3217
  %3219 = vrot.lane.b32.xlu0 %v992, 64
  %v3220 = vpop.permute.xlu0 %3219
  %3221 = vrot.lane.b32.xlu0 %v994, 64
  %v3222 = vpop.permute.xlu0 %3221
  %3223 = vrot.lane.b32.xlu0 %v1119, 64
  %v3224 = vpop.permute.xlu0 %3223
  %3225 = vrot.lane.b32.xlu0 %v1121, 64
  %v3226 = vpop.permute.xlu0 %3225
  %3227 = vrot.lane.b32.xlu0 %v1002, 64
  %v3228 = vpop.permute.xlu0 %3227
  %3229 = vrot.lane.b32.xlu0 %v1004, 64
  %v3230 = vpop.permute.xlu0 %3229
  %3231 = vrot.lane.b32.xlu0 %v1007, 64
  %v3232 = vpop.permute.xlu0 %3231
  %3233 = vrot.lane.b32.xlu0 %v1009, 64
  %v3234 = vpop.permute.xlu0 %3233
  %3235 = vrot.lane.b32.xlu0 %v1012, 64
  %v3236 = vpop.permute.xlu0 %3235
  %3237 = vrot.lane.b32.xlu0 %v1014, 64
  %v3238 = vpop.permute.xlu0 %3237
  %3239 = vrot.lane.b32.xlu0 %v1017, 64
  %v3240 = vpop.permute.xlu0 %3239
  %3241 = vrot.lane.b32.xlu0 %v1019, 64
  %v3242 = vpop.permute.xlu0 %3241
  %3243 = vrot.lane.b32.xlu0 %v1022, 64
  %v3244 = vpop.permute.xlu0 %3243
  %3245 = vrot.lane.b32.xlu0 %v1024, 64
  %v3246 = vpop.permute.xlu0 %3245
  %3247 = vrot.lane.b32.xlu0 %v1027, 64
  %v3248 = vpop.permute.xlu0 %3247
  %3249 = vrot.lane.b32.xlu0 %v1029, 64
  %v3250 = vpop.permute.xlu0 %3249
  %3251 = vrot.lane.b32.xlu0 %v1032, 64
  %v3252 = vpop.permute.xlu0 %3251
  %3253 = vrot.lane.b32.xlu0 %v1034, 64
  %v3254 = vpop.permute.xlu0 %3253
  %3255 = vrot.lane.b32.xlu0 %v1037, 64
  %v3256 = vpop.permute.xlu0 %3255
  %3257 = vrot.lane.b32.xlu0 %v1039, 64
  %v3258 = vpop.permute.xlu0 %3257
  %3259 = vrot.lane.b32.xlu0 %v1042, 64
  %v3260 = vpop.permute.xlu0 %3259
  %3261 = vrot.lane.b32.xlu0 %v1044, 64
  %v3262 = vpop.permute.xlu0 %3261
  %3263 = vrot.lane.b32.xlu0 %v1047, 64
  %v3264 = vpop.permute.xlu0 %3263
  %3265 = vrot.lane.b32.xlu0 %v1049, 64
  %v3266 = vpop.permute.xlu0 %3265
  %3267 = vrot.lane.b32.xlu0 %v1052, 64
  %v3268 = vpop.permute.xlu0 %3267
  %3269 = vrot.lane.b32.xlu0 %v1054, 64
  %v3270 = vpop.permute.xlu0 %3269
  %3271 = vrot.lane.b32.xlu0 %v1057, 64
  %v3272 = vpop.permute.xlu0 %3271
  %3273 = vrot.lane.b32.xlu0 %v1059, 64
  %v3274 = vpop.permute.xlu0 %3273
  %3275 = vrot.lane.b32.xlu0 %v1062, 64
  %v3276 = vpop.permute.xlu0 %3275
  %3277 = vrot.lane.b32.xlu0 %v1064, 64
  %v3278 = vpop.permute.xlu0 %3277
  %3279 = vrot.lane.b32.xlu0 %v1067, 64
  %v3280 = vpop.permute.xlu0 %3279
  %3281 = vrot.lane.b32.xlu0 %v1069, 64
  %v3282 = vpop.permute.xlu0 %3281
  %3283 = vrot.lane.b32.xlu0 %v1072, 64
  %v3284 = vpop.permute.xlu0 %3283
  %3285 = vrot.lane.b32.xlu0 %v1074, 64
  %v3286 = vpop.permute.xlu0 %3285
  %3287 = vrot.lane.b32.xlu0 %v1124, 64
  %v3288 = vpop.permute.xlu0 %3287
  %3289 = vrot.lane.b32.xlu0 %v1126, 64
  %v3290 = vpop.permute.xlu0 %3289
  %3355 = vrot.lane.b32.xlu0 %v31, 72
  %v3356 = vpop.permute.xlu0 %3355
  %3357 = vrot.lane.b32.xlu0 %v32, 72
  %v3358 = vpop.permute.xlu0 %3357
  %3359 = vrot.lane.b32.xlu0 %v34, 72
  %v3360 = vpop.permute.xlu0 %3359
  %3361 = vrot.lane.b32.xlu0 %v35, 72
  %v3362 = vpop.permute.xlu0 %3361
  %3363 = vrot.lane.b32.xlu0 %v37, 72
  %v3364 = vpop.permute.xlu0 %3363
  %3365 = vrot.lane.b32.xlu0 %v38, 72
  %v3366 = vpop.permute.xlu0 %3365
  %3367 = vrot.lane.b32.xlu0 %v40, 72
  %v3368 = vpop.permute.xlu0 %3367
  %3369 = vrot.lane.b32.xlu0 %v41, 72
  %v3370 = vpop.permute.xlu0 %3369
  %3371 = vrot.lane.b32.xlu0 %v43, 72
  %v3372 = vpop.permute.xlu0 %3371
  %3373 = vrot.lane.b32.xlu0 %v44, 72
  %v3374 = vpop.permute.xlu0 %3373
  %3375 = vrot.lane.b32.xlu0 %v46, 72
  %v3376 = vpop.permute.xlu0 %3375
  %3377 = vrot.lane.b32.xlu0 %v47, 72
  %v3378 = vpop.permute.xlu0 %3377
  %3379 = vrot.lane.b32.xlu0 %v49, 72
  %v3380 = vpop.permute.xlu0 %3379
  %3381 = vrot.lane.b32.xlu0 %v50, 72
  %v3382 = vpop.permute.xlu0 %3381
  %3383 = vrot.lane.b32.xlu0 %v52, 72
  %v3384 = vpop.permute.xlu0 %3383
  %3385 = vrot.lane.b32.xlu0 %v53, 72
  %v3386 = vpop.permute.xlu0 %3385
  %3387 = vrot.lane.b32.xlu0 %v55, 72
  %v3388 = vpop.permute.xlu0 %3387
  %3389 = vrot.lane.b32.xlu0 %v56, 72
  %v3390 = vpop.permute.xlu0 %3389
  %3391 = vrot.lane.b32.xlu0 %v58, 72
  %v3392 = vpop.permute.xlu0 %3391
  %3393 = vrot.lane.b32.xlu0 %v59, 72
  %v3394 = vpop.permute.xlu0 %3393
  %3395 = vrot.lane.b32.xlu0 %v61, 72
  %v3396 = vpop.permute.xlu0 %3395
  %3397 = vrot.lane.b32.xlu0 %v62, 72
  %v3398 = vpop.permute.xlu0 %3397
  %3399 = vrot.lane.b32.xlu0 %v64, 72
  %v3400 = vpop.permute.xlu0 %3399
  %3401 = vrot.lane.b32.xlu0 %v65, 72
  %v3402 = vpop.permute.xlu0 %3401
  %3403 = vrot.lane.b32.xlu0 %v67, 72
  %v3404 = vpop.permute.xlu0 %3403
  %3405 = vrot.lane.b32.xlu0 %v68, 72
  %v3406 = vpop.permute.xlu0 %3405
  %3407 = vrot.lane.b32.xlu0 %v70, 72
  %v3408 = vpop.permute.xlu0 %3407
  %3409 = vrot.lane.b32.xlu0 %v71, 72
  %v3410 = vpop.permute.xlu0 %3409
  %3411 = vrot.lane.b32.xlu0 %v73, 72
  %v3412 = vpop.permute.xlu0 %3411
  %3413 = vrot.lane.b32.xlu0 %v74, 72
  %v3414 = vpop.permute.xlu0 %3413
  %3415 = vrot.lane.b32.xlu0 %v76, 72
  %v3416 = vpop.permute.xlu0 %3415
  %3417 = vrot.lane.b32.xlu0 %v77, 72
  %v3418 = vpop.permute.xlu0 %3417
  %3419 = vrot.lane.b32.xlu0 %v85, 72
  %v3420 = vpop.permute.xlu0 %3419
  %3421 = vrot.lane.b32.xlu0 %v86, 72
  %v3422 = vpop.permute.xlu0 %3421
  %3423 = vrot.lane.b32.xlu0 %v88, 72
  %v3424 = vpop.permute.xlu0 %3423
  %3425 = vrot.lane.b32.xlu0 %v89, 72
  %v3426 = vpop.permute.xlu0 %3425
  %3427 = vrot.lane.b32.xlu0 %v91, 72
  %v3428 = vpop.permute.xlu0 %3427
  %3429 = vrot.lane.b32.xlu0 %v92, 72
  %v3430 = vpop.permute.xlu0 %3429
  %3431 = vrot.lane.b32.xlu0 %v94, 72
  %v3432 = vpop.permute.xlu0 %3431
  %3433 = vrot.lane.b32.xlu0 %v95, 72
  %v3434 = vpop.permute.xlu0 %3433
  %3435 = vrot.lane.b32.xlu0 %v97, 72
  %v3436 = vpop.permute.xlu0 %3435
  %3437 = vrot.lane.b32.xlu0 %v98, 72
  %v3438 = vpop.permute.xlu0 %3437
  %3439 = vrot.lane.b32.xlu0 %v100, 72
  %v3440 = vpop.permute.xlu0 %3439
  %3441 = vrot.lane.b32.xlu0 %v101, 72
  %v3442 = vpop.permute.xlu0 %3441
  %3443 = vrot.lane.b32.xlu0 %v103, 72
  %v3444 = vpop.permute.xlu0 %3443
  %3445 = vrot.lane.b32.xlu0 %v104, 72
  %v3446 = vpop.permute.xlu0 %3445
  %3447 = vrot.lane.b32.xlu0 %v106, 72
  %v3448 = vpop.permute.xlu0 %3447
  %3449 = vrot.lane.b32.xlu0 %v107, 72
  %v3450 = vpop.permute.xlu0 %3449
  %3451 = vrot.lane.b32.xlu0 %v109, 72
  %v3452 = vpop.permute.xlu0 %3451
  %3453 = vrot.lane.b32.xlu0 %v110, 72
  %v3454 = vpop.permute.xlu0 %3453
  %3455 = vrot.lane.b32.xlu0 %v112, 72
  %v3456 = vpop.permute.xlu0 %3455
  %3457 = vrot.lane.b32.xlu0 %v113, 72
  %v3458 = vpop.permute.xlu0 %3457
  %3459 = vrot.lane.b32.xlu0 %v115, 72
  %v3460 = vpop.permute.xlu0 %3459
  %3461 = vrot.lane.b32.xlu0 %v116, 72
  %v3462 = vpop.permute.xlu0 %3461
  %3463 = vrot.lane.b32.xlu0 %v118, 72
  %v3464 = vpop.permute.xlu0 %3463
  %3465 = vrot.lane.b32.xlu0 %v119, 72
  %v3466 = vpop.permute.xlu0 %3465
  %3467 = vrot.lane.b32.xlu0 %v121, 72
  %v3468 = vpop.permute.xlu0 %3467
  %3469 = vrot.lane.b32.xlu0 %v122, 72
  %v3470 = vpop.permute.xlu0 %3469
  %3471 = vrot.lane.b32.xlu0 %v124, 72
  %v3472 = vpop.permute.xlu0 %3471
  %3473 = vrot.lane.b32.xlu0 %v125, 72
  %v3474 = vpop.permute.xlu0 %3473
  %3475 = vrot.lane.b32.xlu0 %v127, 72
  %v3476 = vpop.permute.xlu0 %3475
  %3477 = vrot.lane.b32.xlu0 %v128, 72
  %v3478 = vpop.permute.xlu0 %3477
  %3479 = vrot.lane.b32.xlu0 %v130, 72
  %v3480 = vpop.permute.xlu0 %3479
  %3481 = vrot.lane.b32.xlu0 %v131, 72
  %v3482 = vpop.permute.xlu0 %3481
  %3547 = vrot.lane.b32.xlu0 %v139, 76
  %v3548 = vpop.permute.xlu0 %3547
  %3549 = vrot.lane.b32.xlu0 %v140, 76
  %v3550 = vpop.permute.xlu0 %3549
  %3551 = vrot.lane.b32.xlu0 %v142, 76
  %v3552 = vpop.permute.xlu0 %3551
  %3553 = vrot.lane.b32.xlu0 %v143, 76
  %v3554 = vpop.permute.xlu0 %3553
  %3555 = vrot.lane.b32.xlu0 %v145, 76
  %v3556 = vpop.permute.xlu0 %3555
  %3557 = vrot.lane.b32.xlu0 %v146, 76
  %v3558 = vpop.permute.xlu0 %3557
  %3559 = vrot.lane.b32.xlu0 %v148, 76
  %v3560 = vpop.permute.xlu0 %3559
  %3561 = vrot.lane.b32.xlu0 %v149, 76
  %v3562 = vpop.permute.xlu0 %3561
  %3563 = vrot.lane.b32.xlu0 %v151, 76
  %v3564 = vpop.permute.xlu0 %3563
  %3565 = vrot.lane.b32.xlu0 %v152, 76
  %v3566 = vpop.permute.xlu0 %3565
  %3567 = vrot.lane.b32.xlu0 %v154, 76
  %v3568 = vpop.permute.xlu0 %3567
  %3569 = vrot.lane.b32.xlu0 %v155, 76
  %v3570 = vpop.permute.xlu0 %3569
  %3571 = vrot.lane.b32.xlu0 %v157, 76
  %v3572 = vpop.permute.xlu0 %3571
  %3573 = vrot.lane.b32.xlu0 %v158, 76
  %v3574 = vpop.permute.xlu0 %3573
  %3575 = vrot.lane.b32.xlu0 %v160, 76
  %v3576 = vpop.permute.xlu0 %3575
  %3577 = vrot.lane.b32.xlu0 %v161, 76
  %v3578 = vpop.permute.xlu0 %3577
  %3579 = vrot.lane.b32.xlu0 %v163, 76
  %v3580 = vpop.permute.xlu0 %3579
  %3581 = vrot.lane.b32.xlu0 %v164, 76
  %v3582 = vpop.permute.xlu0 %3581
  %3583 = vrot.lane.b32.xlu0 %v166, 76
  %v3584 = vpop.permute.xlu0 %3583
  %3585 = vrot.lane.b32.xlu0 %v167, 76
  %v3586 = vpop.permute.xlu0 %3585
  %3587 = vrot.lane.b32.xlu0 %v169, 76
  %v3588 = vpop.permute.xlu0 %3587
  %3589 = vrot.lane.b32.xlu0 %v170, 76
  %v3590 = vpop.permute.xlu0 %3589
  %3591 = vrot.lane.b32.xlu0 %v172, 76
  %v3592 = vpop.permute.xlu0 %3591
  %3593 = vrot.lane.b32.xlu0 %v173, 76
  %v3594 = vpop.permute.xlu0 %3593
  %3595 = vrot.lane.b32.xlu0 %v175, 76
  %v3596 = vpop.permute.xlu0 %3595
  %3597 = vrot.lane.b32.xlu0 %v176, 76
  %v3598 = vpop.permute.xlu0 %3597
  %3599 = vrot.lane.b32.xlu0 %v178, 76
  %v3600 = vpop.permute.xlu0 %3599
  %3601 = vrot.lane.b32.xlu0 %v179, 76
  %v3602 = vpop.permute.xlu0 %3601
  %3603 = vrot.lane.b32.xlu0 %v181, 76
  %v3604 = vpop.permute.xlu0 %3603
  %3605 = vrot.lane.b32.xlu0 %v182, 76
  %v3606 = vpop.permute.xlu0 %3605
  %3607 = vrot.lane.b32.xlu0 %v184, 76
  %v3608 = vpop.permute.xlu0 %3607
  %3609 = vrot.lane.b32.xlu0 %v185, 76
  %v3610 = vpop.permute.xlu0 %3609
  %3611 = vrot.lane.b32.xlu0 %v193, 76
  %v3612 = vpop.permute.xlu0 %3611
  %3613 = vrot.lane.b32.xlu0 %v194, 76
  %v3614 = vpop.permute.xlu0 %3613
  %3615 = vrot.lane.b32.xlu0 %v196, 76
  %v3616 = vpop.permute.xlu0 %3615
  %3617 = vrot.lane.b32.xlu0 %v197, 76
  %v3618 = vpop.permute.xlu0 %3617
  %3619 = vrot.lane.b32.xlu0 %v199, 76
  %v3620 = vpop.permute.xlu0 %3619
  %3621 = vrot.lane.b32.xlu0 %v200, 76
  %v3622 = vpop.permute.xlu0 %3621
  %3623 = vrot.lane.b32.xlu0 %v202, 76
  %v3624 = vpop.permute.xlu0 %3623
  %3625 = vrot.lane.b32.xlu0 %v203, 76
  %v3626 = vpop.permute.xlu0 %3625
  %3627 = vrot.lane.b32.xlu0 %v205, 76
  %v3628 = vpop.permute.xlu0 %3627
  %3629 = vrot.lane.b32.xlu0 %v206, 76
  %v3630 = vpop.permute.xlu0 %3629
  %3631 = vrot.lane.b32.xlu0 %v208, 76
  %v3632 = vpop.permute.xlu0 %3631
  %3633 = vrot.lane.b32.xlu0 %v209, 76
  %v3634 = vpop.permute.xlu0 %3633
  %3635 = vrot.lane.b32.xlu0 %v211, 76
  %v3636 = vpop.permute.xlu0 %3635
  %3637 = vrot.lane.b32.xlu0 %v212, 76
  %v3638 = vpop.permute.xlu0 %3637
  %3639 = vrot.lane.b32.xlu0 %v214, 76
  %v3640 = vpop.permute.xlu0 %3639
  %3641 = vrot.lane.b32.xlu0 %v215, 76
  %v3642 = vpop.permute.xlu0 %3641
  %3643 = vrot.lane.b32.xlu0 %v217, 76
  %v3644 = vpop.permute.xlu0 %3643
  %3645 = vrot.lane.b32.xlu0 %v218, 76
  %v3646 = vpop.permute.xlu0 %3645
  %3647 = vrot.lane.b32.xlu0 %v220, 76
  %v3648 = vpop.permute.xlu0 %3647
  %3649 = vrot.lane.b32.xlu0 %v221, 76
  %v3650 = vpop.permute.xlu0 %3649
  %3651 = vrot.lane.b32.xlu0 %v223, 76
  %v3652 = vpop.permute.xlu0 %3651
  %3653 = vrot.lane.b32.xlu0 %v224, 76
  %v3654 = vpop.permute.xlu0 %3653
  %3655 = vrot.lane.b32.xlu0 %v226, 76
  %v3656 = vpop.permute.xlu0 %3655
  %3657 = vrot.lane.b32.xlu0 %v227, 76
  %v3658 = vpop.permute.xlu0 %3657
  %3659 = vrot.lane.b32.xlu0 %v229, 76
  %v3660 = vpop.permute.xlu0 %3659
  %3661 = vrot.lane.b32.xlu0 %v230, 76
  %v3662 = vpop.permute.xlu0 %3661
  %3663 = vrot.lane.b32.xlu0 %v232, 76
  %v3664 = vpop.permute.xlu0 %3663
  %3665 = vrot.lane.b32.xlu0 %v233, 76
  %v3666 = vpop.permute.xlu0 %3665
  %3667 = vrot.lane.b32.xlu0 %v235, 76
  %v3668 = vpop.permute.xlu0 %3667
  %3669 = vrot.lane.b32.xlu0 %v236, 76
  %v3670 = vpop.permute.xlu0 %3669
  %3671 = vrot.lane.b32.xlu0 %v238, 76
  %v3672 = vpop.permute.xlu0 %3671
  %3673 = vrot.lane.b32.xlu0 %v239, 76
  %v3674 = vpop.permute.xlu0 %3673
  %3739 = vrot.lane.b32.xlu0 %v350, 84
  %v3740 = vpop.permute.xlu0 %3739
  %3741 = vrot.lane.b32.xlu0 %v352, 84
  %v3742 = vpop.permute.xlu0 %3741
  %3743 = vrot.lane.b32.xlu0 %v355, 84
  %v3744 = vpop.permute.xlu0 %3743
  %3745 = vrot.lane.b32.xlu0 %v357, 84
  %v3746 = vpop.permute.xlu0 %3745
  %3747 = vrot.lane.b32.xlu0 %v360, 84
  %v3748 = vpop.permute.xlu0 %3747
  %3749 = vrot.lane.b32.xlu0 %v362, 84
  %v3750 = vpop.permute.xlu0 %3749
  %3751 = vrot.lane.b32.xlu0 %v365, 84
  %v3752 = vpop.permute.xlu0 %3751
  %3753 = vrot.lane.b32.xlu0 %v367, 84
  %v3754 = vpop.permute.xlu0 %3753
  %3755 = vrot.lane.b32.xlu0 %v370, 84
  %v3756 = vpop.permute.xlu0 %3755
  %3757 = vrot.lane.b32.xlu0 %v372, 84
  %v3758 = vpop.permute.xlu0 %3757
  %3759 = vrot.lane.b32.xlu0 %v375, 84
  %v3760 = vpop.permute.xlu0 %3759
  %3761 = vrot.lane.b32.xlu0 %v377, 84
  %v3762 = vpop.permute.xlu0 %3761
  %3763 = vrot.lane.b32.xlu0 %v380, 84
  %v3764 = vpop.permute.xlu0 %3763
  %3765 = vrot.lane.b32.xlu0 %v382, 84
  %v3766 = vpop.permute.xlu0 %3765
  %3767 = vrot.lane.b32.xlu0 %v385, 84
  %v3768 = vpop.permute.xlu0 %3767
  %3769 = vrot.lane.b32.xlu0 %v387, 84
  %v3770 = vpop.permute.xlu0 %3769
  %3771 = vrot.lane.b32.xlu0 %v390, 84
  %v3772 = vpop.permute.xlu0 %3771
  %3773 = vrot.lane.b32.xlu0 %v392, 84
  %v3774 = vpop.permute.xlu0 %3773
  %3775 = vrot.lane.b32.xlu0 %v395, 84
  %v3776 = vpop.permute.xlu0 %3775
  %3777 = vrot.lane.b32.xlu0 %v397, 84
  %v3778 = vpop.permute.xlu0 %3777
  %3779 = vrot.lane.b32.xlu0 %v400, 84
  %v3780 = vpop.permute.xlu0 %3779
  %3781 = vrot.lane.b32.xlu0 %v402, 84
  %v3782 = vpop.permute.xlu0 %3781
  %3783 = vrot.lane.b32.xlu0 %v405, 84
  %v3784 = vpop.permute.xlu0 %3783
  %3785 = vrot.lane.b32.xlu0 %v407, 84
  %v3786 = vpop.permute.xlu0 %3785
  %3787 = vrot.lane.b32.xlu0 %v410, 84
  %v3788 = vpop.permute.xlu0 %3787
  %3789 = vrot.lane.b32.xlu0 %v412, 84
  %v3790 = vpop.permute.xlu0 %3789
  %3791 = vrot.lane.b32.xlu0 %v415, 84
  %v3792 = vpop.permute.xlu0 %3791
  %3793 = vrot.lane.b32.xlu0 %v417, 84
  %v3794 = vpop.permute.xlu0 %3793
  %3795 = vrot.lane.b32.xlu0 %v1083, 84
  %v3796 = vpop.permute.xlu0 %3795
  %3797 = vrot.lane.b32.xlu0 %v1085, 84
  %v3798 = vpop.permute.xlu0 %3797
  %3799 = vrot.lane.b32.xlu0 %v1135, 84
  %v3800 = vpop.permute.xlu0 %3799
  %3801 = vrot.lane.b32.xlu0 %v1137, 84
  %v3802 = vpop.permute.xlu0 %3801
  %3803 = vrot.lane.b32.xlu0 %v430, 84
  %v3804 = vpop.permute.xlu0 %3803
  %3805 = vrot.lane.b32.xlu0 %v432, 84
  %v3806 = vpop.permute.xlu0 %3805
  %3807 = vrot.lane.b32.xlu0 %v435, 84
  %v3808 = vpop.permute.xlu0 %3807
  %3809 = vrot.lane.b32.xlu0 %v437, 84
  %v3810 = vpop.permute.xlu0 %3809
  %3811 = vrot.lane.b32.xlu0 %v440, 84
  %v3812 = vpop.permute.xlu0 %3811
  %3813 = vrot.lane.b32.xlu0 %v442, 84
  %v3814 = vpop.permute.xlu0 %3813
  %3815 = vrot.lane.b32.xlu0 %v445, 84
  %v3816 = vpop.permute.xlu0 %3815
  %3817 = vrot.lane.b32.xlu0 %v447, 84
  %v3818 = vpop.permute.xlu0 %3817
  %3819 = vrot.lane.b32.xlu0 %v450, 84
  %v3820 = vpop.permute.xlu0 %3819
  %3821 = vrot.lane.b32.xlu0 %v452, 84
  %v3822 = vpop.permute.xlu0 %3821
  %3823 = vrot.lane.b32.xlu0 %v455, 84
  %v3824 = vpop.permute.xlu0 %3823
  %3825 = vrot.lane.b32.xlu0 %v457, 84
  %v3826 = vpop.permute.xlu0 %3825
  %3827 = vrot.lane.b32.xlu0 %v460, 84
  %v3828 = vpop.permute.xlu0 %3827
  %3829 = vrot.lane.b32.xlu0 %v462, 84
  %v3830 = vpop.permute.xlu0 %3829
  %3831 = vrot.lane.b32.xlu0 %v465, 84
  %v3832 = vpop.permute.xlu0 %3831
  %3833 = vrot.lane.b32.xlu0 %v467, 84
  %v3834 = vpop.permute.xlu0 %3833
  %3835 = vrot.lane.b32.xlu0 %v470, 84
  %v3836 = vpop.permute.xlu0 %3835
  %3837 = vrot.lane.b32.xlu0 %v472, 84
  %v3838 = vpop.permute.xlu0 %3837
  %3839 = vrot.lane.b32.xlu0 %v475, 84
  %v3840 = vpop.permute.xlu0 %3839
  %3841 = vrot.lane.b32.xlu0 %v477, 84
  %v3842 = vpop.permute.xlu0 %3841
  %3843 = vrot.lane.b32.xlu0 %v480, 84
  %v3844 = vpop.permute.xlu0 %3843
  %3845 = vrot.lane.b32.xlu0 %v482, 84
  %v3846 = vpop.permute.xlu0 %3845
  %3847 = vrot.lane.b32.xlu0 %v485, 84
  %v3848 = vpop.permute.xlu0 %3847
  %3849 = vrot.lane.b32.xlu0 %v487, 84
  %v3850 = vpop.permute.xlu0 %3849
  %3851 = vrot.lane.b32.xlu0 %v490, 84
  %v3852 = vpop.permute.xlu0 %3851
  %3853 = vrot.lane.b32.xlu0 %v492, 84
  %v3854 = vpop.permute.xlu0 %3853
  %3855 = vrot.lane.b32.xlu0 %v495, 84
  %v3856 = vpop.permute.xlu0 %3855
  %3857 = vrot.lane.b32.xlu0 %v497, 84
  %v3858 = vpop.permute.xlu0 %3857
  %3859 = vrot.lane.b32.xlu0 %v1088, 84
  %v3860 = vpop.permute.xlu0 %3859
  %3861 = vrot.lane.b32.xlu0 %v1090, 84
  %v3862 = vpop.permute.xlu0 %3861
  %3863 = vrot.lane.b32.xlu0 %v1140, 84
  %v3864 = vpop.permute.xlu0 %3863
  %3865 = vrot.lane.b32.xlu0 %v1142, 84
  %v3866 = vpop.permute.xlu0 %3865
  %3931 = vrot.lane.b32.xlu0 %v606, 88
  %v3932 = vpop.permute.xlu0 %3931
  %3933 = vrot.lane.b32.xlu0 %v608, 88
  %v3934 = vpop.permute.xlu0 %3933
  %3935 = vrot.lane.b32.xlu0 %v611, 88
  %v3936 = vpop.permute.xlu0 %3935
  %3937 = vrot.lane.b32.xlu0 %v613, 88
  %v3938 = vpop.permute.xlu0 %3937
  %3939 = vrot.lane.b32.xlu0 %v616, 88
  %v3940 = vpop.permute.xlu0 %3939
  %3941 = vrot.lane.b32.xlu0 %v618, 88
  %v3942 = vpop.permute.xlu0 %3941
  %3943 = vrot.lane.b32.xlu0 %v621, 88
  %v3944 = vpop.permute.xlu0 %3943
  %3945 = vrot.lane.b32.xlu0 %v623, 88
  %v3946 = vpop.permute.xlu0 %3945
  %3947 = vrot.lane.b32.xlu0 %v626, 88
  %v3948 = vpop.permute.xlu0 %3947
  %3949 = vrot.lane.b32.xlu0 %v628, 88
  %v3950 = vpop.permute.xlu0 %3949
  %3951 = vrot.lane.b32.xlu0 %v631, 88
  %v3952 = vpop.permute.xlu0 %3951
  %3953 = vrot.lane.b32.xlu0 %v633, 88
  %v3954 = vpop.permute.xlu0 %3953
  %3955 = vrot.lane.b32.xlu0 %v636, 88
  %v3956 = vpop.permute.xlu0 %3955
  %3957 = vrot.lane.b32.xlu0 %v638, 88
  %v3958 = vpop.permute.xlu0 %3957
  %3959 = vrot.lane.b32.xlu0 %v641, 88
  %v3960 = vpop.permute.xlu0 %3959
  %3961 = vrot.lane.b32.xlu0 %v643, 88
  %v3962 = vpop.permute.xlu0 %3961
  %3963 = vrot.lane.b32.xlu0 %v646, 88
  %v3964 = vpop.permute.xlu0 %3963
  %3965 = vrot.lane.b32.xlu0 %v648, 88
  %v3966 = vpop.permute.xlu0 %3965
  %3967 = vrot.lane.b32.xlu0 %v651, 88
  %v3968 = vpop.permute.xlu0 %3967
  %3969 = vrot.lane.b32.xlu0 %v653, 88
  %v3970 = vpop.permute.xlu0 %3969
  %3971 = vrot.lane.b32.xlu0 %v656, 88
  %v3972 = vpop.permute.xlu0 %3971
  %3973 = vrot.lane.b32.xlu0 %v658, 88
  %v3974 = vpop.permute.xlu0 %3973
  %3975 = vrot.lane.b32.xlu0 %v661, 88
  %v3976 = vpop.permute.xlu0 %3975
  %3977 = vrot.lane.b32.xlu0 %v663, 88
  %v3978 = vpop.permute.xlu0 %3977
  %3979 = vrot.lane.b32.xlu0 %v666, 88
  %v3980 = vpop.permute.xlu0 %3979
  %3981 = vrot.lane.b32.xlu0 %v668, 88
  %v3982 = vpop.permute.xlu0 %3981
  %3983 = vrot.lane.b32.xlu0 %v671, 88
  %v3984 = vpop.permute.xlu0 %3983
  %3985 = vrot.lane.b32.xlu0 %v673, 88
  %v3986 = vpop.permute.xlu0 %3985
  %3987 = vrot.lane.b32.xlu0 %v1099, 88
  %v3988 = vpop.permute.xlu0 %3987
  %3989 = vrot.lane.b32.xlu0 %v1101, 88
  %v3990 = vpop.permute.xlu0 %3989
  %3991 = vrot.lane.b32.xlu0 %v1151, 88
  %v3992 = vpop.permute.xlu0 %3991
  %3993 = vrot.lane.b32.xlu0 %v1153, 88
  %v3994 = vpop.permute.xlu0 %3993
  %3995 = vrot.lane.b32.xlu0 %v686, 88
  %v3996 = vpop.permute.xlu0 %3995
  %3997 = vrot.lane.b32.xlu0 %v688, 88
  %v3998 = vpop.permute.xlu0 %3997
  %3999 = vrot.lane.b32.xlu0 %v691, 88
  %v4000 = vpop.permute.xlu0 %3999
  %4001 = vrot.lane.b32.xlu0 %v693, 88
  %v4002 = vpop.permute.xlu0 %4001
  %4003 = vrot.lane.b32.xlu0 %v696, 88
  %v4004 = vpop.permute.xlu0 %4003
  %4005 = vrot.lane.b32.xlu0 %v698, 88
  %v4006 = vpop.permute.xlu0 %4005
  %4007 = vrot.lane.b32.xlu0 %v701, 88
  %v4008 = vpop.permute.xlu0 %4007
  %4009 = vrot.lane.b32.xlu0 %v703, 88
  %v4010 = vpop.permute.xlu0 %4009
  %4011 = vrot.lane.b32.xlu0 %v706, 88
  %v4012 = vpop.permute.xlu0 %4011
  %4013 = vrot.lane.b32.xlu0 %v708, 88
  %v4014 = vpop.permute.xlu0 %4013
  %4015 = vrot.lane.b32.xlu0 %v711, 88
  %v4016 = vpop.permute.xlu0 %4015
  %4017 = vrot.lane.b32.xlu0 %v713, 88
  %v4018 = vpop.permute.xlu0 %4017
  %4019 = vrot.lane.b32.xlu0 %v716, 88
  %v4020 = vpop.permute.xlu0 %4019
  %4021 = vrot.lane.b32.xlu0 %v718, 88
  %v4022 = vpop.permute.xlu0 %4021
  %4023 = vrot.lane.b32.xlu0 %v721, 88
  %v4024 = vpop.permute.xlu0 %4023
  %4025 = vrot.lane.b32.xlu0 %v723, 88
  %v4026 = vpop.permute.xlu0 %4025
  %4027 = vrot.lane.b32.xlu0 %v726, 88
  %v4028 = vpop.permute.xlu0 %4027
  %4029 = vrot.lane.b32.xlu0 %v728, 88
  %v4030 = vpop.permute.xlu0 %4029
  %4031 = vrot.lane.b32.xlu0 %v731, 88
  %v4032 = vpop.permute.xlu0 %4031
  %4033 = vrot.lane.b32.xlu0 %v733, 88
  %v4034 = vpop.permute.xlu0 %4033
  %4035 = vrot.lane.b32.xlu0 %v736, 88
  %v4036 = vpop.permute.xlu0 %4035
  %4037 = vrot.lane.b32.xlu0 %v738, 88
  %v4038 = vpop.permute.xlu0 %4037
  %4039 = vrot.lane.b32.xlu0 %v741, 88
  %v4040 = vpop.permute.xlu0 %4039
  %4041 = vrot.lane.b32.xlu0 %v743, 88
  %v4042 = vpop.permute.xlu0 %4041
  %4043 = vrot.lane.b32.xlu0 %v746, 88
  %v4044 = vpop.permute.xlu0 %4043
  %4045 = vrot.lane.b32.xlu0 %v748, 88
  %v4046 = vpop.permute.xlu0 %4045
  %4047 = vrot.lane.b32.xlu0 %v751, 88
  %v4048 = vpop.permute.xlu0 %4047
  %4049 = vrot.lane.b32.xlu0 %v753, 88
  %v4050 = vpop.permute.xlu0 %4049
  %4051 = vrot.lane.b32.xlu0 %v1104, 88
  %v4052 = vpop.permute.xlu0 %4051
  %4053 = vrot.lane.b32.xlu0 %v1106, 88
  %v4054 = vpop.permute.xlu0 %4053
  %4055 = vrot.lane.b32.xlu0 %v1156, 88
  %v4056 = vpop.permute.xlu0 %4055
  %4057 = vrot.lane.b32.xlu0 %v1158, 88
  %v4058 = vpop.permute.xlu0 %4057
  %vm4123 = vcmask 31744
  %v4124 = vsel %vm4123, %v25, %v1244
  %v4125 = vsel %vm4123, %v26, %v1246
  %v4126 = vsel %vm4123, %v28, %v1248
  %v4127 = vsel %vm4123, %v29, %v1250
  %v4128 = vsel %vm4123, %v31, %v1252
  %v4129 = vsel %vm4123, %v32, %v1254
  %v4130 = vsel %vm4123, %v34, %v1256
  %v4131 = vsel %vm4123, %v35, %v1258
  %v4132 = vsel %vm4123, %v37, %v1260
  %v4133 = vsel %vm4123, %v38, %v1262
  %v4134 = vsel %vm4123, %v40, %v1264
  %v4135 = vsel %vm4123, %v41, %v1266
  %v4136 = vsel %vm4123, %v43, %v1268
  %v4137 = vsel %vm4123, %v44, %v1270
  %v4138 = vsel %vm4123, %v46, %v1272
  %v4139 = vsel %vm4123, %v47, %v1274
  %v4140 = vsel %vm4123, %v49, %v1276
  %v4141 = vsel %vm4123, %v50, %v1278
  %v4142 = vsel %vm4123, %v52, %v1280
  %v4143 = vsel %vm4123, %v53, %v1282
  %v4144 = vsel %vm4123, %v55, %v1284
  %v4145 = vsel %vm4123, %v56, %v1286
  %v4146 = vsel %vm4123, %v58, %v1288
  %v4147 = vsel %vm4123, %v59, %v1290
  %v4148 = vsel %vm4123, %v61, %v1292
  %v4149 = vsel %vm4123, %v62, %v1294
  %v4150 = vsel %vm4123, %v64, %v1296
  %v4151 = vsel %vm4123, %v65, %v1298
  %v4152 = vsel %vm4123, %v67, %v1300
  %v4153 = vsel %vm4123, %v68, %v1302
  %v4154 = vsel %vm4123, %v70, %v1304
  %v4155 = vsel %vm4123, %v71, %v1306
  %v4156 = vsel %vm4123, %v79, %v1308
  %v4157 = vsel %vm4123, %v80, %v1310
  %v4158 = vsel %vm4123, %v82, %v1312
  %v4159 = vsel %vm4123, %v83, %v1314
  %v4160 = vsel %vm4123, %v85, %v1316
  %v4161 = vsel %vm4123, %v86, %v1318
  %v4162 = vsel %vm4123, %v88, %v1320
  %v4163 = vsel %vm4123, %v89, %v1322
  %v4164 = vsel %vm4123, %v91, %v1324
  %v4165 = vsel %vm4123, %v92, %v1326
  %v4166 = vsel %vm4123, %v94, %v1328
  %v4167 = vsel %vm4123, %v95, %v1330
  %v4168 = vsel %vm4123, %v97, %v1332
  %v4169 = vsel %vm4123, %v98, %v1334
  %v4170 = vsel %vm4123, %v100, %v1336
  %v4171 = vsel %vm4123, %v101, %v1338
  %v4172 = vsel %vm4123, %v103, %v1340
  %v4173 = vsel %vm4123, %v104, %v1342
  %v4174 = vsel %vm4123, %v106, %v1344
  %v4175 = vsel %vm4123, %v107, %v1346
  %v4176 = vsel %vm4123, %v109, %v1348
  %v4177 = vsel %vm4123, %v110, %v1350
  %v4178 = vsel %vm4123, %v112, %v1352
  %v4179 = vsel %vm4123, %v113, %v1354
  %v4180 = vsel %vm4123, %v115, %v1356
  %v4181 = vsel %vm4123, %v116, %v1358
  %v4182 = vsel %vm4123, %v118, %v1360
  %v4183 = vsel %vm4123, %v119, %v1362
  %v4184 = vsel %vm4123, %v121, %v1364
  %v4185 = vsel %vm4123, %v122, %v1366
  %v4186 = vsel %vm4123, %v124, %v1368
  %v4187 = vsel %vm4123, %v125, %v1370
  %vm4188 = vcmask 97280
  %v4189 = vsel %vm4188, %v4124, %v1436
  %v4190 = vsel %vm4188, %v4125, %v1438
  %v4191 = vsel %vm4188, %v4126, %v1440
  %v4192 = vsel %vm4188, %v4127, %v1442
  %v4193 = vsel %vm4188, %v4128, %v1444
  %v4194 = vsel %vm4188, %v4129, %v1446
  %v4195 = vsel %vm4188, %v4130, %v1448
  %v4196 = vsel %vm4188, %v4131, %v1450
  %v4197 = vsel %vm4188, %v4132, %v1452
  %v4198 = vsel %vm4188, %v4133, %v1454
  %v4199 = vsel %vm4188, %v4134, %v1456
  %v4200 = vsel %vm4188, %v4135, %v1458
  %v4201 = vsel %vm4188, %v4136, %v1460
  %v4202 = vsel %vm4188, %v4137, %v1462
  %v4203 = vsel %vm4188, %v4138, %v1464
  %v4204 = vsel %vm4188, %v4139, %v1466
  %v4205 = vsel %vm4188, %v4140, %v1468
  %v4206 = vsel %vm4188, %v4141, %v1470
  %v4207 = vsel %vm4188, %v4142, %v1472
  %v4208 = vsel %vm4188, %v4143, %v1474
  %v4209 = vsel %vm4188, %v4144, %v1476
  %v4210 = vsel %vm4188, %v4145, %v1478
  %v4211 = vsel %vm4188, %v4146, %v1480
  %v4212 = vsel %vm4188, %v4147, %v1482
  %v4213 = vsel %vm4188, %v4148, %v1484
  %v4214 = vsel %vm4188, %v4149, %v1486
  %v4215 = vsel %vm4188, %v4150, %v1488
  %v4216 = vsel %vm4188, %v4151, %v1490
  %v4217 = vsel %vm4188, %v4152, %v1492
  %v4218 = vsel %vm4188, %v4153, %v1494
  %v4219 = vsel %vm4188, %v4154, %v1496
  %v4220 = vsel %vm4188, %v4155, %v1498
  %v4221 = vsel %vm4188, %v4156, %v1500
  %v4222 = vsel %vm4188, %v4157, %v1502
  %v4223 = vsel %vm4188, %v4158, %v1504
  %v4224 = vsel %vm4188, %v4159, %v1506
  %v4225 = vsel %vm4188, %v4160, %v1508
  %v4226 = vsel %vm4188, %v4161, %v1510
  %v4227 = vsel %vm4188, %v4162, %v1512
  %v4228 = vsel %vm4188, %v4163, %v1514
  %v4229 = vsel %vm4188, %v4164, %v1516
  %v4230 = vsel %vm4188, %v4165, %v1518
  %v4231 = vsel %vm4188, %v4166, %v1520
  %v4232 = vsel %vm4188, %v4167, %v1522
  %v4233 = vsel %vm4188, %v4168, %v1524
  %v4234 = vsel %vm4188, %v4169, %v1526
  %v4235 = vsel %vm4188, %v4170, %v1528
  %v4236 = vsel %vm4188, %v4171, %v1530
  %v4237 = vsel %vm4188, %v4172, %v1532
  %v4238 = vsel %vm4188, %v4173, %v1534
  %v4239 = vsel %vm4188, %v4174, %v1536
  %v4240 = vsel %vm4188, %v4175, %v1538
  %v4241 = vsel %vm4188, %v4176, %v1540
  %v4242 = vsel %vm4188, %v4177, %v1542
  %v4243 = vsel %vm4188, %v4178, %v1544
  %v4244 = vsel %vm4188, %v4179, %v1546
  %v4245 = vsel %vm4188, %v4180, %v1548
  %v4246 = vsel %vm4188, %v4181, %v1550
  %v4247 = vsel %vm4188, %v4182, %v1552
  %v4248 = vsel %vm4188, %v4183, %v1554
  %v4249 = vsel %vm4188, %v4184, %v1556
  %v4250 = vsel %vm4188, %v4185, %v1558
  %v4251 = vsel %vm4188, %v4186, %v1560
  %v4252 = vsel %vm4188, %v4187, %v1562
  %vm4253 = vcmask 130048
  %v4254 = vsel %vm4253, %v4189, %v1628
  %v4255 = vsel %vm4253, %v4190, %v1630
  %v4256 = vsel %vm4253, %v4191, %v1632
  %v4257 = vsel %vm4253, %v4192, %v1634
  %v4258 = vsel %vm4253, %v4193, %v1636
  %v4259 = vsel %vm4253, %v4194, %v1638
  %v4260 = vsel %vm4253, %v4195, %v1640
  %v4261 = vsel %vm4253, %v4196, %v1642
  %v4262 = vsel %vm4253, %v4197, %v1644
  %v4263 = vsel %vm4253, %v4198, %v1646
  %v4264 = vsel %vm4253, %v4199, %v1648
  %v4265 = vsel %vm4253, %v4200, %v1650
  %v4266 = vsel %vm4253, %v4201, %v1652
  %v4267 = vsel %vm4253, %v4202, %v1654
  %v4268 = vsel %vm4253, %v4203, %v1656
  %v4269 = vsel %vm4253, %v4204, %v1658
  %v4270 = vsel %vm4253, %v4205, %v1660
  %v4271 = vsel %vm4253, %v4206, %v1662
  %v4272 = vsel %vm4253, %v4207, %v1664
  %v4273 = vsel %vm4253, %v4208, %v1666
  %v4274 = vsel %vm4253, %v4209, %v1668
  %v4275 = vsel %vm4253, %v4210, %v1670
  %v4276 = vsel %vm4253, %v4211, %v1672
  %v4277 = vsel %vm4253, %v4212, %v1674
  %v4278 = vsel %vm4253, %v4213, %v1676
  %v4279 = vsel %vm4253, %v4214, %v1678
  %v4280 = vsel %vm4253, %v4215, %v1680
  %v4281 = vsel %vm4253, %v4216, %v1682
  %v4282 = vsel %vm4253, %v4217, %v1684
  %v4283 = vsel %vm4253, %v4218, %v1686
  %v4284 = vsel %vm4253, %v4219, %v1688
  %v4285 = vsel %vm4253, %v4220, %v1690
  %v4286 = vsel %vm4253, %v4221, %v1692
  %v4287 = vsel %vm4253, %v4222, %v1694
  %v4288 = vsel %vm4253, %v4223, %v1696
  %v4289 = vsel %vm4253, %v4224, %v1698
  %v4290 = vsel %vm4253, %v4225, %v1700
  %v4291 = vsel %vm4253, %v4226, %v1702
  %v4292 = vsel %vm4253, %v4227, %v1704
  %v4293 = vsel %vm4253, %v4228, %v1706
  %v4294 = vsel %vm4253, %v4229, %v1708
  %v4295 = vsel %vm4253, %v4230, %v1710
  %v4296 = vsel %vm4253, %v4231, %v1712
  %v4297 = vsel %vm4253, %v4232, %v1714
  %v4298 = vsel %vm4253, %v4233, %v1716
  %v4299 = vsel %vm4253, %v4234, %v1718
  %v4300 = vsel %vm4253, %v4235, %v1720
  %v4301 = vsel %vm4253, %v4236, %v1722
  %v4302 = vsel %vm4253, %v4237, %v1724
  %v4303 = vsel %vm4253, %v4238, %v1726
  %v4304 = vsel %vm4253, %v4239, %v1728
  %v4305 = vsel %vm4253, %v4240, %v1730
  %v4306 = vsel %vm4253, %v4241, %v1732
  %v4307 = vsel %vm4253, %v4242, %v1734
  %v4308 = vsel %vm4253, %v4243, %v1736
  %v4309 = vsel %vm4253, %v4244, %v1738
  %v4310 = vsel %vm4253, %v4245, %v1740
  %v4311 = vsel %vm4253, %v4246, %v1742
  %v4312 = vsel %vm4253, %v4247, %v1744
  %v4313 = vsel %vm4253, %v4248, %v1746
  %v4314 = vsel %vm4253, %v4249, %v1748
  %v4315 = vsel %vm4253, %v4250, %v1750
  %v4316 = vsel %vm4253, %v4251, %v1752
  %v4317 = vsel %vm4253, %v4252, %v1754
  %vm4318 = vcmask 195584
  %v4319 = vsel %vm4318, %v4254, %v1820
  %v4320 = vsel %vm4318, %v4255, %v1822
  %v4321 = vsel %vm4318, %v4256, %v1824
  %v4322 = vsel %vm4318, %v4257, %v1826
  %v4323 = vsel %vm4318, %v4258, %v1828
  %v4324 = vsel %vm4318, %v4259, %v1830
  %v4325 = vsel %vm4318, %v4260, %v1832
  %v4326 = vsel %vm4318, %v4261, %v1834
  %v4327 = vsel %vm4318, %v4262, %v1836
  %v4328 = vsel %vm4318, %v4263, %v1838
  %v4329 = vsel %vm4318, %v4264, %v1840
  %v4330 = vsel %vm4318, %v4265, %v1842
  %v4331 = vsel %vm4318, %v4266, %v1844
  %v4332 = vsel %vm4318, %v4267, %v1846
  %v4333 = vsel %vm4318, %v4268, %v1848
  %v4334 = vsel %vm4318, %v4269, %v1850
  %v4335 = vsel %vm4318, %v4270, %v1852
  %v4336 = vsel %vm4318, %v4271, %v1854
  %v4337 = vsel %vm4318, %v4272, %v1856
  %v4338 = vsel %vm4318, %v4273, %v1858
  %v4339 = vsel %vm4318, %v4274, %v1860
  %v4340 = vsel %vm4318, %v4275, %v1862
  %v4341 = vsel %vm4318, %v4276, %v1864
  %v4342 = vsel %vm4318, %v4277, %v1866
  %v4343 = vsel %vm4318, %v4278, %v1868
  %v4344 = vsel %vm4318, %v4279, %v1870
  %v4345 = vsel %vm4318, %v4280, %v1872
  %v4346 = vsel %vm4318, %v4281, %v1874
  %v4347 = vsel %vm4318, %v4282, %v1876
  %v4348 = vsel %vm4318, %v4283, %v1878
  %v4349 = vsel %vm4318, %v4284, %v1880
  %v4350 = vsel %vm4318, %v4285, %v1882
  %v4351 = vsel %vm4318, %v4286, %v1884
  %v4352 = vsel %vm4318, %v4287, %v1886
  %v4353 = vsel %vm4318, %v4288, %v1888
  %v4354 = vsel %vm4318, %v4289, %v1890
  %v4355 = vsel %vm4318, %v4290, %v1892
  %v4356 = vsel %vm4318, %v4291, %v1894
  %v4357 = vsel %vm4318, %v4292, %v1896
  %v4358 = vsel %vm4318, %v4293, %v1898
  %v4359 = vsel %vm4318, %v4294, %v1900
  %v4360 = vsel %vm4318, %v4295, %v1902
  %v4361 = vsel %vm4318, %v4296, %v1904
  %v4362 = vsel %vm4318, %v4297, %v1906
  %v4363 = vsel %vm4318, %v4298, %v1908
  %v4364 = vsel %vm4318, %v4299, %v1910
  %v4365 = vsel %vm4318, %v4300, %v1912
  %v4366 = vsel %vm4318, %v4301, %v1914
  %v4367 = vsel %vm4318, %v4302, %v1916
  %v4368 = vsel %vm4318, %v4303, %v1918
  %v4369 = vsel %vm4318, %v4304, %v1920
  %v4370 = vsel %vm4318, %v4305, %v1922
  %v4371 = vsel %vm4318, %v4306, %v1924
  %v4372 = vsel %vm4318, %v4307, %v1926
  %v4373 = vsel %vm4318, %v4308, %v1928
  %v4374 = vsel %vm4318, %v4309, %v1930
  %v4375 = vsel %vm4318, %v4310, %v1932
  %v4376 = vsel %vm4318, %v4311, %v1934
  %v4377 = vsel %vm4318, %v4312, %v1936
  %v4378 = vsel %vm4318, %v4313, %v1938
  %v4379 = vsel %vm4318, %v4314, %v1940
  %v4380 = vsel %vm4318, %v4315, %v1942
  %v4381 = vsel %vm4318, %v4316, %v1944
  %v4382 = vsel %vm4318, %v4317, %v1946
  %vm4383 = vcmask 228352
  %v4384 = vsel %vm4383, %v4319, %v2012
  %v4385 = vsel %vm4383, %v4320, %v2014
  %v4386 = vsel %vm4383, %v4321, %v2016
  %v4387 = vsel %vm4383, %v4322, %v2018
  %v4388 = vsel %vm4383, %v4323, %v2020
  %v4389 = vsel %vm4383, %v4324, %v2022
  %v4390 = vsel %vm4383, %v4325, %v2024
  %v4391 = vsel %vm4383, %v4326, %v2026
  %v4392 = vsel %vm4383, %v4327, %v2028
  %v4393 = vsel %vm4383, %v4328, %v2030
  %v4394 = vsel %vm4383, %v4329, %v2032
  %v4395 = vsel %vm4383, %v4330, %v2034
  %v4396 = vsel %vm4383, %v4331, %v2036
  %v4397 = vsel %vm4383, %v4332, %v2038
  %v4398 = vsel %vm4383, %v4333, %v2040
  %v4399 = vsel %vm4383, %v4334, %v2042
  %v4400 = vsel %vm4383, %v4335, %v2044
  %v4401 = vsel %vm4383, %v4336, %v2046
  %v4402 = vsel %vm4383, %v4337, %v2048
  %v4403 = vsel %vm4383, %v4338, %v2050
  %v4404 = vsel %vm4383, %v4339, %v2052
  %v4405 = vsel %vm4383, %v4340, %v2054
  %v4406 = vsel %vm4383, %v4341, %v2056
  %v4407 = vsel %vm4383, %v4342, %v2058
  %v4408 = vsel %vm4383, %v4343, %v2060
  %v4409 = vsel %vm4383, %v4344, %v2062
  %v4410 = vsel %vm4383, %v4345, %v2064
  %v4411 = vsel %vm4383, %v4346, %v2066
  %v4412 = vsel %vm4383, %v4347, %v2068
  %v4413 = vsel %vm4383, %v4348, %v2070
  %v4414 = vsel %vm4383, %v4349, %v2072
  %v4415 = vsel %vm4383, %v4350, %v2074
  %v4416 = vsel %vm4383, %v4351, %v2076
  %v4417 = vsel %vm4383, %v4352, %v2078
  %v4418 = vsel %vm4383, %v4353, %v2080
  %v4419 = vsel %vm4383, %v4354, %v2082
  %v4420 = vsel %vm4383, %v4355, %v2084
  %v4421 = vsel %vm4383, %v4356, %v2086
  %v4422 = vsel %vm4383, %v4357, %v2088
  %v4423 = vsel %vm4383, %v4358, %v2090
  %v4424 = vsel %vm4383, %v4359, %v2092
  %v4425 = vsel %vm4383, %v4360, %v2094
  %v4426 = vsel %vm4383, %v4361, %v2096
  %v4427 = vsel %vm4383, %v4362, %v2098
  %v4428 = vsel %vm4383, %v4363, %v2100
  %v4429 = vsel %vm4383, %v4364, %v2102
  %v4430 = vsel %vm4383, %v4365, %v2104
  %v4431 = vsel %vm4383, %v4366, %v2106
  %v4432 = vsel %vm4383, %v4367, %v2108
  %v4433 = vsel %vm4383, %v4368, %v2110
  %v4434 = vsel %vm4383, %v4369, %v2112
  %v4435 = vsel %vm4383, %v4370, %v2114
  %v4436 = vsel %vm4383, %v4371, %v2116
  %v4437 = vsel %vm4383, %v4372, %v2118
  %v4438 = vsel %vm4383, %v4373, %v2120
  %v4439 = vsel %vm4383, %v4374, %v2122
  %v4440 = vsel %vm4383, %v4375, %v2124
  %v4441 = vsel %vm4383, %v4376, %v2126
  %v4442 = vsel %vm4383, %v4377, %v2128
  %v4443 = vsel %vm4383, %v4378, %v2130
  %v4444 = vsel %vm4383, %v4379, %v2132
  %v4445 = vsel %vm4383, %v4380, %v2134
  %v4446 = vsel %vm4383, %v4381, %v2136
  %v4447 = vsel %vm4383, %v4382, %v2138
  %vm4448 = vcmask 293888
  %v4449 = vsel %vm4448, %v4384, %v2204
  %v4450 = vsel %vm4448, %v4385, %v2206
  %v4451 = vsel %vm4448, %v4386, %v2208
  %v4452 = vsel %vm4448, %v4387, %v2210
  %v4453 = vsel %vm4448, %v4388, %v2212
  %v4454 = vsel %vm4448, %v4389, %v2214
  %v4455 = vsel %vm4448, %v4390, %v2216
  %v4456 = vsel %vm4448, %v4391, %v2218
  %v4457 = vsel %vm4448, %v4392, %v2220
  %v4458 = vsel %vm4448, %v4393, %v2222
  %v4459 = vsel %vm4448, %v4394, %v2224
  %v4460 = vsel %vm4448, %v4395, %v2226
  %v4461 = vsel %vm4448, %v4396, %v2228
  %v4462 = vsel %vm4448, %v4397, %v2230
  %v4463 = vsel %vm4448, %v4398, %v2232
  %v4464 = vsel %vm4448, %v4399, %v2234
  %v4465 = vsel %vm4448, %v4400, %v2236
  %v4466 = vsel %vm4448, %v4401, %v2238
  %v4467 = vsel %vm4448, %v4402, %v2240
  %v4468 = vsel %vm4448, %v4403, %v2242
  %v4469 = vsel %vm4448, %v4404, %v2244
  %v4470 = vsel %vm4448, %v4405, %v2246
  %v4471 = vsel %vm4448, %v4406, %v2248
  %v4472 = vsel %vm4448, %v4407, %v2250
  %v4473 = vsel %vm4448, %v4408, %v2252
  %v4474 = vsel %vm4448, %v4409, %v2254
  %v4475 = vsel %vm4448, %v4410, %v2256
  %v4476 = vsel %vm4448, %v4411, %v2258
  %v4477 = vsel %vm4448, %v4412, %v2260
  %v4478 = vsel %vm4448, %v4413, %v2262
  %v4479 = vsel %vm4448, %v4414, %v2264
  %v4480 = vsel %vm4448, %v4415, %v2266
  %v4481 = vsel %vm4448, %v4416, %v2268
  %v4482 = vsel %vm4448, %v4417, %v2270
  %v4483 = vsel %vm4448, %v4418, %v2272
  %v4484 = vsel %vm4448, %v4419, %v2274
  %v4485 = vsel %vm4448, %v4420, %v2276
  %v4486 = vsel %vm4448, %v4421, %v2278
  %v4487 = vsel %vm4448, %v4422, %v2280
  %v4488 = vsel %vm4448, %v4423, %v2282
  %v4489 = vsel %vm4448, %v4424, %v2284
  %v4490 = vsel %vm4448, %v4425, %v2286
  %v4491 = vsel %vm4448, %v4426, %v2288
  %v4492 = vsel %vm4448, %v4427, %v2290
  %v4493 = vsel %vm4448, %v4428, %v2292
  %v4494 = vsel %vm4448, %v4429, %v2294
  %v4495 = vsel %vm4448, %v4430, %v2296
  %v4496 = vsel %vm4448, %v4431, %v2298
  %v4497 = vsel %vm4448, %v4432, %v2300
  %v4498 = vsel %vm4448, %v4433, %v2302
  %v4499 = vsel %vm4448, %v4434, %v2304
  %v4500 = vsel %vm4448, %v4435, %v2306
  %v4501 = vsel %vm4448, %v4436, %v2308
  %v4502 = vsel %vm4448, %v4437, %v2310
  %v4503 = vsel %vm4448, %v4438, %v2312
  %v4504 = vsel %vm4448, %v4439, %v2314
  %v4505 = vsel %vm4448, %v4440, %v2316
  %v4506 = vsel %vm4448, %v4441, %v2318
  %v4507 = vsel %vm4448, %v4442, %v2320
  %v4508 = vsel %vm4448, %v4443, %v2322
  %v4509 = vsel %vm4448, %v4444, %v2324
  %v4510 = vsel %vm4448, %v4445, %v2326
  %v4511 = vsel %vm4448, %v4446, %v2328
  %v4512 = vsel %vm4448, %v4447, %v2330
  %vm4513 = vcmask 326656
  %v4514 = vsel %vm4513, %v4449, %v2396
  %v4515 = vsel %vm4513, %v4450, %v2398
  %v4516 = vsel %vm4513, %v4451, %v2400
  %v4517 = vsel %vm4513, %v4452, %v2402
  %v4518 = vsel %vm4513, %v4453, %v2404
  %v4519 = vsel %vm4513, %v4454, %v2406
  %v4520 = vsel %vm4513, %v4455, %v2408
  %v4521 = vsel %vm4513, %v4456, %v2410
  %v4522 = vsel %vm4513, %v4457, %v2412
  %v4523 = vsel %vm4513, %v4458, %v2414
  %v4524 = vsel %vm4513, %v4459, %v2416
  %v4525 = vsel %vm4513, %v4460, %v2418
  %v4526 = vsel %vm4513, %v4461, %v2420
  %v4527 = vsel %vm4513, %v4462, %v2422
  %v4528 = vsel %vm4513, %v4463, %v2424
  %v4529 = vsel %vm4513, %v4464, %v2426
  %v4530 = vsel %vm4513, %v4465, %v2428
  %v4531 = vsel %vm4513, %v4466, %v2430
  %v4532 = vsel %vm4513, %v4467, %v2432
  %v4533 = vsel %vm4513, %v4468, %v2434
  %v4534 = vsel %vm4513, %v4469, %v2436
  %v4535 = vsel %vm4513, %v4470, %v2438
  %v4536 = vsel %vm4513, %v4471, %v2440
  %v4537 = vsel %vm4513, %v4472, %v2442
  %v4538 = vsel %vm4513, %v4473, %v2444
  %v4539 = vsel %vm4513, %v4474, %v2446
  %v4540 = vsel %vm4513, %v4475, %v2448
  %v4541 = vsel %vm4513, %v4476, %v2450
  %v4542 = vsel %vm4513, %v4477, %v2452
  %v4543 = vsel %vm4513, %v4478, %v2454
  %v4544 = vsel %vm4513, %v4479, %v2456
  %v4545 = vsel %vm4513, %v4480, %v2458
  %v4546 = vsel %vm4513, %v4481, %v2460
  %v4547 = vsel %vm4513, %v4482, %v2462
  %v4548 = vsel %vm4513, %v4483, %v2464
  %v4549 = vsel %vm4513, %v4484, %v2466
  %v4550 = vsel %vm4513, %v4485, %v2468
  %v4551 = vsel %vm4513, %v4486, %v2470
  %v4552 = vsel %vm4513, %v4487, %v2472
  %v4553 = vsel %vm4513, %v4488, %v2474
  %v4554 = vsel %vm4513, %v4489, %v2476
  %v4555 = vsel %vm4513, %v4490, %v2478
  %v4556 = vsel %vm4513, %v4491, %v2480
  %v4557 = vsel %vm4513, %v4492, %v2482
  %v4558 = vsel %vm4513, %v4493, %v2484
  %v4559 = vsel %vm4513, %v4494, %v2486
  %v4560 = vsel %vm4513, %v4495, %v2488
  %v4561 = vsel %vm4513, %v4496, %v2490
  %v4562 = vsel %vm4513, %v4497, %v2492
  %v4563 = vsel %vm4513, %v4498, %v2494
  %v4564 = vsel %vm4513, %v4499, %v2496
  %v4565 = vsel %vm4513, %v4500, %v2498
  %v4566 = vsel %vm4513, %v4501, %v2500
  %v4567 = vsel %vm4513, %v4502, %v2502
  %v4568 = vsel %vm4513, %v4503, %v2504
  %v4569 = vsel %vm4513, %v4504, %v2506
  %v4570 = vsel %vm4513, %v4505, %v2508
  %v4571 = vsel %vm4513, %v4506, %v2510
  %v4572 = vsel %vm4513, %v4507, %v2512
  %v4573 = vsel %vm4513, %v4508, %v2514
  %v4574 = vsel %vm4513, %v4509, %v2516
  %v4575 = vsel %vm4513, %v4510, %v2518
  %v4576 = vsel %vm4513, %v4511, %v2520
  %v4577 = vsel %vm4513, %v4512, %v2522
  %vm4578 = vcmask 392192
  %v4579 = vsel %vm4578, %v4514, %v2588
  %v4580 = vsel %vm4578, %v4515, %v2590
  %v4581 = vsel %vm4578, %v4516, %v2592
  %v4582 = vsel %vm4578, %v4517, %v2594
  %v4583 = vsel %vm4578, %v4518, %v2596
  %v4584 = vsel %vm4578, %v4519, %v2598
  %v4585 = vsel %vm4578, %v4520, %v2600
  %v4586 = vsel %vm4578, %v4521, %v2602
  %v4587 = vsel %vm4578, %v4522, %v2604
  %v4588 = vsel %vm4578, %v4523, %v2606
  %v4589 = vsel %vm4578, %v4524, %v2608
  %v4590 = vsel %vm4578, %v4525, %v2610
  %v4591 = vsel %vm4578, %v4526, %v2612
  %v4592 = vsel %vm4578, %v4527, %v2614
  %v4593 = vsel %vm4578, %v4528, %v2616
  %v4594 = vsel %vm4578, %v4529, %v2618
  %v4595 = vsel %vm4578, %v4530, %v2620
  %v4596 = vsel %vm4578, %v4531, %v2622
  %v4597 = vsel %vm4578, %v4532, %v2624
  %v4598 = vsel %vm4578, %v4533, %v2626
  %v4599 = vsel %vm4578, %v4534, %v2628
  %v4600 = vsel %vm4578, %v4535, %v2630
  %v4601 = vsel %vm4578, %v4536, %v2632
  %v4602 = vsel %vm4578, %v4537, %v2634
  %v4603 = vsel %vm4578, %v4538, %v2636
  %v4604 = vsel %vm4578, %v4539, %v2638
  %v4605 = vsel %vm4578, %v4540, %v2640
  %v4606 = vsel %vm4578, %v4541, %v2642
  %v4607 = vsel %vm4578, %v4542, %v2644
  %v4608 = vsel %vm4578, %v4543, %v2646
  %v4609 = vsel %vm4578, %v4544, %v2648
  %v4610 = vsel %vm4578, %v4545, %v2650
  %v4611 = vsel %vm4578, %v4546, %v2652
  %v4612 = vsel %vm4578, %v4547, %v2654
  %v4613 = vsel %vm4578, %v4548, %v2656
  %v4614 = vsel %vm4578, %v4549, %v2658
  %v4615 = vsel %vm4578, %v4550, %v2660
  %v4616 = vsel %vm4578, %v4551, %v2662
  %v4617 = vsel %vm4578, %v4552, %v2664
  %v4618 = vsel %vm4578, %v4553, %v2666
  %v4619 = vsel %vm4578, %v4554, %v2668
  %v4620 = vsel %vm4578, %v4555, %v2670
  %v4621 = vsel %vm4578, %v4556, %v2672
  %v4622 = vsel %vm4578, %v4557, %v2674
  %v4623 = vsel %vm4578, %v4558, %v2676
  %v4624 = vsel %vm4578, %v4559, %v2678
  %v4625 = vsel %vm4578, %v4560, %v2680
  %v4626 = vsel %vm4578, %v4561, %v2682
  %v4627 = vsel %vm4578, %v4562, %v2684
  %v4628 = vsel %vm4578, %v4563, %v2686
  %v4629 = vsel %vm4578, %v4564, %v2688
  %v4630 = vsel %vm4578, %v4565, %v2690
  %v4631 = vsel %vm4578, %v4566, %v2692
  %v4632 = vsel %vm4578, %v4567, %v2694
  %v4633 = vsel %vm4578, %v4568, %v2696
  %v4634 = vsel %vm4578, %v4569, %v2698
  %v4635 = vsel %vm4578, %v4570, %v2700
  %v4636 = vsel %vm4578, %v4571, %v2702
  %v4637 = vsel %vm4578, %v4572, %v2704
  %v4638 = vsel %vm4578, %v4573, %v2706
  %v4639 = vsel %vm4578, %v4574, %v2708
  %v4640 = vsel %vm4578, %v4575, %v2710
  %v4641 = vsel %vm4578, %v4576, %v2712
  %v4642 = vsel %vm4578, %v4577, %v2714
  %vm4643 = vcmask 424960
  %v4644 = vsel %vm4643, %v4579, %v2780
  %v4645 = vsel %vm4643, %v4580, %v2782
  %v4646 = vsel %vm4643, %v4581, %v2784
  %v4647 = vsel %vm4643, %v4582, %v2786
  %v4648 = vsel %vm4643, %v4583, %v2788
  %v4649 = vsel %vm4643, %v4584, %v2790
  %v4650 = vsel %vm4643, %v4585, %v2792
  %v4651 = vsel %vm4643, %v4586, %v2794
  %v4652 = vsel %vm4643, %v4587, %v2796
  %v4653 = vsel %vm4643, %v4588, %v2798
  %v4654 = vsel %vm4643, %v4589, %v2800
  %v4655 = vsel %vm4643, %v4590, %v2802
  %v4656 = vsel %vm4643, %v4591, %v2804
  %v4657 = vsel %vm4643, %v4592, %v2806
  %v4658 = vsel %vm4643, %v4593, %v2808
  %v4659 = vsel %vm4643, %v4594, %v2810
  %v4660 = vsel %vm4643, %v4595, %v2812
  %v4661 = vsel %vm4643, %v4596, %v2814
  %v4662 = vsel %vm4643, %v4597, %v2816
  %v4663 = vsel %vm4643, %v4598, %v2818
  %v4664 = vsel %vm4643, %v4599, %v2820
  %v4665 = vsel %vm4643, %v4600, %v2822
  %v4666 = vsel %vm4643, %v4601, %v2824
  %v4667 = vsel %vm4643, %v4602, %v2826
  %v4668 = vsel %vm4643, %v4603, %v2828
  %v4669 = vsel %vm4643, %v4604, %v2830
  %v4670 = vsel %vm4643, %v4605, %v2832
  %v4671 = vsel %vm4643, %v4606, %v2834
  %v4672 = vsel %vm4643, %v4607, %v2836
  %v4673 = vsel %vm4643, %v4608, %v2838
  %v4674 = vsel %vm4643, %v4609, %v2840
  %v4675 = vsel %vm4643, %v4610, %v2842
  %v4676 = vsel %vm4643, %v4611, %v2844
  %v4677 = vsel %vm4643, %v4612, %v2846
  %v4678 = vsel %vm4643, %v4613, %v2848
  %v4679 = vsel %vm4643, %v4614, %v2850
  %v4680 = vsel %vm4643, %v4615, %v2852
  %v4681 = vsel %vm4643, %v4616, %v2854
  %v4682 = vsel %vm4643, %v4617, %v2856
  %v4683 = vsel %vm4643, %v4618, %v2858
  %v4684 = vsel %vm4643, %v4619, %v2860
  %v4685 = vsel %vm4643, %v4620, %v2862
  %v4686 = vsel %vm4643, %v4621, %v2864
  %v4687 = vsel %vm4643, %v4622, %v2866
  %v4688 = vsel %vm4643, %v4623, %v2868
  %v4689 = vsel %vm4643, %v4624, %v2870
  %v4690 = vsel %vm4643, %v4625, %v2872
  %v4691 = vsel %vm4643, %v4626, %v2874
  %v4692 = vsel %vm4643, %v4627, %v2876
  %v4693 = vsel %vm4643, %v4628, %v2878
  %v4694 = vsel %vm4643, %v4629, %v2880
  %v4695 = vsel %vm4643, %v4630, %v2882
  %v4696 = vsel %vm4643, %v4631, %v2884
  %v4697 = vsel %vm4643, %v4632, %v2886
  %v4698 = vsel %vm4643, %v4633, %v2888
  %v4699 = vsel %vm4643, %v4634, %v2890
  %v4700 = vsel %vm4643, %v4635, %v2892
  %v4701 = vsel %vm4643, %v4636, %v2894
  %v4702 = vsel %vm4643, %v4637, %v2896
  %v4703 = vsel %vm4643, %v4638, %v2898
  %v4704 = vsel %vm4643, %v4639, %v2900
  %v4705 = vsel %vm4643, %v4640, %v2902
  %v4706 = vsel %vm4643, %v4641, %v2904
  %v4707 = vsel %vm4643, %v4642, %v2906
  %vm4708 = vcmask 490496
  %v4709 = vsel %vm4708, %v4644, %v2972
  %v4710 = vsel %vm4708, %v4645, %v2974
  %v4711 = vsel %vm4708, %v4646, %v2976
  %v4712 = vsel %vm4708, %v4647, %v2978
  %v4713 = vsel %vm4708, %v4648, %v2980
  %v4714 = vsel %vm4708, %v4649, %v2982
  %v4715 = vsel %vm4708, %v4650, %v2984
  %v4716 = vsel %vm4708, %v4651, %v2986
  %v4717 = vsel %vm4708, %v4652, %v2988
  %v4718 = vsel %vm4708, %v4653, %v2990
  %v4719 = vsel %vm4708, %v4654, %v2992
  %v4720 = vsel %vm4708, %v4655, %v2994
  %v4721 = vsel %vm4708, %v4656, %v2996
  %v4722 = vsel %vm4708, %v4657, %v2998
  %v4723 = vsel %vm4708, %v4658, %v3000
  %v4724 = vsel %vm4708, %v4659, %v3002
  %v4725 = vsel %vm4708, %v4660, %v3004
  %v4726 = vsel %vm4708, %v4661, %v3006
  %v4727 = vsel %vm4708, %v4662, %v3008
  %v4728 = vsel %vm4708, %v4663, %v3010
  %v4729 = vsel %vm4708, %v4664, %v3012
  %v4730 = vsel %vm4708, %v4665, %v3014
  %v4731 = vsel %vm4708, %v4666, %v3016
  %v4732 = vsel %vm4708, %v4667, %v3018
  %v4733 = vsel %vm4708, %v4668, %v3020
  %v4734 = vsel %vm4708, %v4669, %v3022
  %v4735 = vsel %vm4708, %v4670, %v3024
  %v4736 = vsel %vm4708, %v4671, %v3026
  %v4737 = vsel %vm4708, %v4672, %v3028
  %v4738 = vsel %vm4708, %v4673, %v3030
  %v4739 = vsel %vm4708, %v4674, %v3032
  %v4740 = vsel %vm4708, %v4675, %v3034
  %v4741 = vsel %vm4708, %v4676, %v3036
  %v4742 = vsel %vm4708, %v4677, %v3038
  %v4743 = vsel %vm4708, %v4678, %v3040
  %v4744 = vsel %vm4708, %v4679, %v3042
  %v4745 = vsel %vm4708, %v4680, %v3044
  %v4746 = vsel %vm4708, %v4681, %v3046
  %v4747 = vsel %vm4708, %v4682, %v3048
  %v4748 = vsel %vm4708, %v4683, %v3050
  %v4749 = vsel %vm4708, %v4684, %v3052
  %v4750 = vsel %vm4708, %v4685, %v3054
  %v4751 = vsel %vm4708, %v4686, %v3056
  %v4752 = vsel %vm4708, %v4687, %v3058
  %v4753 = vsel %vm4708, %v4688, %v3060
  %v4754 = vsel %vm4708, %v4689, %v3062
  %v4755 = vsel %vm4708, %v4690, %v3064
  %v4756 = vsel %vm4708, %v4691, %v3066
  %v4757 = vsel %vm4708, %v4692, %v3068
  %v4758 = vsel %vm4708, %v4693, %v3070
  %v4759 = vsel %vm4708, %v4694, %v3072
  %v4760 = vsel %vm4708, %v4695, %v3074
  %v4761 = vsel %vm4708, %v4696, %v3076
  %v4762 = vsel %vm4708, %v4697, %v3078
  %v4763 = vsel %vm4708, %v4698, %v3080
  %v4764 = vsel %vm4708, %v4699, %v3082
  %v4765 = vsel %vm4708, %v4700, %v3084
  %v4766 = vsel %vm4708, %v4701, %v3086
  %v4767 = vsel %vm4708, %v4702, %v3088
  %v4768 = vsel %vm4708, %v4703, %v3090
  %v4769 = vsel %vm4708, %v4704, %v3092
  %v4770 = vsel %vm4708, %v4705, %v3094
  %v4771 = vsel %vm4708, %v4706, %v3096
  %v4772 = vsel %vm4708, %v4707, %v3098
  %vm4773 = vcmask 523264
  %v4774 = vsel %vm4773, %v4709, %v3164
  %v4775 = vsel %vm4773, %v4710, %v3166
  %v4776 = vsel %vm4773, %v4711, %v3168
  %v4777 = vsel %vm4773, %v4712, %v3170
  %v4778 = vsel %vm4773, %v4713, %v3172
  %v4779 = vsel %vm4773, %v4714, %v3174
  %v4780 = vsel %vm4773, %v4715, %v3176
  %v4781 = vsel %vm4773, %v4716, %v3178
  %v4782 = vsel %vm4773, %v4717, %v3180
  %v4783 = vsel %vm4773, %v4718, %v3182
  %v4784 = vsel %vm4773, %v4719, %v3184
  %v4785 = vsel %vm4773, %v4720, %v3186
  %v4786 = vsel %vm4773, %v4721, %v3188
  %v4787 = vsel %vm4773, %v4722, %v3190
  %v4788 = vsel %vm4773, %v4723, %v3192
  %v4789 = vsel %vm4773, %v4724, %v3194
  %v4790 = vsel %vm4773, %v4725, %v3196
  %v4791 = vsel %vm4773, %v4726, %v3198
  %v4792 = vsel %vm4773, %v4727, %v3200
  %v4793 = vsel %vm4773, %v4728, %v3202
  %v4794 = vsel %vm4773, %v4729, %v3204
  %v4795 = vsel %vm4773, %v4730, %v3206
  %v4796 = vsel %vm4773, %v4731, %v3208
  %v4797 = vsel %vm4773, %v4732, %v3210
  %v4798 = vsel %vm4773, %v4733, %v3212
  %v4799 = vsel %vm4773, %v4734, %v3214
  %v4800 = vsel %vm4773, %v4735, %v3216
  %v4801 = vsel %vm4773, %v4736, %v3218
  %v4802 = vsel %vm4773, %v4737, %v3220
  %v4803 = vsel %vm4773, %v4738, %v3222
  %v4804 = vsel %vm4773, %v4739, %v3224
  %v4805 = vsel %vm4773, %v4740, %v3226
  %v4806 = vsel %vm4773, %v4741, %v3228
  %v4807 = vsel %vm4773, %v4742, %v3230
  %v4808 = vsel %vm4773, %v4743, %v3232
  %v4809 = vsel %vm4773, %v4744, %v3234
  %v4810 = vsel %vm4773, %v4745, %v3236
  %v4811 = vsel %vm4773, %v4746, %v3238
  %v4812 = vsel %vm4773, %v4747, %v3240
  %v4813 = vsel %vm4773, %v4748, %v3242
  %v4814 = vsel %vm4773, %v4749, %v3244
  %v4815 = vsel %vm4773, %v4750, %v3246
  %v4816 = vsel %vm4773, %v4751, %v3248
  %v4817 = vsel %vm4773, %v4752, %v3250
  %v4818 = vsel %vm4773, %v4753, %v3252
  %v4819 = vsel %vm4773, %v4754, %v3254
  %v4820 = vsel %vm4773, %v4755, %v3256
  %v4821 = vsel %vm4773, %v4756, %v3258
  %v4822 = vsel %vm4773, %v4757, %v3260
  %v4823 = vsel %vm4773, %v4758, %v3262
  %v4824 = vsel %vm4773, %v4759, %v3264
  %v4825 = vsel %vm4773, %v4760, %v3266
  %v4826 = vsel %vm4773, %v4761, %v3268
  %v4827 = vsel %vm4773, %v4762, %v3270
  %v4828 = vsel %vm4773, %v4763, %v3272
  %v4829 = vsel %vm4773, %v4764, %v3274
  %v4830 = vsel %vm4773, %v4765, %v3276
  %v4831 = vsel %vm4773, %v4766, %v3278
  %v4832 = vsel %vm4773, %v4767, %v3280
  %v4833 = vsel %vm4773, %v4768, %v3282
  %v4834 = vsel %vm4773, %v4769, %v3284
  %v4835 = vsel %vm4773, %v4770, %v3286
  %v4836 = vsel %vm4773, %v4771, %v3288
  %v4837 = vsel %vm4773, %v4772, %v3290
  %vm4838 = vcmask 588800
  %v4839 = vsel %vm4838, %v4774, %v3356
  %v4840 = vsel %vm4838, %v4775, %v3358
  %v4841 = vsel %vm4838, %v4776, %v3360
  %v4842 = vsel %vm4838, %v4777, %v3362
  %v4843 = vsel %vm4838, %v4778, %v3364
  %v4844 = vsel %vm4838, %v4779, %v3366
  %v4845 = vsel %vm4838, %v4780, %v3368
  %v4846 = vsel %vm4838, %v4781, %v3370
  %v4847 = vsel %vm4838, %v4782, %v3372
  %v4848 = vsel %vm4838, %v4783, %v3374
  %v4849 = vsel %vm4838, %v4784, %v3376
  %v4850 = vsel %vm4838, %v4785, %v3378
  %v4851 = vsel %vm4838, %v4786, %v3380
  %v4852 = vsel %vm4838, %v4787, %v3382
  %v4853 = vsel %vm4838, %v4788, %v3384
  %v4854 = vsel %vm4838, %v4789, %v3386
  %v4855 = vsel %vm4838, %v4790, %v3388
  %v4856 = vsel %vm4838, %v4791, %v3390
  %v4857 = vsel %vm4838, %v4792, %v3392
  %v4858 = vsel %vm4838, %v4793, %v3394
  %v4859 = vsel %vm4838, %v4794, %v3396
  %v4860 = vsel %vm4838, %v4795, %v3398
  %v4861 = vsel %vm4838, %v4796, %v3400
  %v4862 = vsel %vm4838, %v4797, %v3402
  %v4863 = vsel %vm4838, %v4798, %v3404
  %v4864 = vsel %vm4838, %v4799, %v3406
  %v4865 = vsel %vm4838, %v4800, %v3408
  %v4866 = vsel %vm4838, %v4801, %v3410
  %v4867 = vsel %vm4838, %v4802, %v3412
  %v4868 = vsel %vm4838, %v4803, %v3414
  %v4869 = vsel %vm4838, %v4804, %v3416
  %v4870 = vsel %vm4838, %v4805, %v3418
  %v4871 = vsel %vm4838, %v4806, %v3420
  %v4872 = vsel %vm4838, %v4807, %v3422
  %v4873 = vsel %vm4838, %v4808, %v3424
  %v4874 = vsel %vm4838, %v4809, %v3426
  %v4875 = vsel %vm4838, %v4810, %v3428
  %v4876 = vsel %vm4838, %v4811, %v3430
  %v4877 = vsel %vm4838, %v4812, %v3432
  %v4878 = vsel %vm4838, %v4813, %v3434
  %v4879 = vsel %vm4838, %v4814, %v3436
  %v4880 = vsel %vm4838, %v4815, %v3438
  %v4881 = vsel %vm4838, %v4816, %v3440
  %v4882 = vsel %vm4838, %v4817, %v3442
  %v4883 = vsel %vm4838, %v4818, %v3444
  %v4884 = vsel %vm4838, %v4819, %v3446
  %v4885 = vsel %vm4838, %v4820, %v3448
  %v4886 = vsel %vm4838, %v4821, %v3450
  %v4887 = vsel %vm4838, %v4822, %v3452
  %v4888 = vsel %vm4838, %v4823, %v3454
  %v4889 = vsel %vm4838, %v4824, %v3456
  %v4890 = vsel %vm4838, %v4825, %v3458
  %v4891 = vsel %vm4838, %v4826, %v3460
  %v4892 = vsel %vm4838, %v4827, %v3462
  %v4893 = vsel %vm4838, %v4828, %v3464
  %v4894 = vsel %vm4838, %v4829, %v3466
  %v4895 = vsel %vm4838, %v4830, %v3468
  %v4896 = vsel %vm4838, %v4831, %v3470
  %v4897 = vsel %vm4838, %v4832, %v3472
  %v4898 = vsel %vm4838, %v4833, %v3474
  %v4899 = vsel %vm4838, %v4834, %v3476
  %v4900 = vsel %vm4838, %v4835, %v3478
  %v4901 = vsel %vm4838, %v4836, %v3480
  %v4902 = vsel %vm4838, %v4837, %v3482
  %vm4903 = vcmask 621568
  %v4904 = vsel %vm4903, %v4839, %v3548
  %v4905 = vsel %vm4903, %v4840, %v3550
  %v4906 = vsel %vm4903, %v4841, %v3552
  %v4907 = vsel %vm4903, %v4842, %v3554
  %v4908 = vsel %vm4903, %v4843, %v3556
  %v4909 = vsel %vm4903, %v4844, %v3558
  %v4910 = vsel %vm4903, %v4845, %v3560
  %v4911 = vsel %vm4903, %v4846, %v3562
  %v4912 = vsel %vm4903, %v4847, %v3564
  %v4913 = vsel %vm4903, %v4848, %v3566
  %v4914 = vsel %vm4903, %v4849, %v3568
  %v4915 = vsel %vm4903, %v4850, %v3570
  %v4916 = vsel %vm4903, %v4851, %v3572
  %v4917 = vsel %vm4903, %v4852, %v3574
  %v4918 = vsel %vm4903, %v4853, %v3576
  %v4919 = vsel %vm4903, %v4854, %v3578
  %v4920 = vsel %vm4903, %v4855, %v3580
  %v4921 = vsel %vm4903, %v4856, %v3582
  %v4922 = vsel %vm4903, %v4857, %v3584
  %v4923 = vsel %vm4903, %v4858, %v3586
  %v4924 = vsel %vm4903, %v4859, %v3588
  %v4925 = vsel %vm4903, %v4860, %v3590
  %v4926 = vsel %vm4903, %v4861, %v3592
  %v4927 = vsel %vm4903, %v4862, %v3594
  %v4928 = vsel %vm4903, %v4863, %v3596
  %v4929 = vsel %vm4903, %v4864, %v3598
  %v4930 = vsel %vm4903, %v4865, %v3600
  %v4931 = vsel %vm4903, %v4866, %v3602
  %v4932 = vsel %vm4903, %v4867, %v3604
  %v4933 = vsel %vm4903, %v4868, %v3606
  %v4934 = vsel %vm4903, %v4869, %v3608
  %v4935 = vsel %vm4903, %v4870, %v3610
  %v4936 = vsel %vm4903, %v4871, %v3612
  %v4937 = vsel %vm4903, %v4872, %v3614
  %v4938 = vsel %vm4903, %v4873, %v3616
  %v4939 = vsel %vm4903, %v4874, %v3618
  %v4940 = vsel %vm4903, %v4875, %v3620
  %v4941 = vsel %vm4903, %v4876, %v3622
  %v4942 = vsel %vm4903, %v4877, %v3624
  %v4943 = vsel %vm4903, %v4878, %v3626
  %v4944 = vsel %vm4903, %v4879, %v3628
  %v4945 = vsel %vm4903, %v4880, %v3630
  %v4946 = vsel %vm4903, %v4881, %v3632
  %v4947 = vsel %vm4903, %v4882, %v3634
  %v4948 = vsel %vm4903, %v4883, %v3636
  %v4949 = vsel %vm4903, %v4884, %v3638
  %v4950 = vsel %vm4903, %v4885, %v3640
  %v4951 = vsel %vm4903, %v4886, %v3642
  %v4952 = vsel %vm4903, %v4887, %v3644
  %v4953 = vsel %vm4903, %v4888, %v3646
  %v4954 = vsel %vm4903, %v4889, %v3648
  %v4955 = vsel %vm4903, %v4890, %v3650
  %v4956 = vsel %vm4903, %v4891, %v3652
  %v4957 = vsel %vm4903, %v4892, %v3654
  %v4958 = vsel %vm4903, %v4893, %v3656
  %v4959 = vsel %vm4903, %v4894, %v3658
  %v4960 = vsel %vm4903, %v4895, %v3660
  %v4961 = vsel %vm4903, %v4896, %v3662
  %v4962 = vsel %vm4903, %v4897, %v3664
  %v4963 = vsel %vm4903, %v4898, %v3666
  %v4964 = vsel %vm4903, %v4899, %v3668
  %v4965 = vsel %vm4903, %v4900, %v3670
  %v4966 = vsel %vm4903, %v4901, %v3672
  %v4967 = vsel %vm4903, %v4902, %v3674
  %vm4968 = vcmask 687104
  %v4969 = vsel %vm4968, %v4904, %v3740
  %v4970 = vsel %vm4968, %v4905, %v3742
  %v4971 = vsel %vm4968, %v4906, %v3744
  %v4972 = vsel %vm4968, %v4907, %v3746
  %v4973 = vsel %vm4968, %v4908, %v3748
  %v4974 = vsel %vm4968, %v4909, %v3750
  %v4975 = vsel %vm4968, %v4910, %v3752
  %v4976 = vsel %vm4968, %v4911, %v3754
  %v4977 = vsel %vm4968, %v4912, %v3756
  %v4978 = vsel %vm4968, %v4913, %v3758
  %v4979 = vsel %vm4968, %v4914, %v3760
  %v4980 = vsel %vm4968, %v4915, %v3762
  %v4981 = vsel %vm4968, %v4916, %v3764
  %v4982 = vsel %vm4968, %v4917, %v3766
  %v4983 = vsel %vm4968, %v4918, %v3768
  %v4984 = vsel %vm4968, %v4919, %v3770
  %v4985 = vsel %vm4968, %v4920, %v3772
  %v4986 = vsel %vm4968, %v4921, %v3774
  %v4987 = vsel %vm4968, %v4922, %v3776
  %v4988 = vsel %vm4968, %v4923, %v3778
  %v4989 = vsel %vm4968, %v4924, %v3780
  %v4990 = vsel %vm4968, %v4925, %v3782
  %v4991 = vsel %vm4968, %v4926, %v3784
  %v4992 = vsel %vm4968, %v4927, %v3786
  %v4993 = vsel %vm4968, %v4928, %v3788
  %v4994 = vsel %vm4968, %v4929, %v3790
  %v4995 = vsel %vm4968, %v4930, %v3792
  %v4996 = vsel %vm4968, %v4931, %v3794
  %v4997 = vsel %vm4968, %v4932, %v3796
  %v4998 = vsel %vm4968, %v4933, %v3798
  %v4999 = vsel %vm4968, %v4934, %v3800
  %v5000 = vsel %vm4968, %v4935, %v3802
  %v5001 = vsel %vm4968, %v4936, %v3804
  %v5002 = vsel %vm4968, %v4937, %v3806
  %v5003 = vsel %vm4968, %v4938, %v3808
  %v5004 = vsel %vm4968, %v4939, %v3810
  %v5005 = vsel %vm4968, %v4940, %v3812
  %v5006 = vsel %vm4968, %v4941, %v3814
  %v5007 = vsel %vm4968, %v4942, %v3816
  %v5008 = vsel %vm4968, %v4943, %v3818
  %v5009 = vsel %vm4968, %v4944, %v3820
  %v5010 = vsel %vm4968, %v4945, %v3822
  %v5011 = vsel %vm4968, %v4946, %v3824
  %v5012 = vsel %vm4968, %v4947, %v3826
  %v5013 = vsel %vm4968, %v4948, %v3828
  %v5014 = vsel %vm4968, %v4949, %v3830
  %v5015 = vsel %vm4968, %v4950, %v3832
  %v5016 = vsel %vm4968, %v4951, %v3834
  %v5017 = vsel %vm4968, %v4952, %v3836
  %v5018 = vsel %vm4968, %v4953, %v3838
  %v5019 = vsel %vm4968, %v4954, %v3840
  %v5020 = vsel %vm4968, %v4955, %v3842
  %v5021 = vsel %vm4968, %v4956, %v3844
  %v5022 = vsel %vm4968, %v4957, %v3846
  %v5023 = vsel %vm4968, %v4958, %v3848
  %v5024 = vsel %vm4968, %v4959, %v3850
  %v5025 = vsel %vm4968, %v4960, %v3852
  %v5026 = vsel %vm4968, %v4961, %v3854
  %v5027 = vsel %vm4968, %v4962, %v3856
  %v5028 = vsel %vm4968, %v4963, %v3858
  %v5029 = vsel %vm4968, %v4964, %v3860
  %v5030 = vsel %vm4968, %v4965, %v3862
  %v5031 = vsel %vm4968, %v4966, %v3864
  %v5032 = vsel %vm4968, %v4967, %v3866
  %vm5033 = vcmask 719872
  %v5034 = vsel %vm5033, %v4969, %v3932
  %v5035 = vsel %vm5033, %v4970, %v3934
  %v5036 = vsel %vm5033, %v4971, %v3936
  %v5037 = vsel %vm5033, %v4972, %v3938
  %v5038 = vsel %vm5033, %v4973, %v3940
  %v5039 = vsel %vm5033, %v4974, %v3942
  %v5040 = vsel %vm5033, %v4975, %v3944
  %v5041 = vsel %vm5033, %v4976, %v3946
  %v5042 = vsel %vm5033, %v4977, %v3948
  %v5043 = vsel %vm5033, %v4978, %v3950
  %v5044 = vsel %vm5033, %v4979, %v3952
  %v5045 = vsel %vm5033, %v4980, %v3954
  %v5046 = vsel %vm5033, %v4981, %v3956
  %v5047 = vsel %vm5033, %v4982, %v3958
  %v5048 = vsel %vm5033, %v4983, %v3960
  %v5049 = vsel %vm5033, %v4984, %v3962
  %v5050 = vsel %vm5033, %v4985, %v3964
  %v5051 = vsel %vm5033, %v4986, %v3966
  %v5052 = vsel %vm5033, %v4987, %v3968
  %v5053 = vsel %vm5033, %v4988, %v3970
  %v5054 = vsel %vm5033, %v4989, %v3972
  %v5055 = vsel %vm5033, %v4990, %v3974
  %v5056 = vsel %vm5033, %v4991, %v3976
  %v5057 = vsel %vm5033, %v4992, %v3978
  %v5058 = vsel %vm5033, %v4993, %v3980
  %v5059 = vsel %vm5033, %v4994, %v3982
  %v5060 = vsel %vm5033, %v4995, %v3984
  %v5061 = vsel %vm5033, %v4996, %v3986
  %v5062 = vsel %vm5033, %v4997, %v3988
  %v5063 = vsel %vm5033, %v4998, %v3990
  %v5064 = vsel %vm5033, %v4999, %v3992
  %v5065 = vsel %vm5033, %v5000, %v3994
  %v5066 = vsel %vm5033, %v5001, %v3996
  %v5067 = vsel %vm5033, %v5002, %v3998
  %v5068 = vsel %vm5033, %v5003, %v4000
  %v5069 = vsel %vm5033, %v5004, %v4002
  %v5070 = vsel %vm5033, %v5005, %v4004
  %v5071 = vsel %vm5033, %v5006, %v4006
  %v5072 = vsel %vm5033, %v5007, %v4008
  %v5073 = vsel %vm5033, %v5008, %v4010
  %v5074 = vsel %vm5033, %v5009, %v4012
  %v5075 = vsel %vm5033, %v5010, %v4014
  %v5076 = vsel %vm5033, %v5011, %v4016
  %v5077 = vsel %vm5033, %v5012, %v4018
  %v5078 = vsel %vm5033, %v5013, %v4020
  %v5079 = vsel %vm5033, %v5014, %v4022
  %v5080 = vsel %vm5033, %v5015, %v4024
  %v5081 = vsel %vm5033, %v5016, %v4026
  %v5082 = vsel %vm5033, %v5017, %v4028
  %v5083 = vsel %vm5033, %v5018, %v4030
  %v5084 = vsel %vm5033, %v5019, %v4032
  %v5085 = vsel %vm5033, %v5020, %v4034
  %v5086 = vsel %vm5033, %v5021, %v4036
  %v5087 = vsel %vm5033, %v5022, %v4038
  %v5088 = vsel %vm5033, %v5023, %v4040
  %v5089 = vsel %vm5033, %v5024, %v4042
  %v5090 = vsel %vm5033, %v5025, %v4044
  %v5091 = vsel %vm5033, %v5026, %v4046
  %v5092 = vsel %vm5033, %v5027, %v4048
  %v5093 = vsel %vm5033, %v5028, %v4050
  %v5094 = vsel %vm5033, %v5029, %v4052
  %v5095 = vsel %vm5033, %v5030, %v4054
  %v5096 = vsel %vm5033, %v5031, %v4056
  %v5097 = vsel %vm5033, %v5032, %v4058
  %5098 = vrot.lane.b32.xlu0 %v927, 4
  %v5099 = vpop.permute.xlu0 %5098
  %5100 = vrot.lane.b32.xlu0 %v929, 4
  %v5101 = vpop.permute.xlu0 %5100
  %5102 = vrot.lane.b32.xlu0 %v932, 4
  %v5103 = vpop.permute.xlu0 %5102
  %5104 = vrot.lane.b32.xlu0 %v934, 4
  %v5105 = vpop.permute.xlu0 %5104
  %5106 = vrot.lane.b32.xlu0 %v937, 4
  %v5107 = vpop.permute.xlu0 %5106
  %5108 = vrot.lane.b32.xlu0 %v939, 4
  %v5109 = vpop.permute.xlu0 %5108
  %5110 = vrot.lane.b32.xlu0 %v942, 4
  %v5111 = vpop.permute.xlu0 %5110
  %5112 = vrot.lane.b32.xlu0 %v944, 4
  %v5113 = vpop.permute.xlu0 %5112
  %5114 = vrot.lane.b32.xlu0 %v947, 4
  %v5115 = vpop.permute.xlu0 %5114
  %5116 = vrot.lane.b32.xlu0 %v949, 4
  %v5117 = vpop.permute.xlu0 %5116
  %5118 = vrot.lane.b32.xlu0 %v952, 4
  %v5119 = vpop.permute.xlu0 %5118
  %5120 = vrot.lane.b32.xlu0 %v954, 4
  %v5121 = vpop.permute.xlu0 %5120
  %5122 = vrot.lane.b32.xlu0 %v957, 4
  %v5123 = vpop.permute.xlu0 %5122
  %5124 = vrot.lane.b32.xlu0 %v959, 4
  %v5125 = vpop.permute.xlu0 %5124
  %5126 = vrot.lane.b32.xlu0 %v962, 4
  %v5127 = vpop.permute.xlu0 %5126
  %5128 = vrot.lane.b32.xlu0 %v964, 4
  %v5129 = vpop.permute.xlu0 %5128
  %5130 = vrot.lane.b32.xlu0 %v967, 4
  %v5131 = vpop.permute.xlu0 %5130
  %5132 = vrot.lane.b32.xlu0 %v969, 4
  %v5133 = vpop.permute.xlu0 %5132
  %5134 = vrot.lane.b32.xlu0 %v972, 4
  %v5135 = vpop.permute.xlu0 %5134
  %5136 = vrot.lane.b32.xlu0 %v974, 4
  %v5137 = vpop.permute.xlu0 %5136
  %5138 = vrot.lane.b32.xlu0 %v977, 4
  %v5139 = vpop.permute.xlu0 %5138
  %5140 = vrot.lane.b32.xlu0 %v979, 4
  %v5141 = vpop.permute.xlu0 %5140
  %5142 = vrot.lane.b32.xlu0 %v982, 4
  %v5143 = vpop.permute.xlu0 %5142
  %5144 = vrot.lane.b32.xlu0 %v984, 4
  %v5145 = vpop.permute.xlu0 %5144
  %5146 = vrot.lane.b32.xlu0 %v987, 4
  %v5147 = vpop.permute.xlu0 %5146
  %5148 = vrot.lane.b32.xlu0 %v989, 4
  %v5149 = vpop.permute.xlu0 %5148
  %5150 = vrot.lane.b32.xlu0 %v992, 4
  %v5151 = vpop.permute.xlu0 %5150
  %5152 = vrot.lane.b32.xlu0 %v994, 4
  %v5153 = vpop.permute.xlu0 %5152
  %5154 = vrot.lane.b32.xlu0 %v1119, 4
  %v5155 = vpop.permute.xlu0 %5154
  %5156 = vrot.lane.b32.xlu0 %v1121, 4
  %v5157 = vpop.permute.xlu0 %5156
  %5158 = vrot.lane.b32.xlu0 %v1235, 4
  %v5159 = vpop.permute.xlu0 %5158
  %5160 = vrot.lane.b32.xlu0 %v1237, 4
  %v5161 = vpop.permute.xlu0 %5160
  %5162 = vrot.lane.b32.xlu0 %v1007, 4
  %v5163 = vpop.permute.xlu0 %5162
  %5164 = vrot.lane.b32.xlu0 %v1009, 4
  %v5165 = vpop.permute.xlu0 %5164
  %5166 = vrot.lane.b32.xlu0 %v1012, 4
  %v5167 = vpop.permute.xlu0 %5166
  %5168 = vrot.lane.b32.xlu0 %v1014, 4
  %v5169 = vpop.permute.xlu0 %5168
  %5170 = vrot.lane.b32.xlu0 %v1017, 4
  %v5171 = vpop.permute.xlu0 %5170
  %5172 = vrot.lane.b32.xlu0 %v1019, 4
  %v5173 = vpop.permute.xlu0 %5172
  %5174 = vrot.lane.b32.xlu0 %v1022, 4
  %v5175 = vpop.permute.xlu0 %5174
  %5176 = vrot.lane.b32.xlu0 %v1024, 4
  %v5177 = vpop.permute.xlu0 %5176
  %5178 = vrot.lane.b32.xlu0 %v1027, 4
  %v5179 = vpop.permute.xlu0 %5178
  %5180 = vrot.lane.b32.xlu0 %v1029, 4
  %v5181 = vpop.permute.xlu0 %5180
  %5182 = vrot.lane.b32.xlu0 %v1032, 4
  %v5183 = vpop.permute.xlu0 %5182
  %5184 = vrot.lane.b32.xlu0 %v1034, 4
  %v5185 = vpop.permute.xlu0 %5184
  %5186 = vrot.lane.b32.xlu0 %v1037, 4
  %v5187 = vpop.permute.xlu0 %5186
  %5188 = vrot.lane.b32.xlu0 %v1039, 4
  %v5189 = vpop.permute.xlu0 %5188
  %5190 = vrot.lane.b32.xlu0 %v1042, 4
  %v5191 = vpop.permute.xlu0 %5190
  %5192 = vrot.lane.b32.xlu0 %v1044, 4
  %v5193 = vpop.permute.xlu0 %5192
  %5194 = vrot.lane.b32.xlu0 %v1047, 4
  %v5195 = vpop.permute.xlu0 %5194
  %5196 = vrot.lane.b32.xlu0 %v1049, 4
  %v5197 = vpop.permute.xlu0 %5196
  %5198 = vrot.lane.b32.xlu0 %v1052, 4
  %v5199 = vpop.permute.xlu0 %5198
  %5200 = vrot.lane.b32.xlu0 %v1054, 4
  %v5201 = vpop.permute.xlu0 %5200
  %5202 = vrot.lane.b32.xlu0 %v1057, 4
  %v5203 = vpop.permute.xlu0 %5202
  %5204 = vrot.lane.b32.xlu0 %v1059, 4
  %v5205 = vpop.permute.xlu0 %5204
  %5206 = vrot.lane.b32.xlu0 %v1062, 4
  %v5207 = vpop.permute.xlu0 %5206
  %5208 = vrot.lane.b32.xlu0 %v1064, 4
  %v5209 = vpop.permute.xlu0 %5208
  %5210 = vrot.lane.b32.xlu0 %v1067, 4
  %v5211 = vpop.permute.xlu0 %5210
  %5212 = vrot.lane.b32.xlu0 %v1069, 4
  %v5213 = vpop.permute.xlu0 %5212
  %5214 = vrot.lane.b32.xlu0 %v1072, 4
  %v5215 = vpop.permute.xlu0 %5214
  %5216 = vrot.lane.b32.xlu0 %v1074, 4
  %v5217 = vpop.permute.xlu0 %5216
  %5218 = vrot.lane.b32.xlu0 %v1124, 4
  %v5219 = vpop.permute.xlu0 %5218
  %5220 = vrot.lane.b32.xlu0 %v1126, 4
  %v5221 = vpop.permute.xlu0 %5220
  %5222 = vrot.lane.b32.xlu0 %v1240, 4
  %v5223 = vpop.permute.xlu0 %5222
  %5224 = vrot.lane.b32.xlu0 %v1242, 4
  %v5225 = vpop.permute.xlu0 %5224
  %v5290 = vsel %vm4123, %v767, %v5099
  %v5291 = vsel %vm4123, %v769, %v5101
  %v5292 = vsel %vm4123, %v772, %v5103
  %v5293 = vsel %vm4123, %v774, %v5105
  %v5294 = vsel %vm4123, %v777, %v5107
  %v5295 = vsel %vm4123, %v779, %v5109
  %v5296 = vsel %vm4123, %v782, %v5111
  %v5297 = vsel %vm4123, %v784, %v5113
  %v5298 = vsel %vm4123, %v787, %v5115
  %v5299 = vsel %vm4123, %v789, %v5117
  %v5300 = vsel %vm4123, %v792, %v5119
  %v5301 = vsel %vm4123, %v794, %v5121
  %v5302 = vsel %vm4123, %v797, %v5123
  %v5303 = vsel %vm4123, %v799, %v5125
  %v5304 = vsel %vm4123, %v802, %v5127
  %v5305 = vsel %vm4123, %v804, %v5129
  %v5306 = vsel %vm4123, %v807, %v5131
  %v5307 = vsel %vm4123, %v809, %v5133
  %v5308 = vsel %vm4123, %v812, %v5135
  %v5309 = vsel %vm4123, %v814, %v5137
  %v5310 = vsel %vm4123, %v817, %v5139
  %v5311 = vsel %vm4123, %v819, %v5141
  %v5312 = vsel %vm4123, %v822, %v5143
  %v5313 = vsel %vm4123, %v824, %v5145
  %v5314 = vsel %vm4123, %v827, %v5147
  %v5315 = vsel %vm4123, %v829, %v5149
  %v5316 = vsel %vm4123, %v832, %v5151
  %v5317 = vsel %vm4123, %v834, %v5153
  %v5318 = vsel %vm4123, %v1109, %v5155
  %v5319 = vsel %vm4123, %v1111, %v5157
  %v5320 = vsel %vm4123, %v1161, %v5159
  %v5321 = vsel %vm4123, %v1163, %v5161
  %v5322 = vsel %vm4123, %v847, %v5163
  %v5323 = vsel %vm4123, %v849, %v5165
  %v5324 = vsel %vm4123, %v852, %v5167
  %v5325 = vsel %vm4123, %v854, %v5169
  %v5326 = vsel %vm4123, %v857, %v5171
  %v5327 = vsel %vm4123, %v859, %v5173
  %v5328 = vsel %vm4123, %v862, %v5175
  %v5329 = vsel %vm4123, %v864, %v5177
  %v5330 = vsel %vm4123, %v867, %v5179
  %v5331 = vsel %vm4123, %v869, %v5181
  %v5332 = vsel %vm4123, %v872, %v5183
  %v5333 = vsel %vm4123, %v874, %v5185
  %v5334 = vsel %vm4123, %v877, %v5187
  %v5335 = vsel %vm4123, %v879, %v5189
  %v5336 = vsel %vm4123, %v882, %v5191
  %v5337 = vsel %vm4123, %v884, %v5193
  %v5338 = vsel %vm4123, %v887, %v5195
  %v5339 = vsel %vm4123, %v889, %v5197
  %v5340 = vsel %vm4123, %v892, %v5199
  %v5341 = vsel %vm4123, %v894, %v5201
  %v5342 = vsel %vm4123, %v897, %v5203
  %v5343 = vsel %vm4123, %v899, %v5205
  %v5344 = vsel %vm4123, %v902, %v5207
  %v5345 = vsel %vm4123, %v904, %v5209
  %v5346 = vsel %vm4123, %v907, %v5211
  %v5347 = vsel %vm4123, %v909, %v5213
  %v5348 = vsel %vm4123, %v912, %v5215
  %v5349 = vsel %vm4123, %v914, %v5217
  %v5350 = vsel %vm4123, %v1114, %v5219
  %v5351 = vsel %vm4123, %v1116, %v5221
  %v5352 = vsel %vm4123, %v1166, %v5223
  %v5353 = vsel %vm4123, %v1168, %v5225
  %5418 = vrot.lane.b32.xlu0 %v5290, 96
  %v5419 = vpop.permute.xlu0 %5418
  %5420 = vrot.lane.b32.xlu0 %v5291, 96
  %v5421 = vpop.permute.xlu0 %5420
  %5422 = vrot.lane.b32.xlu0 %v5292, 96
  %v5423 = vpop.permute.xlu0 %5422
  %5424 = vrot.lane.b32.xlu0 %v5293, 96
  %v5425 = vpop.permute.xlu0 %5424
  %5426 = vrot.lane.b32.xlu0 %v5294, 96
  %v5427 = vpop.permute.xlu0 %5426
  %5428 = vrot.lane.b32.xlu0 %v5295, 96
  %v5429 = vpop.permute.xlu0 %5428
  %5430 = vrot.lane.b32.xlu0 %v5296, 96
  %v5431 = vpop.permute.xlu0 %5430
  %5432 = vrot.lane.b32.xlu0 %v5297, 96
  %v5433 = vpop.permute.xlu0 %5432
  %5434 = vrot.lane.b32.xlu0 %v5298, 96
  %v5435 = vpop.permute.xlu0 %5434
  %5436 = vrot.lane.b32.xlu0 %v5299, 96
  %v5437 = vpop.permute.xlu0 %5436
  %5438 = vrot.lane.b32.xlu0 %v5300, 96
  %v5439 = vpop.permute.xlu0 %5438
  %5440 = vrot.lane.b32.xlu0 %v5301, 96
  %v5441 = vpop.permute.xlu0 %5440
  %5442 = vrot.lane.b32.xlu0 %v5302, 96
  %v5443 = vpop.permute.xlu0 %5442
  %5444 = vrot.lane.b32.xlu0 %v5303, 96
  %v5445 = vpop.permute.xlu0 %5444
  %5446 = vrot.lane.b32.xlu0 %v5304, 96
  %v5447 = vpop.permute.xlu0 %5446
  %5448 = vrot.lane.b32.xlu0 %v5305, 96
  %v5449 = vpop.permute.xlu0 %5448
  %5450 = vrot.lane.b32.xlu0 %v5306, 96
  %v5451 = vpop.permute.xlu0 %5450
  %5452 = vrot.lane.b32.xlu0 %v5307, 96
  %v5453 = vpop.permute.xlu0 %5452
  %5454 = vrot.lane.b32.xlu0 %v5308, 96
  %v5455 = vpop.permute.xlu0 %5454
  %5456 = vrot.lane.b32.xlu0 %v5309, 96
  %v5457 = vpop.permute.xlu0 %5456
  %5458 = vrot.lane.b32.xlu0 %v5310, 96
  %v5459 = vpop.permute.xlu0 %5458
  %5460 = vrot.lane.b32.xlu0 %v5311, 96
  %v5461 = vpop.permute.xlu0 %5460
  %5462 = vrot.lane.b32.xlu0 %v5312, 96
  %v5463 = vpop.permute.xlu0 %5462
  %5464 = vrot.lane.b32.xlu0 %v5313, 96
  %v5465 = vpop.permute.xlu0 %5464
  %5466 = vrot.lane.b32.xlu0 %v5314, 96
  %v5467 = vpop.permute.xlu0 %5466
  %5468 = vrot.lane.b32.xlu0 %v5315, 96
  %v5469 = vpop.permute.xlu0 %5468
  %5470 = vrot.lane.b32.xlu0 %v5316, 96
  %v5471 = vpop.permute.xlu0 %5470
  %5472 = vrot.lane.b32.xlu0 %v5317, 96
  %v5473 = vpop.permute.xlu0 %5472
  %5474 = vrot.lane.b32.xlu0 %v5318, 96
  %v5475 = vpop.permute.xlu0 %5474
  %5476 = vrot.lane.b32.xlu0 %v5319, 96
  %v5477 = vpop.permute.xlu0 %5476
  %5478 = vrot.lane.b32.xlu0 %v5320, 96
  %v5479 = vpop.permute.xlu0 %5478
  %5480 = vrot.lane.b32.xlu0 %v5321, 96
  %v5481 = vpop.permute.xlu0 %5480
  %5482 = vrot.lane.b32.xlu0 %v5322, 96
  %v5483 = vpop.permute.xlu0 %5482
  %5484 = vrot.lane.b32.xlu0 %v5323, 96
  %v5485 = vpop.permute.xlu0 %5484
  %5486 = vrot.lane.b32.xlu0 %v5324, 96
  %v5487 = vpop.permute.xlu0 %5486
  %5488 = vrot.lane.b32.xlu0 %v5325, 96
  %v5489 = vpop.permute.xlu0 %5488
  %5490 = vrot.lane.b32.xlu0 %v5326, 96
  %v5491 = vpop.permute.xlu0 %5490
  %5492 = vrot.lane.b32.xlu0 %v5327, 96
  %v5493 = vpop.permute.xlu0 %5492
  %5494 = vrot.lane.b32.xlu0 %v5328, 96
  %v5495 = vpop.permute.xlu0 %5494
  %5496 = vrot.lane.b32.xlu0 %v5329, 96
  %v5497 = vpop.permute.xlu0 %5496
  %5498 = vrot.lane.b32.xlu0 %v5330, 96
  %v5499 = vpop.permute.xlu0 %5498
  %5500 = vrot.lane.b32.xlu0 %v5331, 96
  %v5501 = vpop.permute.xlu0 %5500
  %5502 = vrot.lane.b32.xlu0 %v5332, 96
  %v5503 = vpop.permute.xlu0 %5502
  %5504 = vrot.lane.b32.xlu0 %v5333, 96
  %v5505 = vpop.permute.xlu0 %5504
  %5506 = vrot.lane.b32.xlu0 %v5334, 96
  %v5507 = vpop.permute.xlu0 %5506
  %5508 = vrot.lane.b32.xlu0 %v5335, 96
  %v5509 = vpop.permute.xlu0 %5508
  %5510 = vrot.lane.b32.xlu0 %v5336, 96
  %v5511 = vpop.permute.xlu0 %5510
  %5512 = vrot.lane.b32.xlu0 %v5337, 96
  %v5513 = vpop.permute.xlu0 %5512
  %5514 = vrot.lane.b32.xlu0 %v5338, 96
  %v5515 = vpop.permute.xlu0 %5514
  %5516 = vrot.lane.b32.xlu0 %v5339, 96
  %v5517 = vpop.permute.xlu0 %5516
  %5518 = vrot.lane.b32.xlu0 %v5340, 96
  %v5519 = vpop.permute.xlu0 %5518
  %5520 = vrot.lane.b32.xlu0 %v5341, 96
  %v5521 = vpop.permute.xlu0 %5520
  %5522 = vrot.lane.b32.xlu0 %v5342, 96
  %v5523 = vpop.permute.xlu0 %5522
  %5524 = vrot.lane.b32.xlu0 %v5343, 96
  %v5525 = vpop.permute.xlu0 %5524
  %5526 = vrot.lane.b32.xlu0 %v5344, 96
  %v5527 = vpop.permute.xlu0 %5526
  %5528 = vrot.lane.b32.xlu0 %v5345, 96
  %v5529 = vpop.permute.xlu0 %5528
  %5530 = vrot.lane.b32.xlu0 %v5346, 96
  %v5531 = vpop.permute.xlu0 %5530
  %5532 = vrot.lane.b32.xlu0 %v5347, 96
  %v5533 = vpop.permute.xlu0 %5532
  %5534 = vrot.lane.b32.xlu0 %v5348, 96
  %v5535 = vpop.permute.xlu0 %5534
  %5536 = vrot.lane.b32.xlu0 %v5349, 96
  %v5537 = vpop.permute.xlu0 %5536
  %5538 = vrot.lane.b32.xlu0 %v5350, 96
  %v5539 = vpop.permute.xlu0 %5538
  %5540 = vrot.lane.b32.xlu0 %v5351, 96
  %v5541 = vpop.permute.xlu0 %5540
  %5542 = vrot.lane.b32.xlu0 %v5352, 96
  %v5543 = vpop.permute.xlu0 %5542
  %5544 = vrot.lane.b32.xlu0 %v5353, 96
  %v5545 = vpop.permute.xlu0 %5544
  %vm5610 = vcmask 785408
  %v5611 = vsel %vm5610, %v5034, %v5419
  %v5612 = vsel %vm5610, %v5035, %v5421
  %v5613 = vsel %vm5610, %v5036, %v5423
  %v5614 = vsel %vm5610, %v5037, %v5425
  %v5615 = vsel %vm5610, %v5038, %v5427
  %v5616 = vsel %vm5610, %v5039, %v5429
  %v5617 = vsel %vm5610, %v5040, %v5431
  %v5618 = vsel %vm5610, %v5041, %v5433
  %v5619 = vsel %vm5610, %v5042, %v5435
  %v5620 = vsel %vm5610, %v5043, %v5437
  %v5621 = vsel %vm5610, %v5044, %v5439
  %v5622 = vsel %vm5610, %v5045, %v5441
  %v5623 = vsel %vm5610, %v5046, %v5443
  %v5624 = vsel %vm5610, %v5047, %v5445
  %v5625 = vsel %vm5610, %v5048, %v5447
  %v5626 = vsel %vm5610, %v5049, %v5449
  %v5627 = vsel %vm5610, %v5050, %v5451
  %v5628 = vsel %vm5610, %v5051, %v5453
  %v5629 = vsel %vm5610, %v5052, %v5455
  %v5630 = vsel %vm5610, %v5053, %v5457
  %v5631 = vsel %vm5610, %v5054, %v5459
  %v5632 = vsel %vm5610, %v5055, %v5461
  %v5633 = vsel %vm5610, %v5056, %v5463
  %v5634 = vsel %vm5610, %v5057, %v5465
  %v5635 = vsel %vm5610, %v5058, %v5467
  %v5636 = vsel %vm5610, %v5059, %v5469
  %v5637 = vsel %vm5610, %v5060, %v5471
  %v5638 = vsel %vm5610, %v5061, %v5473
  %v5639 = vsel %vm5610, %v5062, %v5475
  %v5640 = vsel %vm5610, %v5063, %v5477
  %v5641 = vsel %vm5610, %v5064, %v5479
  %v5642 = vsel %vm5610, %v5065, %v5481
  %v5643 = vsel %vm5610, %v5066, %v5483
  %v5644 = vsel %vm5610, %v5067, %v5485
  %v5645 = vsel %vm5610, %v5068, %v5487
  %v5646 = vsel %vm5610, %v5069, %v5489
  %v5647 = vsel %vm5610, %v5070, %v5491
  %v5648 = vsel %vm5610, %v5071, %v5493
  %v5649 = vsel %vm5610, %v5072, %v5495
  %v5650 = vsel %vm5610, %v5073, %v5497
  %v5651 = vsel %vm5610, %v5074, %v5499
  %v5652 = vsel %vm5610, %v5075, %v5501
  %v5653 = vsel %vm5610, %v5076, %v5503
  %v5654 = vsel %vm5610, %v5077, %v5505
  %v5655 = vsel %vm5610, %v5078, %v5507
  %v5656 = vsel %vm5610, %v5079, %v5509
  %v5657 = vsel %vm5610, %v5080, %v5511
  %v5658 = vsel %vm5610, %v5081, %v5513
  %v5659 = vsel %vm5610, %v5082, %v5515
  %v5660 = vsel %vm5610, %v5083, %v5517
  %v5661 = vsel %vm5610, %v5084, %v5519
  %v5662 = vsel %vm5610, %v5085, %v5521
  %v5663 = vsel %vm5610, %v5086, %v5523
  %v5664 = vsel %vm5610, %v5087, %v5525
  %v5665 = vsel %vm5610, %v5088, %v5527
  %v5666 = vsel %vm5610, %v5089, %v5529
  %v5667 = vsel %vm5610, %v5090, %v5531
  %v5668 = vsel %vm5610, %v5091, %v5533
  %v5669 = vsel %vm5610, %v5092, %v5535
  %v5670 = vsel %vm5610, %v5093, %v5537
  %v5671 = vsel %vm5610, %v5094, %v5539
  %v5672 = vsel %vm5610, %v5095, %v5541
  %v5673 = vsel %vm5610, %v5096, %v5543
  %v5674 = vsel %vm5610, %v5097, %v5545
  %v5675 = vld [vmem:[%s2] sm:$0xff]
  %v5676 = vld [vmem:[%s2 + $0x8] sm:$0xff]
  %v5677 = vld [vmem:[%s2 + $0x10] sm:$0xff]
  %v5678 = vld [vmem:[%s2 + $0x18] sm:$0xff]
  %v5679 = vld [vmem:[%s2 + $0x20] sm:$0xff]
  %v5680 = vld [vmem:[%s2 + $0x28] sm:$0xff]
  %v5681 = vld [vmem:[%s2 + $0x30] sm:$0xff]
  %v5682 = vld [vmem:[%s2 + $0x38] sm:$0xff]
  %v5683 = vld [vmem:[%s2 + $0x40] sm:$0xff]
  %v5684 = vld [vmem:[%s2 + $0x48] sm:$0xff]
  %v5685 = vld [vmem:[%s2 + $0x50] sm:$0xff]
  %v5686 = vld [vmem:[%s2 + $0x58] sm:$0xff]
  %v5687 = vld [vmem:[%s2 + $0x60] sm:$0xff]
  %v5688 = vld [vmem:[%s2 + $0x68] sm:$0xf]
  %vm5689 = vcmask 883712
  %v5691 = vsel %vm5689, %v5611, 0
  %v5694 = vsel %vm5689, %v5612, 0
  %v5697 = vsel %vm5689, %v5613, 0
  %v5700 = vsel %vm5689, %v5614, 0
  %v5703 = vsel %vm5689, %v5615, 0
  %v5706 = vsel %vm5689, %v5616, 0
  %v5709 = vsel %vm5689, %v5617, 0
  %v5712 = vsel %vm5689, %v5618, 0
  %v5715 = vsel %vm5689, %v5619, 0
  %v5718 = vsel %vm5689, %v5620, 0
  %v5721 = vsel %vm5689, %v5621, 0
  %v5724 = vsel %vm5689, %v5622, 0
  %v5727 = vsel %vm5689, %v5623, 0
  %v5730 = vsel %vm5689, %v5624, 0
  %v5733 = vsel %vm5689, %v5625, 0
  %v5736 = vsel %vm5689, %v5626, 0
  %v5739 = vsel %vm5689, %v5627, 0
  %v5742 = vsel %vm5689, %v5628, 0
  %v5745 = vsel %vm5689, %v5629, 0
  %v5748 = vsel %vm5689, %v5630, 0
  %v5751 = vsel %vm5689, %v5631, 0
  %v5754 = vsel %vm5689, %v5632, 0
  %v5757 = vsel %vm5689, %v5633, 0
  %v5760 = vsel %vm5689, %v5634, 0
  %v5763 = vsel %vm5689, %v5635, 0
  %v5766 = vsel %vm5689, %v5636, 0
  %v5769 = vsel %vm5689, %v5637, 0
  %v5772 = vsel %vm5689, %v5638, 0
  %v5775 = vsel %vm5689, %v5639, 0
  %v5778 = vsel %vm5689, %v5640, 0
  %v5781 = vsel %vm5689, %v5641, 0
  %v5784 = vsel %vm5689, %v5642, 0
  %v5787 = vsel %vm5689, %v5643, 0
  %v5790 = vsel %vm5689, %v5644, 0
  %v5793 = vsel %vm5689, %v5645, 0
  %v5796 = vsel %vm5689, %v5646, 0
  %v5799 = vsel %vm5689, %v5647, 0
  %v5802 = vsel %vm5689, %v5648, 0
  %v5805 = vsel %vm5689, %v5649, 0
  %v5808 = vsel %vm5689, %v5650, 0
  %v5811 = vsel %vm5689, %v5651, 0
  %v5814 = vsel %vm5689, %v5652, 0
  %v5817 = vsel %vm5689, %v5653, 0
  %v5820 = vsel %vm5689, %v5654, 0
  %v5823 = vsel %vm5689, %v5655, 0
  %v5826 = vsel %vm5689, %v5656, 0
  %v5829 = vsel %vm5689, %v5657, 0
  %v5832 = vsel %vm5689, %v5658, 0
  %v5835 = vsel %vm5689, %v5659, 0
  %v5838 = vsel %vm5689, %v5660, 0
  %v5841 = vsel %vm5689, %v5661, 0
  %v5844 = vsel %vm5689, %v5662, 0
  %v5847 = vsel %vm5689, %v5663, 0
  %v5850 = vsel %vm5689, %v5664, 0
  %v5853 = vsel %vm5689, %v5665, 0
  %v5856 = vsel %vm5689, %v5666, 0
  %v5859 = vsel %vm5689, %v5667, 0
  %v5862 = vsel %vm5689, %v5668, 0
  %v5865 = vsel %vm5689, %v5669, 0
  %v5868 = vsel %vm5689, %v5670, 0
  %v5871 = vsel %vm5689, %v5671, 0
  %v5874 = vsel %vm5689, %v5672, 0
  %v5877 = vsel %vm5689, %v5673, 0
  %v5880 = vsel %vm5689, %v5674, 0
  %vm5882 = vcmask 1043456
  %v5884 = vsel %vm5882, %v5688, 0
  %5886 = vmatprep.subr.mxu0 0.0
  %5887 = vmatpush1.msra.mxu0 %v5675
  %5888 = vmatprep.subr.mxu0 0.0
  %5889 = vmatpush1.msra.mxu0 %v5676
  %5890 = vmatprep.subr.mxu0 0.0
  %5891 = vmatpush1.msra.mxu0 %v5677
  %5892 = vmatprep.subr.mxu0 0.0
  %5893 = vmatpush1.msra.mxu0 %v5678
  %5894 = vmatprep.subr.mxu0 0.0
  %5895 = vmatpush1.msra.mxu0 %v5679
  %5896 = vmatprep.subr.mxu0 0.0
  %5897 = vmatpush1.msra.mxu0 %v5680
  %5898 = vmatprep.subr.mxu0 0.0
  %5899 = vmatpush1.msra.mxu0 %v5681
  %5900 = vmatprep.subr.mxu0 0.0
  %5901 = vmatpush1.msra.mxu0 %v5682
  %5902 = vmatprep.subr.mxu0 0.0
  %5903 = vmatpush1.msra.mxu0 %v5683
  %5904 = vmatprep.subr.mxu0 0.0
  %5905 = vmatpush1.msra.mxu0 %v5684
  %5906 = vmatprep.subr.mxu0 0.0
  %5907 = vmatpush1.msra.mxu0 %v5685
  %5908 = vmatprep.subr.mxu0 0.0
  %5909 = vmatpush1.msra.mxu0 %v5686
  %5910 = vmatprep.subr.mxu0 0.0
  %5911 = vmatpush1.msra.mxu0 %v5687
  %5912 = vmatprep.subr.mxu0 0.0
  %5913 = vmatpush1.msra.mxu0 %v5884
  %5914 = vmatprep.subr.mxu0 0.0
  %5915 = vmatpush1.msra.mxu0 0.0
  %5916 = vmatprep.subr.mxu0 0.0
  %5917 = vmatpush1.msra.mxu0 0.0
  %5918 = vmatprep.subr.mxu0 0.0
  %5919 = vmatpush1.msra.mxu0 0.0
  %5920 = vmatprep.subr.mxu0 0.0
  %5921 = vmatpush1.msra.mxu0 0.0
  %5922 = vmatprep.subr.mxu0 0.0
  %5923 = vmatpush1.msra.mxu0 0.0
  %5924 = vmatprep.subr.mxu0 0.0
  %5925 = vmatpush1.msra.mxu0 0.0
  %5926 = vmatprep.subr.mxu0 0.0
  %5927 = vmatpush1.msra.mxu0 0.0
  %5928 = vmatprep.subr.mxu0 0.0
  %5929 = vmatpush1.msra.mxu0 0.0
  %5930 = vmatprep.subr.mxu0 0.0
  %5931 = vmatpush1.msra.mxu0 0.0
  %5932 = vmatprep.subr.mxu0 0.0
  %5933 = vmatpush1.msra.mxu0 0.0
  %5934 = vmatprep.subr.mxu0 0.0
  %5935 = vmatpush1.msra.mxu0 0.0
  %5936 = vmatprep.subr.mxu0 0.0
  %5937 = vmatpush1.msra.mxu0 0.0
  %5938 = vmatprep.subr.mxu0 0.0
  %5939 = vmatpush1.msra.mxu0 0.0
  %5940 = vmatprep.subr.mxu0 0.0
  %5941 = vmatpush1.msra.mxu0 0.0
  %5942 = vmatprep.subr.mxu0 0.0
  %5943 = vmatpush1.msra.mxu0 0.0
  %5944 = vmatprep.subr.mxu0 0.0
  %5945 = vmatpush1.msra.mxu0 0.0
  %5946 = vmatprep.subr.mxu0 0.0
  %5947 = vmatpush1.msra.mxu0 0.0
  %5948 = vmatprep.subr.mxu0 0.0
  %5949 = vmatpush1.msra.mxu0 0.0
  %5950 = vmatprep.mubr.f32.mxu0 0.0
  %5951 = vmatmul.mubr.f32.gmra.mrb[0].mxu0 %v5691
  %v5952 = vpop.f32.mrb[0].mxu0
  %v5953 = vadd.f32 0.0, %v5952
  %v5954 = vpop.f32.mrb[0].mxu0
  %5955 = vmatprep.mubr.f32.mxu0 0.0
  %5956 = vmatmul.mubr.f32.gmra.mrb[0].mxu0 %v5694
  %v5957 = vpop.f32.mrb[0].mxu0
  %v5958 = vadd.f32 0.0, %v5957
  %v5959 = vpop.f32.mrb[0].mxu0
  %5960 = vmatprep.mubr.f32.mxu0 0.0
  %5961 = vmatmul.mubr.f32.gmra.mrb[0].mxu0 %v5697
  %v5962 = vpop.f32.mrb[0].mxu0
  %v5963 = vadd.f32 0.0, %v5962
  %v5964 = vpop.f32.mrb[0].mxu0
  %5965 = vmatprep.mubr.f32.mxu0 0.0
  %5966 = vmatmul.mubr.f32.gmra.mrb[0].mxu0 %v5700
  %v5967 = vpop.f32.mrb[0].mxu0
  %v5968 = vadd.f32 0.0, %v5967
  %v5969 = vpop.f32.mrb[0].mxu0
  %5970 = vmatprep.mubr.f32.mxu0 0.0
  %5971 = vmatmul.mubr.f32.gmra.mrb[0].mxu0 %v5703
  %v5972 = vpop.f32.mrb[0].mxu0
  %v5973 = vadd.f32 0.0, %v5972
  %v5974 = vpop.f32.mrb[0].mxu0
  %5975 = vmatprep.mubr.f32.mxu0 0.0
  %5976 = vmatmul.mubr.f32.gmra.mrb[0].mxu0 %v5706
  %v5977 = vpop.f32.mrb[0].mxu0
  %v5978 = vadd.f32 0.0, %v5977
  %v5979 = vpop.f32.mrb[0].mxu0
  %5980 = vmatprep.mubr.f32.mxu0 0.0
  %5981 = vmatmul.mubr.f32.gmra.mrb[0].mxu0 %v5709
  %v5982 = vpop.f32.mrb[0].mxu0
  %v5983 = vadd.f32 0.0, %v5982
  %v5984 = vpop.f32.mrb[0].mxu0
  %5985 = vmatprep.mubr.f32.mxu0 0.0
  %5986 = vmatmul.mubr.f32.gmra.mrb[0].mxu0 %v5712
  %v5987 = vpop.f32.mrb[0].mxu0
  %v5988 = vadd.f32 0.0, %v5987
  %v5989 = vpop.f32.mrb[0].mxu0
  %5990 = vmatprep.mubr.f32.mxu0 0.0
  %5991 = vmatmul.mubr.f32.gmra.mrb[0].mxu0 %v5715
  %v5992 = vpop.f32.mrb[0].mxu0
  %v5993 = vadd.f32 0.0, %v5992
  %v5994 = vpop.f32.mrb[0].mxu0
  %5995 = vmatprep.mubr.f32.mxu0 0.0
  %5996 = vmatmul.mubr.f32.gmra.mrb[0].mxu0 %v5718
  %v5997 = vpop.f32.mrb[0].mxu0
  %v5998 = vadd.f32 0.0, %v5997
  %v5999 = vpop.f32.mrb[0].mxu0
  %6000 = vmatprep.mubr.f32.mxu0 0.0
  %6001 = vmatmul.mubr.f32.gmra.mrb[0].mxu0 %v5721
  %v6002 = vpop.f32.mrb[0].mxu0
  %v6003 = vadd.f32 0.0, %v6002
  %v6004 = vpop.f32.mrb[0].mxu0
  %6005 = vmatprep.mubr.f32.mxu0 0.0
  %6006 = vmatmul.mubr.f32.gmra.mrb[0].mxu0 %v5724
  %v6007 = vpop.f32.mrb[0].mxu0
  %v6008 = vadd.f32 0.0, %v6007
  %v6009 = vpop.f32.mrb[0].mxu0
  %6010 = vmatprep.mubr.f32.mxu0 0.0
  %6011 = vmatmul.mubr.f32.gmra.mrb[0].mxu0 %v5727
  %v6012 = vpop.f32.mrb[0].mxu0
  %v6013 = vadd.f32 0.0, %v6012
  %v6014 = vpop.f32.mrb[0].mxu0
  %6015 = vmatprep.mubr.f32.mxu0 0.0
  %6016 = vmatmul.mubr.f32.gmra.mrb[0].mxu0 %v5730
  %v6017 = vpop.f32.mrb[0].mxu0
  %v6018 = vadd.f32 0.0, %v6017
  %v6019 = vpop.f32.mrb[0].mxu0
  %6020 = vmatprep.mubr.f32.mxu0 0.0
  %6021 = vmatmul.mubr.f32.gmra.mrb[0].mxu0 %v5733
  %v6022 = vpop.f32.mrb[0].mxu0
  %v6023 = vadd.f32 0.0, %v6022
  %v6024 = vpop.f32.mrb[0].mxu0
  %6025 = vmatprep.mubr.f32.mxu0 0.0
  %6026 = vmatmul.mubr.f32.gmra.mrb[0].mxu0 %v5736
  %v6027 = vpop.f32.mrb[0].mxu0
  %v6028 = vadd.f32 0.0, %v6027
  %v6029 = vpop.f32.mrb[0].mxu0
  %6030 = vmatprep.mubr.f32.mxu0 0.0
  %6031 = vmatmul.mubr.f32.gmra.mrb[0].mxu0 %v5739
  %v6032 = vpop.f32.mrb[0].mxu0
  %v6033 = vadd.f32 0.0, %v6032
  %v6034 = vpop.f32.mrb[0].mxu0
  %6035 = vmatprep.mubr.f32.mxu0 0.0
  %6036 = vmatmul.mubr.f32.gmra.mrb[0].mxu0 %v5742
  %v6037 = vpop.f32.mrb[0].mxu0
  %v6038 = vadd.f32 0.0, %v6037
  %v6039 = vpop.f32.mrb[0].mxu0
  %6040 = vmatprep.mubr.f32.mxu0 0.0
  %6041 = vmatmul.mubr.f32.gmra.mrb[0].mxu0 %v5745
  %v6042 = vpop.f32.mrb[0].mxu0
  %v6043 = vadd.f32 0.0, %v6042
  %v6044 = vpop.f32.mrb[0].mxu0
  %6045 = vmatprep.mubr.f32.mxu0 0.0
  %6046 = vmatmul.mubr.f32.gmra.mrb[0].mxu0 %v5748
  %v6047 = vpop.f32.mrb[0].mxu0
  %v6048 = vadd.f32 0.0, %v6047
  %v6049 = vpop.f32.mrb[0].mxu0
  %6050 = vmatprep.mubr.f32.mxu0 0.0
  %6051 = vmatmul.mubr.f32.gmra.mrb[0].mxu0 %v5751
  %v6052 = vpop.f32.mrb[0].mxu0
  %v6053 = vadd.f32 0.0, %v6052
  %v6054 = vpop.f32.mrb[0].mxu0
  %6055 = vmatprep.mubr.f32.mxu0 0.0
  %6056 = vmatmul.mubr.f32.gmra.mrb[0].mxu0 %v5754
  %v6057 = vpop.f32.mrb[0].mxu0
  %v6058 = vadd.f32 0.0, %v6057
  %v6059 = vpop.f32.mrb[0].mxu0
  %6060 = vmatprep.mubr.f32.mxu0 0.0
  %6061 = vmatmul.mubr.f32.gmra.mrb[0].mxu0 %v5757
  %v6062 = vpop.f32.mrb[0].mxu0
  %v6063 = vadd.f32 0.0, %v6062
  %v6064 = vpop.f32.mrb[0].mxu0
  %6065 = vmatprep.mubr.f32.mxu0 0.0
  %6066 = vmatmul.mubr.f32.gmra.mrb[0].mxu0 %v5760
  %v6067 = vpop.f32.mrb[0].mxu0
  %v6068 = vadd.f32 0.0, %v6067
  %v6069 = vpop.f32.mrb[0].mxu0
  %6070 = vmatprep.mubr.f32.mxu0 0.0
  %6071 = vmatmul.mubr.f32.gmra.mrb[0].mxu0 %v5763
  %v6072 = vpop.f32.mrb[0].mxu0
  %v6073 = vadd.f32 0.0, %v6072
  %v6074 = vpop.f32.mrb[0].mxu0
  %6075 = vmatprep.mubr.f32.mxu0 0.0
  %6076 = vmatmul.mubr.f32.gmra.mrb[0].mxu0 %v5766
  %v6077 = vpop.f32.mrb[0].mxu0
  %v6078 = vadd.f32 0.0, %v6077
  %v6079 = vpop.f32.mrb[0].mxu0
  %6080 = vmatprep.mubr.f32.mxu0 0.0
  %6081 = vmatmul.mubr.f32.gmra.mrb[0].mxu0 %v5769
  %v6082 = vpop.f32.mrb[0].mxu0
  %v6083 = vadd.f32 0.0, %v6082
  %v6084 = vpop.f32.mrb[0].mxu0
  %6085 = vmatprep.mubr.f32.mxu0 0.0
  %6086 = vmatmul.mubr.f32.gmra.mrb[0].mxu0 %v5772
  %v6087 = vpop.f32.mrb[0].mxu0
  %v6088 = vadd.f32 0.0, %v6087
  %v6089 = vpop.f32.mrb[0].mxu0
  %6090 = vmatprep.mubr.f32.mxu0 0.0
  %6091 = vmatmul.mubr.f32.gmra.mrb[0].mxu0 %v5775
  %v6092 = vpop.f32.mrb[0].mxu0
  %v6093 = vadd.f32 0.0, %v6092
  %v6094 = vpop.f32.mrb[0].mxu0
  %6095 = vmatprep.mubr.f32.mxu0 0.0
  %6096 = vmatmul.mubr.f32.gmra.mrb[0].mxu0 %v5778
  %v6097 = vpop.f32.mrb[0].mxu0
  %v6098 = vadd.f32 0.0, %v6097
  %v6099 = vpop.f32.mrb[0].mxu0
  %6100 = vmatprep.mubr.f32.mxu0 0.0
  %6101 = vmatmul.mubr.f32.gmra.mrb[0].mxu0 %v5781
  %v6102 = vpop.f32.mrb[0].mxu0
  %v6103 = vadd.f32 0.0, %v6102
  %v6104 = vpop.f32.mrb[0].mxu0
  %6105 = vmatprep.mubr.f32.mxu0 0.0
  %6106 = vmatmul.mubr.f32.gmra.mrb[0].mxu0 %v5784
  %v6107 = vpop.f32.mrb[0].mxu0
  %v6108 = vadd.f32 0.0, %v6107
  %v6109 = vpop.f32.mrb[0].mxu0
  %6110 = vmatprep.mubr.f32.mxu0 0.0
  %6111 = vmatmul.mubr.f32.gmra.mrb[0].mxu0 %v5787
  %v6112 = vpop.f32.mrb[0].mxu0
  %v6113 = vadd.f32 0.0, %v6112
  %v6114 = vpop.f32.mrb[0].mxu0
  %6115 = vmatprep.mubr.f32.mxu0 0.0
  %6116 = vmatmul.mubr.f32.gmra.mrb[0].mxu0 %v5790
  %v6117 = vpop.f32.mrb[0].mxu0
  %v6118 = vadd.f32 0.0, %v6117
  %v6119 = vpop.f32.mrb[0].mxu0
  %6120 = vmatprep.mubr.f32.mxu0 0.0
  %6121 = vmatmul.mubr.f32.gmra.mrb[0].mxu0 %v5793
  %v6122 = vpop.f32.mrb[0].mxu0
  %v6123 = vadd.f32 0.0, %v6122
  %v6124 = vpop.f32.mrb[0].mxu0
  %6125 = vmatprep.mubr.f32.mxu0 0.0
  %6126 = vmatmul.mubr.f32.gmra.mrb[0].mxu0 %v5796
  %v6127 = vpop.f32.mrb[0].mxu0
  %v6128 = vadd.f32 0.0, %v6127
  %v6129 = vpop.f32.mrb[0].mxu0
  %6130 = vmatprep.mubr.f32.mxu0 0.0
  %6131 = vmatmul.mubr.f32.gmra.mrb[0].mxu0 %v5799
  %v6132 = vpop.f32.mrb[0].mxu0
  %v6133 = vadd.f32 0.0, %v6132
  %v6134 = vpop.f32.mrb[0].mxu0
  %6135 = vmatprep.mubr.f32.mxu0 0.0
  %6136 = vmatmul.mubr.f32.gmra.mrb[0].mxu0 %v5802
  %v6137 = vpop.f32.mrb[0].mxu0
  %v6138 = vadd.f32 0.0, %v6137
  %v6139 = vpop.f32.mrb[0].mxu0
  %6140 = vmatprep.mubr.f32.mxu0 0.0
  %6141 = vmatmul.mubr.f32.gmra.mrb[0].mxu0 %v5805
  %v6142 = vpop.f32.mrb[0].mxu0
  %v6143 = vadd.f32 0.0, %v6142
  %v6144 = vpop.f32.mrb[0].mxu0
  %6145 = vmatprep.mubr.f32.mxu0 0.0
  %6146 = vmatmul.mubr.f32.gmra.mrb[0].mxu0 %v5808
  %v6147 = vpop.f32.mrb[0].mxu0
  %v6148 = vadd.f32 0.0, %v6147
  %v6149 = vpop.f32.mrb[0].mxu0
  %6150 = vmatprep.mubr.f32.mxu0 0.0
  %6151 = vmatmul.mubr.f32.gmra.mrb[0].mxu0 %v5811
  %v6152 = vpop.f32.mrb[0].mxu0
  %v6153 = vadd.f32 0.0, %v6152
  %v6154 = vpop.f32.mrb[0].mxu0
  %6155 = vmatprep.mubr.f32.mxu0 0.0
  %6156 = vmatmul.mubr.f32.gmra.mrb[0].mxu0 %v5814
  %v6157 = vpop.f32.mrb[0].mxu0
  %v6158 = vadd.f32 0.0, %v6157
  %v6159 = vpop.f32.mrb[0].mxu0
  %6160 = vmatprep.mubr.f32.mxu0 0.0
  %6161 = vmatmul.mubr.f32.gmra.mrb[0].mxu0 %v5817
  %v6162 = vpop.f32.mrb[0].mxu0
  %v6163 = vadd.f32 0.0, %v6162
  %v6164 = vpop.f32.mrb[0].mxu0
  %6165 = vmatprep.mubr.f32.mxu0 0.0
  %6166 = vmatmul.mubr.f32.gmra.mrb[0].mxu0 %v5820
  %v6167 = vpop.f32.mrb[0].mxu0
  %v6168 = vadd.f32 0.0, %v6167
  %v6169 = vpop.f32.mrb[0].mxu0
  %6170 = vmatprep.mubr.f32.mxu0 0.0
  %6171 = vmatmul.mubr.f32.gmra.mrb[0].mxu0 %v5823
  %v6172 = vpop.f32.mrb[0].mxu0
  %v6173 = vadd.f32 0.0, %v6172
  %v6174 = vpop.f32.mrb[0].mxu0
  %6175 = vmatprep.mubr.f32.mxu0 0.0
  %6176 = vmatmul.mubr.f32.gmra.mrb[0].mxu0 %v5826
  %v6177 = vpop.f32.mrb[0].mxu0
  %v6178 = vadd.f32 0.0, %v6177
  %v6179 = vpop.f32.mrb[0].mxu0
  %6180 = vmatprep.mubr.f32.mxu0 0.0
  %6181 = vmatmul.mubr.f32.gmra.mrb[0].mxu0 %v5829
  %v6182 = vpop.f32.mrb[0].mxu0
  %v6183 = vadd.f32 0.0, %v6182
  %v6184 = vpop.f32.mrb[0].mxu0
  %6185 = vmatprep.mubr.f32.mxu0 0.0
  %6186 = vmatmul.mubr.f32.gmra.mrb[0].mxu0 %v5832
  %v6187 = vpop.f32.mrb[0].mxu0
  %v6188 = vadd.f32 0.0, %v6187
  %v6189 = vpop.f32.mrb[0].mxu0
  %6190 = vmatprep.mubr.f32.mxu0 0.0
  %6191 = vmatmul.mubr.f32.gmra.mrb[0].mxu0 %v5835
  %v6192 = vpop.f32.mrb[0].mxu0
  %v6193 = vadd.f32 0.0, %v6192
  %v6194 = vpop.f32.mrb[0].mxu0
  %6195 = vmatprep.mubr.f32.mxu0 0.0
  %6196 = vmatmul.mubr.f32.gmra.mrb[0].mxu0 %v5838
  %v6197 = vpop.f32.mrb[0].mxu0
  %v6198 = vadd.f32 0.0, %v6197
  %v6199 = vpop.f32.mrb[0].mxu0
  %6200 = vmatprep.mubr.f32.mxu0 0.0
  %6201 = vmatmul.mubr.f32.gmra.mrb[0].mxu0 %v5841
  %v6202 = vpop.f32.mrb[0].mxu0
  %v6203 = vadd.f32 0.0, %v6202
  %v6204 = vpop.f32.mrb[0].mxu0
  %6205 = vmatprep.mubr.f32.mxu0 0.0
  %6206 = vmatmul.mubr.f32.gmra.mrb[0].mxu0 %v5844
  %v6207 = vpop.f32.mrb[0].mxu0
  %v6208 = vadd.f32 0.0, %v6207
  %v6209 = vpop.f32.mrb[0].mxu0
  %6210 = vmatprep.mubr.f32.mxu0 0.0
  %6211 = vmatmul.mubr.f32.gmra.mrb[0].mxu0 %v5847
  %v6212 = vpop.f32.mrb[0].mxu0
  %v6213 = vadd.f32 0.0, %v6212
  %v6214 = vpop.f32.mrb[0].mxu0
  %6215 = vmatprep.mubr.f32.mxu0 0.0
  %6216 = vmatmul.mubr.f32.gmra.mrb[0].mxu0 %v5850
  %v6217 = vpop.f32.mrb[0].mxu0
  %v6218 = vadd.f32 0.0, %v6217
  %v6219 = vpop.f32.mrb[0].mxu0
  %6220 = vmatprep.mubr.f32.mxu0 0.0
  %6221 = vmatmul.mubr.f32.gmra.mrb[0].mxu0 %v5853
  %v6222 = vpop.f32.mrb[0].mxu0
  %v6223 = vadd.f32 0.0, %v6222
  %v6224 = vpop.f32.mrb[0].mxu0
  %6225 = vmatprep.mubr.f32.mxu0 0.0
  %6226 = vmatmul.mubr.f32.gmra.mrb[0].mxu0 %v5856
  %v6227 = vpop.f32.mrb[0].mxu0
  %v6228 = vadd.f32 0.0, %v6227
  %v6229 = vpop.f32.mrb[0].mxu0
  %6230 = vmatprep.mubr.f32.mxu0 0.0
  %6231 = vmatmul.mubr.f32.gmra.mrb[0].mxu0 %v5859
  %v6232 = vpop.f32.mrb[0].mxu0
  %v6233 = vadd.f32 0.0, %v6232
  %v6234 = vpop.f32.mrb[0].mxu0
  %6235 = vmatprep.mubr.f32.mxu0 0.0
  %6236 = vmatmul.mubr.f32.gmra.mrb[0].mxu0 %v5862
  %v6237 = vpop.f32.mrb[0].mxu0
  %v6238 = vadd.f32 0.0, %v6237
  %v6239 = vpop.f32.mrb[0].mxu0
  %6240 = vmatprep.mubr.f32.mxu0 0.0
  %6241 = vmatmul.mubr.f32.gmra.mrb[0].mxu0 %v5865
  %v6242 = vpop.f32.mrb[0].mxu0
  %v6243 = vadd.f32 0.0, %v6242
  %v6244 = vpop.f32.mrb[0].mxu0
  %6245 = vmatprep.mubr.f32.mxu0 0.0
  %6246 = vmatmul.mubr.f32.gmra.mrb[0].mxu0 %v5868
  %v6247 = vpop.f32.mrb[0].mxu0
  %v6248 = vadd.f32 0.0, %v6247
  %v6249 = vpop.f32.mrb[0].mxu0
  %6250 = vmatprep.mubr.f32.mxu0 0.0
  %6251 = vmatmul.mubr.f32.gmra.mrb[0].mxu0 %v5871
  %v6252 = vpop.f32.mrb[0].mxu0
  %v6253 = vadd.f32 0.0, %v6252
  %v6254 = vpop.f32.mrb[0].mxu0
  %6255 = vmatprep.mubr.f32.mxu0 0.0
  %6256 = vmatmul.mubr.f32.gmra.mrb[0].mxu0 %v5874
  %v6257 = vpop.f32.mrb[0].mxu0
  %v6258 = vadd.f32 0.0, %v6257
  %v6259 = vpop.f32.mrb[0].mxu0
  %6260 = vmatprep.mubr.f32.mxu0 0.0
  %6261 = vmatmul.mubr.f32.gmra.mrb[0].mxu0 %v5877
  %v6262 = vpop.f32.mrb[0].mxu0
  %v6263 = vadd.f32 0.0, %v6262
  %v6264 = vpop.f32.mrb[0].mxu0
  %6265 = vmatprep.mubr.f32.mxu0 0.0
  %6266 = vmatmul.mubr.f32.gmra.mrb[0].mxu0 %v5880
  %v6267 = vpop.f32.mrb[0].mxu0
  %v6268 = vadd.f32 0.0, %v6267
  %v6269 = vpop.f32.mrb[0].mxu0
  %6270 = vdwg.mxu0
  %6271 = vxpose.xlu0.b32.start [1/16] %v5953, 128
  %6272 = vxpose.xlu0.b32.cont [2/16] %v5958, 128
  %6273 = vxpose.xlu0.b32.cont [3/16] %v5963, 128
  %6274 = vxpose.xlu0.b32.cont [4/16] %v5968, 128
  %6275 = vxpose.xlu0.b32.cont [5/16] %v5973, 128
  %6276 = vxpose.xlu0.b32.cont [6/16] %v5978, 128
  %6277 = vxpose.xlu0.b32.cont [7/16] %v5983, 128
  %6278 = vxpose.xlu0.b32.cont [8/16] %v5988, 128
  %6279 = vxpose.xlu0.b32.cont [9/16] %v5993, 128
  %6280 = vxpose.xlu0.b32.cont [10/16] %v5998, 128
  %6281 = vxpose.xlu0.b32.cont [11/16] %v6003, 128
  %6282 = vxpose.xlu0.b32.cont [12/16] %v6008, 128
  %6283 = vxpose.xlu0.b32.cont [13/16] %v6013, 128
  %6284 = vxpose.xlu0.b32.cont [14/16] %v6018, 128
  %6285 = vxpose.xlu0.b32.cont [15/16] %v6023, 128
  %6286 = vxpose.xlu0.b32.end [16/16] %v6028, 128
  %v6287 = vpop.trf.xlu0
  %v6288 = vpop.trf.xlu0
  %v6289 = vpop.trf.xlu0
  %v6290 = vpop.trf.xlu0
  %v6291 = vpop.trf.xlu0
  %v6292 = vpop.trf.xlu0
  %v6293 = vpop.trf.xlu0
  %v6294 = vpop.trf.xlu0
  %v6295 = vpop.trf.xlu0
  %v6296 = vpop.trf.xlu0
  %v6297 = vpop.trf.xlu0
  %v6298 = vpop.trf.xlu0
  %v6299 = vpop.trf.xlu0
  %v6300 = vpop.trf.xlu0
  %v6301 = vpop.trf.xlu0
  %v6302 = vpop.trf.xlu0
  %6303 = vxpose.xlu0.b32.start [1/16] %v6033, 128
  %6304 = vxpose.xlu0.b32.cont [2/16] %v6038, 128
  %6305 = vxpose.xlu0.b32.cont [3/16] %v6043, 128
  %6306 = vxpose.xlu0.b32.cont [4/16] %v6048, 128
  %6307 = vxpose.xlu0.b32.cont [5/16] %v6053, 128
  %6308 = vxpose.xlu0.b32.cont [6/16] %v6058, 128
  %6309 = vxpose.xlu0.b32.cont [7/16] %v6063, 128
  %6310 = vxpose.xlu0.b32.cont [8/16] %v6068, 128
  %6311 = vxpose.xlu0.b32.cont [9/16] %v6073, 128
  %6312 = vxpose.xlu0.b32.cont [10/16] %v6078, 128
  %6313 = vxpose.xlu0.b32.cont [11/16] %v6083, 128
  %6314 = vxpose.xlu0.b32.cont [12/16] %v6088, 128
  %6315 = vxpose.xlu0.b32.cont [13/16] %v6093, 128
  %6316 = vxpose.xlu0.b32.cont [14/16] %v6098, 128
  %6317 = vxpose.xlu0.b32.cont [15/16] %v6103, 128
  %6318 = vxpose.xlu0.b32.end [16/16] %v6108, 128
  %v6319 = vpop.trf.xlu0
  %v6320 = vpop.trf.xlu0
  %v6321 = vpop.trf.xlu0
  %v6322 = vpop.trf.xlu0
  %v6323 = vpop.trf.xlu0
  %v6324 = vpop.trf.xlu0
  %v6325 = vpop.trf.xlu0
  %v6326 = vpop.trf.xlu0
  %v6327 = vpop.trf.xlu0
  %v6328 = vpop.trf.xlu0
  %v6329 = vpop.trf.xlu0
  %v6330 = vpop.trf.xlu0
  %v6331 = vpop.trf.xlu0
  %v6332 = vpop.trf.xlu0
  %v6333 = vpop.trf.xlu0
  %v6334 = vpop.trf.xlu0
  %6335 = vxpose.xlu0.b32.start [1/16] %v6113, 128
  %6336 = vxpose.xlu0.b32.cont [2/16] %v6118, 128
  %6337 = vxpose.xlu0.b32.cont [3/16] %v6123, 128
  %6338 = vxpose.xlu0.b32.cont [4/16] %v6128, 128
  %6339 = vxpose.xlu0.b32.cont [5/16] %v6133, 128
  %6340 = vxpose.xlu0.b32.cont [6/16] %v6138, 128
  %6341 = vxpose.xlu0.b32.cont [7/16] %v6143, 128
  %6342 = vxpose.xlu0.b32.cont [8/16] %v6148, 128
  %6343 = vxpose.xlu0.b32.cont [9/16] %v6153, 128
  %6344 = vxpose.xlu0.b32.cont [10/16] %v6158, 128
  %6345 = vxpose.xlu0.b32.cont [11/16] %v6163, 128
  %6346 = vxpose.xlu0.b32.cont [12/16] %v6168, 128
  %6347 = vxpose.xlu0.b32.cont [13/16] %v6173, 128
  %6348 = vxpose.xlu0.b32.cont [14/16] %v6178, 128
  %6349 = vxpose.xlu0.b32.cont [15/16] %v6183, 128
  %6350 = vxpose.xlu0.b32.end [16/16] %v6188, 128
  %v6351 = vpop.trf.xlu0
  %v6352 = vpop.trf.xlu0
  %v6353 = vpop.trf.xlu0
  %v6354 = vpop.trf.xlu0
  %v6355 = vpop.trf.xlu0
  %v6356 = vpop.trf.xlu0
  %v6357 = vpop.trf.xlu0
  %v6358 = vpop.trf.xlu0
  %v6359 = vpop.trf.xlu0
  %v6360 = vpop.trf.xlu0
  %v6361 = vpop.trf.xlu0
  %v6362 = vpop.trf.xlu0
  %v6363 = vpop.trf.xlu0
  %v6364 = vpop.trf.xlu0
  %v6365 = vpop.trf.xlu0
  %v6366 = vpop.trf.xlu0
  %6367 = vxpose.xlu0.b32.start [1/16] %v6193, 128
  %6368 = vxpose.xlu0.b32.cont [2/16] %v6198, 128
  %6369 = vxpose.xlu0.b32.cont [3/16] %v6203, 128
  %6370 = vxpose.xlu0.b32.cont [4/16] %v6208, 128
  %6371 = vxpose.xlu0.b32.cont [5/16] %v6213, 128
  %6372 = vxpose.xlu0.b32.cont [6/16] %v6218, 128
  %6373 = vxpose.xlu0.b32.cont [7/16] %v6223, 128
  %6374 = vxpose.xlu0.b32.cont [8/16] %v6228, 128
  %6375 = vxpose.xlu0.b32.cont [9/16] %v6233, 128
  %6376 = vxpose.xlu0.b32.cont [10/16] %v6238, 128
  %6377 = vxpose.xlu0.b32.cont [11/16] %v6243, 128
  %6378 = vxpose.xlu0.b32.cont [12/16] %v6248, 128
  %6379 = vxpose.xlu0.b32.cont [13/16] %v6253, 128
  %6380 = vxpose.xlu0.b32.cont [14/16] %v6258, 128
  %6381 = vxpose.xlu0.b32.cont [15/16] %v6263, 128
  %6382 = vxpose.xlu0.b32.end [16/16] %v6268, 128
  %v6383 = vpop.trf.xlu0
  %v6384 = vpop.trf.xlu0
  %v6385 = vpop.trf.xlu0
  %v6386 = vpop.trf.xlu0
  %v6387 = vpop.trf.xlu0
  %v6388 = vpop.trf.xlu0
  %v6389 = vpop.trf.xlu0
  %v6390 = vpop.trf.xlu0
  %v6391 = vpop.trf.xlu0
  %v6392 = vpop.trf.xlu0
  %v6393 = vpop.trf.xlu0
  %v6394 = vpop.trf.xlu0
  %v6395 = vpop.trf.xlu0
  %v6396 = vpop.trf.xlu0
  %v6397 = vpop.trf.xlu0
  %v6398 = vpop.trf.xlu0
  %v6399 = vadd.f32 %v6287, %v6319
  %v6400 = vadd.f32 %v6399, %v6351
  %v6401 = vadd.f32 %v6400, %v6383
  %6402 = vadd.xlane.f32.xlu0 %v6401
  %v6403 = vpop.xlane.xlu0 %6402
  %v6404 = vadd.f32 %v6288, %v6320
  %v6405 = vadd.f32 %v6404, %v6352
  %v6406 = vadd.f32 %v6405, %v6384
  %6407 = vadd.xlane.f32.xlu0 %v6406
  %v6408 = vpop.xlane.xlu0 %6407
  %v6409 = vadd.f32 %v6289, %v6321
  %v6410 = vadd.f32 %v6409, %v6353
  %v6411 = vadd.f32 %v6410, %v6385
  %6412 = vadd.xlane.f32.xlu0 %v6411
  %v6413 = vpop.xlane.xlu0 %6412
  %v6414 = vadd.f32 %v6290, %v6322
  %v6415 = vadd.f32 %v6414, %v6354
  %v6416 = vadd.f32 %v6415, %v6386
  %6417 = vadd.xlane.f32.xlu0 %v6416
  %v6418 = vpop.xlane.xlu0 %6417
  %v6419 = vmul.f32 %v6403, 0.001953125
  %v6420 = vmul.f32 %v6408, 0.001953125
  %v6421 = vmul.f32 %v6413, 0.001953125
  %v6422 = vmul.f32 %v6418, 0.001953125
  %v6423 = vsub.f32 %v6287, %v6419
  %v6424 = vsub.f32 %v6319, %v6419
  %v6425 = vsub.f32 %v6351, %v6419
  %v6426 = vsub.f32 %v6383, %v6419
  %v6427 = vsub.f32 %v6288, %v6420
  %v6428 = vsub.f32 %v6320, %v6420
  %v6429 = vsub.f32 %v6352, %v6420
  %v6430 = vsub.f32 %v6384, %v6420
  %v6431 = vsub.f32 %v6289, %v6421
  %v6432 = vsub.f32 %v6321, %v6421
  %v6433 = vsub.f32 %v6353, %v6421
  %v6434 = vsub.f32 %v6385, %v6421
  %v6435 = vsub.f32 %v6290, %v6422
  %v6436 = vsub.f32 %v6322, %v6422
  %v6437 = vsub.f32 %v6354, %v6422
  %v6438 = vsub.f32 %v6386, %v6422
  %v6439 = vmul.f32 %v6423, %v6423
  %v6440 = vmul.f32 %v6424, %v6424
  %v6441 = vmul.f32 %v6425, %v6425
  %v6442 = vmul.f32 %v6426, %v6426
  %v6443 = vmul.f32 %v6427, %v6427
  %v6444 = vmul.f32 %v6428, %v6428
  %v6445 = vmul.f32 %v6429, %v6429
  %v6446 = vmul.f32 %v6430, %v6430
  %v6447 = vmul.f32 %v6431, %v6431
  %v6448 = vmul.f32 %v6432, %v6432
  %v6449 = vmul.f32 %v6433, %v6433
  %v6450 = vmul.f32 %v6434, %v6434
  %v6451 = vmul.f32 %v6435, %v6435
  %v6452 = vmul.f32 %v6436, %v6436
  %v6453 = vmul.f32 %v6437, %v6437
  %v6454 = vmul.f32 %v6438, %v6438
  %v6455 = vadd.f32 %v6439, %v6440
  %v6456 = vadd.f32 %v6455, %v6441
  %v6457 = vadd.f32 %v6456, %v6442
  %6458 = vadd.xlane.f32.xlu0 %v6457
  %v6459 = vpop.xlane.xlu0 %6458
  %v6460 = vadd.f32 %v6443, %v6444
  %v6461 = vadd.f32 %v6460, %v6445
  %v6462 = vadd.f32 %v6461, %v6446
  %6463 = vadd.xlane.f32.xlu0 %v6462
  %v6464 = vpop.xlane.xlu0 %6463
  %v6465 = vadd.f32 %v6447, %v6448
  %v6466 = vadd.f32 %v6465, %v6449
  %v6467 = vadd.f32 %v6466, %v6450
  %6468 = vadd.xlane.f32.xlu0 %v6467
  %v6469 = vpop.xlane.xlu0 %6468
  %v6470 = vadd.f32 %v6451, %v6452
  %v6471 = vadd.f32 %v6470, %v6453
  %v6472 = vadd.f32 %v6471, %v6454
  %6473 = vadd.xlane.f32.xlu0 %v6472
  %v6474 = vpop.xlane.xlu0 %6473
  %v6475 = vmul.f32 %v6459, 0.001953125
  %v6476 = vmul.f32 %v6464, 0.001953125
  %v6477 = vmul.f32 %v6469, 0.001953125
  %v6478 = vmul.f32 %v6474, 0.001953125
  %v6479 = vadd.f32 %v6475, 1e-05
  %v6480 = vadd.f32 %v6476, 1e-05
  %v6481 = vadd.f32 %v6477, 1e-05
  %v6482 = vadd.f32 %v6478, 1e-05
  %v6483 = vrsqrt.pop %v6479
  %v6484 = vrsqrt.pop %v6480
  %v6485 = vrsqrt.pop %v6481
  %v6486 = vrsqrt.pop %v6482
  %v6487 = vmul.f32 %v6423, %v6483
  %v6488 = vmul.f32 %v6424, %v6483
  %v6489 = vmul.f32 %v6425, %v6483
  %v6490 = vmul.f32 %v6426, %v6483
  %v6491 = vmul.f32 %v6427, %v6484
  %v6492 = vmul.f32 %v6428, %v6484
  %v6493 = vmul.f32 %v6429, %v6484
  %v6494 = vmul.f32 %v6430, %v6484
  %v6495 = vmul.f32 %v6431, %v6485
  %v6496 = vmul.f32 %v6432, %v6485
  %v6497 = vmul.f32 %v6433, %v6485
  %v6498 = vmul.f32 %v6434, %v6485
  %v6499 = vmul.f32 %v6435, %v6486
  %v6500 = vmul.f32 %v6436, %v6486
  %v6501 = vmul.f32 %v6437, %v6486
  %v6502 = vmul.f32 %v6438, %v6486
  %v6503 = vld [vmem:[%s3] sm:$0xff]
  %v6504 = vld [vmem:[%s3 + $0x8] sm:$0xff]
  %v6505 = vld [vmem:[%s3 + $0x10] sm:$0xff]
  %v6506 = vld [vmem:[%s3 + $0x18] sm:$0xff]
  %6508 = vset.pattern.permute.xlu0 0
  %6509 = vperm.xlu0 %6508, %v6503
  %v6510 = vpop.permute.xlu0 %6509
  %6513 = vset.pattern.permute.xlu0 0
  %6514 = vperm.xlu0 %6513, %v6504
  %v6515 = vpop.permute.xlu0 %6514
  %6518 = vset.pattern.permute.xlu0 0
  %6519 = vperm.xlu0 %6518, %v6505
  %v6520 = vpop.permute.xlu0 %6519
  %6523 = vset.pattern.permute.xlu0 0
  %6524 = vperm.xlu0 %6523, %v6506
  %v6525 = vpop.permute.xlu0 %6524
  %v6527 = vmul.f32 %v6487, %v6510
  %v6528 = vmul.f32 %v6488, %v6510
  %v6529 = vmul.f32 %v6489, %v6510
  %v6530 = vmul.f32 %v6490, %v6510
  %v6531 = vmul.f32 %v6491, %v6515
  %v6532 = vmul.f32 %v6492, %v6515
  %v6533 = vmul.f32 %v6493, %v6515
  %v6534 = vmul.f32 %v6494, %v6515
  %v6535 = vmul.f32 %v6495, %v6520
  %v6536 = vmul.f32 %v6496, %v6520
  %v6537 = vmul.f32 %v6497, %v6520
  %v6538 = vmul.f32 %v6498, %v6520
  %v6539 = vmul.f32 %v6499, %v6525
  %v6540 = vmul.f32 %v6500, %v6525
  %v6541 = vmul.f32 %v6501, %v6525
  %v6542 = vmul.f32 %v6502, %v6525
  %v6543 = vld [vmem:[%s4] sm:$0xff]
  %v6544 = vld [vmem:[%s4 + $0x8] sm:$0xff]
  %v6545 = vld [vmem:[%s4 + $0x10] sm:$0xff]
  %v6546 = vld [vmem:[%s4 + $0x18] sm:$0xff]
  %6548 = vset.pattern.permute.xlu0 0
  %6549 = vperm.xlu0 %6548, %v6543
  %v6550 = vpop.permute.xlu0 %6549
  %6553 = vset.pattern.permute.xlu0 0
  %6554 = vperm.xlu0 %6553, %v6544
  %v6555 = vpop.permute.xlu0 %6554
  %6558 = vset.pattern.permute.xlu0 0
  %6559 = vperm.xlu0 %6558, %v6545
  %v6560 = vpop.permute.xlu0 %6559
  %6563 = vset.pattern.permute.xlu0 0
  %6564 = vperm.xlu0 %6563, %v6546
  %v6565 = vpop.permute.xlu0 %6564
  %v6567 = vadd.f32 %v6527, %v6550
  %v6568 = vadd.f32 %v6528, %v6550
  %v6569 = vadd.f32 %v6529, %v6550
  %v6570 = vadd.f32 %v6530, %v6550
  %v6571 = vadd.f32 %v6531, %v6555
  %v6572 = vadd.f32 %v6532, %v6555
  %v6573 = vadd.f32 %v6533, %v6555
  %v6574 = vadd.f32 %v6534, %v6555
  %v6575 = vadd.f32 %v6535, %v6560
  %v6576 = vadd.f32 %v6536, %v6560
  %v6577 = vadd.f32 %v6537, %v6560
  %v6578 = vadd.f32 %v6538, %v6560
  %v6579 = vadd.f32 %v6539, %v6565
  %v6580 = vadd.f32 %v6540, %v6565
  %v6581 = vadd.f32 %v6541, %v6565
  %v6582 = vadd.f32 %v6542, %v6565
  %v6583 = vlaneseq
  %v6584 = vshrl.u32 %v6583, 7
  %v6585 = vadd.s32 %v6584, 8
  %v6586 = vadd.s32 %v6584, 16
  %v6587 = vadd.s32 %v6584, 24
  %vm6588 = vcmp.lt.s32.totalorder %v6584, 24
  %vm6589 = vcmp.lt.s32.totalorder %v6585, 24
  %vm6590 = vcmp.lt.s32.totalorder %v6586, 24
  %vm6591 = vcmp.lt.s32.totalorder %v6587, 24
  %v6592 = vmul.f32 %v6567, 0.5
  %v6593 = vmul.f32 %v6568, 0.5
  %v6594 = vmul.f32 %v6569, 0.5
  %v6595 = vmul.f32 %v6570, 0.5
  %v6596 = vmul.f32 %v6571, 0.5
  %v6597 = vmul.f32 %v6572, 0.5
  %v6598 = vmul.f32 %v6573, 0.5
  %v6599 = vmul.f32 %v6574, 0.5
  %v6600 = vmul.f32 %v6575, 0.5
  %v6601 = vmul.f32 %v6576, 0.5
  %v6602 = vmul.f32 %v6577, 0.5
  %v6603 = vmul.f32 %v6578, 0.5
  %v6604 = vmul.f32 %v6579, 0.5
  %v6605 = vmul.f32 %v6580, 0.5
  %v6606 = vmul.f32 %v6581, 0.5
  %v6607 = vmul.f32 %v6582, 0.5
  %v6608 = vsel %vm6588, 1, 0
  %v6609 = vsel %vm6589, 1, 0
  %v6610 = vsel %vm6590, 1, 0
  %v6611 = vsel %vm6591, 1, 0
  %vm6612 = vcmp.eq.s32.totalorder %v6608, 1
  %vm6613 = vcmp.eq.s32.totalorder %v6609, 1
  %vm6614 = vcmp.eq.s32.totalorder %v6610, 1
  %vm6615 = vcmp.eq.s32.totalorder %v6611, 1
  %v6616 = vsel %vm6612, %v6592, %v6567
  %v6617 = vsel %vm6612, %v6593, %v6568
  %v6618 = vsel %vm6612, %v6594, %v6569
  %v6619 = vsel %vm6612, %v6595, %v6570
  %v6620 = vsel %vm6613, %v6596, %v6571
  %v6621 = vsel %vm6613, %v6597, %v6572
  %v6622 = vsel %vm6613, %v6598, %v6573
  %v6623 = vsel %vm6613, %v6599, %v6574
  %v6624 = vsel %vm6614, %v6600, %v6575
  %v6625 = vsel %vm6614, %v6601, %v6576
  %v6626 = vsel %vm6614, %v6602, %v6577
  %v6627 = vsel %vm6614, %v6603, %v6578
  %v6628 = vsel %vm6615, %v6604, %v6579
  %v6629 = vsel %vm6615, %v6605, %v6580
  %v6630 = vsel %vm6615, %v6606, %v6581
  %v6631 = vsel %vm6615, %v6607, %v6582
  %v6632 = vtanh.pop %v6616
  %v6633 = vtanh.pop %v6617
  %v6634 = vtanh.pop %v6618
  %v6635 = vtanh.pop %v6619
  %v6636 = vtanh.pop %v6620
  %v6637 = vtanh.pop %v6621
  %v6638 = vtanh.pop %v6622
  %v6639 = vtanh.pop %v6623
  %v6640 = vtanh.pop %v6624
  %v6641 = vtanh.pop %v6625
  %v6642 = vtanh.pop %v6626
  %v6643 = vtanh.pop %v6627
  %v6644 = vtanh.pop %v6628
  %v6645 = vtanh.pop %v6629
  %v6646 = vtanh.pop %v6630
  %v6647 = vtanh.pop %v6631
  %v6648 = vadd.f32 %v6632, 1.0
  %v6649 = vadd.f32 %v6633, 1.0
  %v6650 = vadd.f32 %v6634, 1.0
  %v6651 = vadd.f32 %v6635, 1.0
  %v6652 = vadd.f32 %v6636, 1.0
  %v6653 = vadd.f32 %v6637, 1.0
  %v6654 = vadd.f32 %v6638, 1.0
  %v6655 = vadd.f32 %v6639, 1.0
  %v6656 = vadd.f32 %v6640, 1.0
  %v6657 = vadd.f32 %v6641, 1.0
  %v6658 = vadd.f32 %v6642, 1.0
  %v6659 = vadd.f32 %v6643, 1.0
  %v6660 = vadd.f32 %v6644, 1.0
  %v6661 = vadd.f32 %v6645, 1.0
  %v6662 = vadd.f32 %v6646, 1.0
  %v6663 = vadd.f32 %v6647, 1.0
  %v6664 = vmul.f32 %v6648, 0.5
  %v6665 = vmul.f32 %v6649, 0.5
  %v6666 = vmul.f32 %v6650, 0.5
  %v6667 = vmul.f32 %v6651, 0.5
  %v6668 = vmul.f32 %v6652, 0.5
  %v6669 = vmul.f32 %v6653, 0.5
  %v6670 = vmul.f32 %v6654, 0.5
  %v6671 = vmul.f32 %v6655, 0.5
  %v6672 = vmul.f32 %v6656, 0.5
  %v6673 = vmul.f32 %v6657, 0.5
  %v6674 = vmul.f32 %v6658, 0.5
  %v6675 = vmul.f32 %v6659, 0.5
  %v6676 = vmul.f32 %v6660, 0.5
  %v6677 = vmul.f32 %v6661, 0.5
  %v6678 = vmul.f32 %v6662, 0.5
  %v6679 = vmul.f32 %v6663, 0.5
  %v6680 = vsel %vm6612, %v6664, %v6632
  %v6681 = vsel %vm6612, %v6665, %v6633
  %v6682 = vsel %vm6612, %v6666, %v6634
  %v6683 = vsel %vm6612, %v6667, %v6635
  %v6684 = vsel %vm6613, %v6668, %v6636
  %v6685 = vsel %vm6613, %v6669, %v6637
  %v6686 = vsel %vm6613, %v6670, %v6638
  %v6687 = vsel %vm6613, %v6671, %v6639
  %v6688 = vsel %vm6614, %v6672, %v6640
  %v6689 = vsel %vm6614, %v6673, %v6641
  %v6690 = vsel %vm6614, %v6674, %v6642
  %v6691 = vsel %vm6614, %v6675, %v6643
  %v6692 = vsel %vm6615, %v6676, %v6644
  %v6693 = vsel %vm6615, %v6677, %v6645
  %v6694 = vsel %vm6615, %v6678, %v6646
  %v6695 = vsel %vm6615, %v6679, %v6647
  %v6696 = vld [vmem:[%s5] sm:$0xff]
  %v6697 = vld [vmem:[%s5 + $0x8] sm:$0xff]
  %v6698 = vld [vmem:[%s5 + $0x10] sm:$0xff]
  %v6699 = vld [vmem:[%s5 + $0x18] sm:$0xff]
  %v6700 = vmul.f32 %v6684, %v6696
  %v6701 = vmul.f32 %v6685, %v6697
  %v6702 = vmul.f32 %v6686, %v6698
  %v6703 = vmul.f32 %v6687, %v6699
  %v6704 = vmul.f32 %v6680, %v6692
  %v6705 = vmul.f32 %v6681, %v6693
  %v6706 = vmul.f32 %v6682, %v6694
  %v6707 = vmul.f32 %v6683, %v6695
  %v6708 = vadd.f32 %v6700, %v6704
  %v6709 = vadd.f32 %v6701, %v6705
  %v6710 = vadd.f32 %v6702, %v6706
  %v6711 = vadd.f32 %v6703, %v6707
  %v6712 = vtanh.pop %v6708
  %v6713 = vtanh.pop %v6709
  %v6714 = vtanh.pop %v6710
  %v6715 = vtanh.pop %v6711
  %v6716 = vmul.f32 %v6688, %v6712
  %v6717 = vmul.f32 %v6689, %v6713
  %v6718 = vmul.f32 %v6690, %v6714
  %v6719 = vmul.f32 %v6691, %v6715
  %6720 = vst [vmem:[%s6] sm:$0xff] %v6716
  %6721 = vst [vmem:[%s6 + $0x8] sm:$0xff] %v6717
  %6722 = vst [vmem:[%s6 + $0x10] sm:$0xff] %v6718
  %6723 = vst [vmem:[%s6 + $0x18] sm:$0xff] %v6719
  %6724 = vst [vmem:[%s7] sm:$0xff] %v6708
  %6725 = vst [vmem:[%s7 + $0x8] sm:$0xff] %v6709
  %6726 = vst [vmem:[%s7 + $0x10] sm:$0xff] %v6710
  %6727 = vst [vmem:[%s7 + $0x18] sm:$0xff] %v6711
  // Predicated region
  $region26: #{conv_lstm_cell.1} parent=0 // pred_check
    _
  $region27: #{conv_lstm_cell.1} parent=0 // pred_check_branch
    %6729 = sbr.rel (0) target = $region29
  $region28: #{conv_lstm_cell.1} parent=0 // pred_region
    _
  $region29: #{conv_lstm_cell.1} parent=0 // pred_fallthru
    _
  // Predicated region
  $region30: #{conv_lstm_cell.1} parent=0 // pred_check
    _
  $region31: #{conv_lstm_cell.1} parent=0 // pred_check_branch
    %6731 = sbr.rel (0) target = $region33
  $region32: #{conv_lstm_cell.1} parent=0 // pred_region
    _
  $region33: #{conv_lstm_cell.1} parent=0 // pred_fallthru
    _
  // Predicated region
  $region34: #{conv_lstm_cell.1} parent=0 // pred_check
    _
  $region35: #{conv_lstm_cell.1} parent=0 // pred_check_branch
    %6733 = sbr.rel (0) target = $region37
  $region36: #{conv_lstm_cell.1} parent=0 // pred_region
    _
  $region37: #{conv_lstm_cell.1} parent=0 // pred_fallthru
    _
  // Predicated region
  $region38: #{conv_lstm_cell.1} parent=0 // pred_check
    _
  $region39: #{conv_lstm_cell.1} parent=0 // pred_check_branch
    %6735 = sbr.rel (0) target = $region41
  $region40: #{conv_lstm_cell.1} parent=0 // pred_region
    _
  $region41: #{conv_lstm_cell.1} parent=0 // pred_fallthru
    _

</llo_original>
